<compile_context>
chip_gen: v7x
topology: tpu7x:2x2x1
jax: 0.10.0
libtpu: 0.0.40
codegen_flags: <defaults>
</compile_context>

<pallas_src>
import functools

import jax
import jax.numpy as jnp
import numpy as np
from jax import lax
from jax.experimental import pallas as pl
from jax.experimental.pallas import tpu as pltpu

EPS = 1e-3        # matches nn.BatchNorm2d(eps=0.001) in the reference module
LANE = 128


def _round_up(x, m):
    return (x + m - 1) // m * m


def _pad_dim(a, axis, new_size):
    pad = [(0, 0)] * a.ndim
    pad[axis] = (0, new_size - a.shape[axis])
    return jnp.pad(a, pad)


def fold_bn(gamma, beta, mean, var):
    scale = gamma / jnp.sqrt(var + EPS)
    return scale, beta - mean * scale


def _vmem_capacity_bytes():
    """Physical VMEM of the current chip; conservative fallback (v7x) if unknown."""
    try:
        cap = int(pltpu.get_tpu_info().vmem_capacity_bytes)
        if cap > 0:
            return cap
    except Exception:
        pass
    return 64 * 1024 * 1024


def _pick_halo(stride, tile_h):
    """Smallest divisor of the strip's input rows that is >= stride + 3."""
    rows = stride * tile_h
    need = stride + 3
    for hb in range(need, rows + 1):
        if rows % hb == 0:
            return hb
    return rows


def _strip_vmem_bytes(tile_h, halo, stride, wp, wout, cinp, cp, weight_bytes):
    """Rough per-strip VMEM footprint (double-buffered I/O, weights, transients)."""
    rows_mid = tile_h + 2
    m1 = rows_mid * wout
    m2 = tile_h * wout
    in_buf = 2 * (stride * tile_h + halo) * wp * cinp * 2      # dbl-buffered bf16 input+halo
    out_buf = 2 * tile_h * wout * cp * 2                       # dbl-buffered bf16 output
    mid = rows_mid * (wout + 2) * cp * 2                       # intermediate scratch
    window = (stride * tile_h + stride + 3) * wp * cinp * 2    # concatenated input window
    phase1 = m1 * 9 * cinp * 2 + m1 * cp * 4                   # conv1 im2col + f32 result
    phase2 = m2 * 9 * cp * 2 + 2 * m2 * cp * 4                 # conv2 im2col + f32 results
    return in_buf + out_buf + 2 * weight_bytes + mid + window + max(phase1, phase2)


def _pick_tile_h(hout, stride, est_fn, budget, prefer_split):
    """Largest divisor of hout whose strip fits `budget`; when prefer_split, the
    largest such divisor that still yields >= 2 strips (v7x has 2 TensorCores)."""
    divisors = [d for d in range(hout, 0, -1)
                if hout % d == 0 and stride * d >= stride + 3]
    if not divisors:
        raise ValueError(f"output height {hout} too small to tile (stride={stride})")
    fitting = [d for d in divisors if est_fn(d) <= budget] or [divisors[-1]]
    if prefer_split:
        split = [d for d in fitting if hout // d >= 2]
        if split:
            return split[0]
    return fitting[0]


def _basic_block_kernel(xm_ref, xh_ref, w1_ref, b1_ref, w2_ref, b2_ref,
                        wd_ref, bd_ref, o_ref, mid_ref, *,
                        stride, hout, use_downsample):
    s = stride
    _, TH, Wout, Cp = o_ref.shape
    Cinp = xm_ref.shape[3]
    t = pl.program_id(1)

    # Input window for this strip: stride*TH rows from the main block plus the
    # first (stride + 3) halo rows (start of the next strip).  Both channel
    # counts are lane-padded to multiples of 128, so this is aligned copies.
    # TODO(synk): build the per-ky row windows straight from xm_ref/xh_ref to
    # drop this window-sized copy (~1/9 of the im2col traffic).
    win = jnp.concatenate([xm_ref[0], xh_ref[0, :s + 3]], axis=0)

    def shifted(arr, r0, c0, rows, cols):
        # rows x cols window starting at (r0, c0) with step `s` (static slices).
        if s == 1:
            return arr[r0:r0 + rows, c0:c0 + cols, :]
        return lax.slice(arr, (r0, c0, 0),
                         (r0 + s * (rows - 1) + 1, c0 + s * (cols - 1) + 1,
                          arr.shape[2]), (s, s, 1))

    # ---- conv1 (3x3, stride s) + folded bn1 + relu: one wide-K im2col matmul.
    # Cinp is a multiple of 128 -> every tap chunk is at an aligned lane offset.
    m1 = (TH + 2) * Wout
    taps1 = [shifted(win, ky, kx, TH + 2, Wout).reshape(m1, Cinp)
             for ky in range(3) for kx in range(3)]
    im1 = jnp.concatenate(taps1, axis=-1)                         # (m1, 9*Cinp)
    h1 = jnp.dot(im1, w1_ref[...], preferred_element_type=jnp.float32)
    h1 = jnp.maximum(h1 + b1_ref[...], 0.0).reshape(TH + 2, Wout, Cp)

    # Intermediate rows outside the image are conv2's zero padding, not
    # relu(bias): mask them to exactly zero.
    g = t * TH - 1 + lax.broadcasted_iota(jnp.int32, (TH + 2, 1, 1), 0)
    h1 = jnp.where((g >= 0) & (g < hout), h1, 0.0)

    # Stage the intermediate strip in VMEM (bf16).  Only the two width-pad
    # columns need zeros; the interior is fully overwritten every step.
    # TODO(synk): a (rows, (Wout+2)*Cp) flattened layout would make the kx taps
    # pure lane offsets; kept 3-D here for lowering simplicity.
    pad_col = jnp.zeros((TH + 2, 1, Cp), mid_ref.dtype)
    mid_ref[:, 0:1, :] = pad_col
    mid_ref[:, Wout + 1:Wout + 2, :] = pad_col
    mid_ref[:, 1:Wout + 1, :] = h1.astype(mid_ref.dtype)

    # ---- conv2 (3x3, stride 1) + folded bn2: one wide-K im2col matmul.
    mid = mid_ref[...]
    m2 = TH * Wout
    taps2 = [mid[ky:ky + TH, kx:kx + Wout, :].reshape(m2, Cp)
             for ky in range(3) for kx in range(3)]
    im2 = jnp.concatenate(taps2, axis=-1)                         # (m2, 9*Cp)
    h2 = jnp.dot(im2, w2_ref[...], preferred_element_type=jnp.float32)
    h2 = h2 + b2_ref[...]

    # ---- residual: 1x1 strided conv + folded bnd, or a direct identity add.
    xr = shifted(win, s + 1, 1, TH, Wout).reshape(m2, Cinp)
    if use_downsample:
        res = jnp.dot(xr, wd_ref[...], preferred_element_type=jnp.float32)
        res = res + bd_ref[...]
    else:
        res = xr.astype(jnp.float32)          # Cinp == Cp on the identity path

    out = jnp.maximum(h2 + res, 0.0)
    o_ref[0] = out.reshape(TH, Wout, Cp).astype(o_ref.dtype)


def basic_block_forward(x_nchw, params, *, stride=1, tile_h=None,
                        nhwc_padded_output=False):
    """Pallas BasicBlock.forward (eval-mode BN).  x_nchw: (B, Cin, H, W) f32."""
    B, Cin, H, W = x_nchw.shape
    planes = params["w1"].shape[0]
    s = stride
    Hout = (H - 1) // s + 1
    Wout = (W - 1) // s + 1
    Wp = W + 2
    Cp = _round_up(planes, LANE)          # lane-dense output channels
    Cinp = _round_up(Cin, LANE)           # lane-aligned input channels (im2col)
    use_downsample = (s != 1) or (Cin != planes)

    # ---- host-side prep: fold BN into conv weights, lane-pad both channel
    #      dims, flatten the 3x3 taps for the wide-K matmuls, cast to bf16.
    s1, b1 = fold_bn(*params["bn1"])
    s2, b2 = fold_bn(*params["bn2"])
    w1 = jnp.transpose(params["w1"], (2, 3, 1, 0)) * s1            # (3,3,Cin,planes)
    w2 = jnp.transpose(params["w2"], (2, 3, 1, 0)) * s2            # (3,3,planes,planes)
    w1 = _pad_dim(_pad_dim(w1, 2, Cinp), 3, Cp).reshape(9 * Cinp, Cp).astype(jnp.bfloat16)
    w2 = _pad_dim(_pad_dim(w2, 2, Cp), 3, Cp).reshape(9 * Cp, Cp).astype(jnp.bfloat16)
    b1p = _pad_dim(b1, 0, Cp).reshape(1, Cp).astype(jnp.float32)
    b2p = _pad_dim(b2, 0, Cp).reshape(1, Cp).astype(jnp.float32)

    if use_downsample:                     # 1x1-conv + BN downsample path
        sd, bd = fold_bn(*params["bnd"])
        wd = jnp.transpose(params["wd"], (2, 3, 1, 0))[0, 0] * sd   # (Cin, planes)
        wd = _pad_dim(_pad_dim(wd, 0, Cinp), 1, Cp).astype(jnp.bfloat16)
        bdp = _pad_dim(bd, 0, Cp).reshape(1, Cp).astype(jnp.float32)
    else:                                  # identity residual added in-kernel
        assert Cinp == Cp
        wd = jnp.zeros((8, LANE), jnp.bfloat16)      # unused dummies (tiny DMA)
        bdp = jnp.zeros((1, LANE), jnp.float32)

    # ---- per-generation tile selection + scoped-VMEM limit.
    weight_bytes = ((w1.size + w2.size + wd.size) * 2
                    + (b1p.size + b2p.size + bdp.size) * 4)
    vmem_cap = _vmem_capacity_bytes()
    budget = int(0.55 * vmem_cap)

    def est_fn(th):
        return _strip_vmem_bytes(th, _pick_halo(s, th), s, Wp, Wout, Cinp, Cp,
                                 weight_bytes)

    if tile_h is None:
        TH = _pick_tile_h(Hout, s, est_fn, budget, prefer_split=(B == 1))
    else:
        TH = tile_h
        assert Hout % TH == 0, "output height must be divisible by tile_h"
        assert s * TH >= s + 3
    HB = _pick_halo(s, TH)
    T = Hout // TH
    K_halo = (s * TH) // HB
    est = est_fn(TH)
    vmem_limit = int(min(max(int(1.25 * est), 32 * 1024 * 1024),
                         min(100 * 1024 * 1024, int(0.85 * vmem_cap))))

    # ---- layout: NCHW -> NHWC, pad rows/cols/channels, cast to bf16
    #      (one fused XLA pass; the bf16 cast is needed anyway).
    # TODO(synk): in a full network keep NHWC bf16 end-to-end to drop the
    # transposes and this pad pass.
    x = jnp.transpose(x_nchw, (0, 2, 3, 1))
    PT = s + 1
    PB = s * Hout + HB - H - PT
    xp = jnp.pad(x, ((0, 0), (PT, PB), (1, 1), (0, Cinp - Cin))).astype(jnp.bfloat16)

    kernel = functools.partial(_basic_block_kernel, stride=s, hout=Hout,
                               use_downsample=use_downsample)

    # TODO(synk): single-buffer the constant weight/bias operands via
    # pipeline_mode=pl.Buffered(1) once confirmed on the target jaxlib; it
    # halves the resident weight VMEM for deep (512-ch) stages on v7x.
    out = pl.pallas_call(
        kernel,
        out_shape=jax.ShapeDtypeStruct((B, Hout, Wout, Cp), jnp.bfloat16),
        grid=(B, T),
        in_specs=[
            # main input strip: stride*TH rows
            pl.BlockSpec((1, s * TH, Wp, Cinp), lambda b, t: (b, t, 0, 0)),
            # halo rows: small block at the start of the next strip
            pl.BlockSpec((1, HB, Wp, Cinp),
                         lambda b, t: (b, (t + 1) * K_halo, 0, 0)),
            pl.BlockSpec(w1.shape, lambda b, t: (0, 0)),
            pl.BlockSpec(b1p.shape, lambda b, t: (0, 0)),
            pl.BlockSpec(w2.shape, lambda b, t: (0, 0)),
            pl.BlockSpec(b2p.shape, lambda b, t: (0, 0)),
            pl.BlockSpec(wd.shape, lambda b, t: (0, 0)),
            pl.BlockSpec(bdp.shape, lambda b, t: (0, 0)),
        ],
        out_specs=pl.BlockSpec((1, TH, Wout, Cp), lambda b, t: (b, t, 0, 0)),
        scratch_shapes=[pltpu.VMEM((TH + 2, Wout + 2, Cp), jnp.bfloat16)],
        compiler_params=pltpu.CompilerParams(
            dimension_semantics=("parallel", "parallel"),
            vmem_limit_bytes=vmem_limit),
    )(xp, xp, w1, b1p, w2, b2p, wd, bdp)

    if nhwc_padded_output:
        return out                                   # (B, Hout, Wout, Cp) bf16
    return jnp.transpose(out[..., :planes].astype(jnp.float32), (0, 3, 1, 2))


def reference_forward(x, params, *, stride=1):
    """Pure-JAX f32 reference (NCHW), mirrors the PyTorch module (eval-mode BN)."""
    def conv(y, w, s_, p):
        return lax.conv_general_dilated(
            y, w, (s_, s_), ((p, p), (p, p)),
            dimension_numbers=("NCHW", "OIHW", "NCHW"))

    def bn(y, g, b, m, v):
        shp = (1, -1, 1, 1)
        return ((y - m.reshape(shp)) / jnp.sqrt(v.reshape(shp) + EPS)
                * g.reshape(shp) + b.reshape(shp))

    inplanes = x.shape[1]
    planes = params["w1"].shape[0]
    if stride != 1 or inplanes != planes:
        residual = bn(conv(x, params["wd"], stride, 0), *params["bnd"])
    else:
        residual = x
    out = jnp.maximum(bn(conv(x, params["w1"], stride, 1), *params["bn1"]), 0.0)
    out = bn(conv(out, params["w2"], 1, 1), *params["bn2"])
    return jnp.maximum(out + residual, 0.0)


if __name__ == "__main__":
    root = jax.random.PRNGKey(0)

    def bn_params(k, c):
        k1, k2, k3, k4 = jax.random.split(k, 4)
        gamma = 1.0 + 0.1 * jax.random.normal(k1, (c,), jnp.float32)
        beta = 0.1 * jax.random.normal(k2, (c,), jnp.float32)
        mean = 0.1 * jax.random.normal(k3, (c,), jnp.float32)
        var = jax.random.uniform(k4, (c,), jnp.float32, 0.5, 1.5)
        return gamma, beta, mean, var

    def make_case(key, B, inplanes, planes, H, W, stride):
        ks = jax.random.split(key, 7)
        x = jax.random.normal(ks[0], (B, inplanes, H, W), jnp.float32)
        params = {
            "w1": 0.1 * jax.random.normal(ks[1], (planes, inplanes, 3, 3), jnp.float32),
            "w2": 0.1 * jax.random.normal(ks[2], (planes, planes, 3, 3), jnp.float32),
            "bn1": bn_params(ks[3], planes),
            "bn2": bn_params(ks[4], planes),
        }
        if stride != 1 or inplanes != planes:
            params["wd"] = 0.1 * jax.random.normal(
                ks[5], (planes, inplanes, 1, 1), jnp.float32)
            params["bnd"] = bn_params(ks[6], planes)
        return x, params

    cases = [
        # (B, inplanes, planes, H, W, stride)
        (2, 4, 8, 16, 16, 1),    # downsample path (channel change)
        (1, 8, 8, 16, 16, 1),    # identity-residual path, multi-strip grid
        (2, 4, 8, 16, 16, 2),    # strided downsample path
    ]
    keys = jax.random.split(root, len(cases))
    for key, (B, inplanes, planes, H, W, stride) in zip(keys, cases):
        x, params = make_case(key, B, inplanes, planes, H, W, stride)
        fwd = jax.jit(functools.partial(basic_block_forward, stride=stride))
        out = jax.block_until_ready(fwd(x, params))
        ref = reference_forward(x, params, stride=stride)
        Hout, Wout = (H - 1) // stride + 1, (W - 1) // stride + 1
        assert out.shape == (B, planes, Hout, Wout), out.shape
        err = np.max(np.abs(np.asarray(out) - np.asarray(ref)))
        # Tolerance loosened vs. the f32 reference: activations/weights go to
        # the MXU in bf16 (f32 accumulation) and the kernel output is bf16.
        assert np.allclose(np.asarray(out), np.asarray(ref),
                           atol=5e-2, rtol=5e-2), f"mismatch: max abs err {err}"
    print("KERNEL_OK")
</pallas_src>

<mosaic_0001>
module attributes {stable_mosaic.version = 11 : i64} {
  func.func @_basic_block_kernel(%arg0: i32, %arg1: i32, %arg2: memref<1x16x18x128xbf16, #tpu.memory_space<vmem>>, %arg3: memref<1x4x18x128xbf16, #tpu.memory_space<vmem>>, %arg4: memref<1152x128xbf16, #tpu.memory_space<vmem>>, %arg5: memref<1x128xf32, #tpu.memory_space<vmem>>, %arg6: memref<1152x128xbf16, #tpu.memory_space<vmem>>, %arg7: memref<1x128xf32, #tpu.memory_space<vmem>>, %arg8: memref<128x128xbf16, #tpu.memory_space<vmem>>, %arg9: memref<1x128xf32, #tpu.memory_space<vmem>>, %arg10: memref<1x16x16x128xbf16, #tpu.memory_space<vmem>>, %arg11: memref<18x18x128xbf16, #tpu.memory_space<vmem>>) attributes {dimension_semantics = [#tpu.dimension_semantics<parallel>, #tpu.dimension_semantics<parallel>], iteration_bounds = array<i64: 2, 1>, scalar_prefetch = 0 : i64, scratch_operands = 1 : i64, tpu.core_type = #tpu.core_type<tc>, window_params = [{transform_indices = @transform_0, window_bounds = array<i64: 1, 16, 18, 128>}, {transform_indices = @transform_1, window_bounds = array<i64: 1, 4, 18, 128>}, {pipeline_mode = #tpu.pipeline_mode<synchronous>, transform_indices = @transform_2, window_bounds = array<i64: 1152, 128>}, {pipeline_mode = #tpu.pipeline_mode<synchronous>, transform_indices = @transform_3, window_bounds = array<i64: 1, 128>}, {pipeline_mode = #tpu.pipeline_mode<synchronous>, transform_indices = @transform_4, window_bounds = array<i64: 1152, 128>}, {pipeline_mode = #tpu.pipeline_mode<synchronous>, transform_indices = @transform_5, window_bounds = array<i64: 1, 128>}, {pipeline_mode = #tpu.pipeline_mode<synchronous>, transform_indices = @transform_6, window_bounds = array<i64: 128, 128>}, {pipeline_mode = #tpu.pipeline_mode<synchronous>, transform_indices = @transform_7, window_bounds = array<i64: 1, 128>}, {transform_indices = @transform_8, window_bounds = array<i64: 1, 16, 16, 128>}]} {
    %c0 = arith.constant 0 : index
    %c0_0 = arith.constant 0 : index
    %c0_1 = arith.constant 0 : index
    %c0_2 = arith.constant 0 : index
    %0 = vector.load %arg2[%c0, %c0_0, %c0_1, %c0_2] : memref<1x16x18x128xbf16, #tpu.memory_space<vmem>>, vector<1x16x18x128xbf16>
    %1 = vector.shape_cast %0 : vector<1x16x18x128xbf16> to vector<16x18x128xbf16>
    %c0_3 = arith.constant 0 : index
    %c0_4 = arith.constant 0 : index
    %c0_5 = arith.constant 0 : index
    %c0_6 = arith.constant 0 : index
    %2 = vector.load %arg3[%c0_3, %c0_4, %c0_5, %c0_6] : memref<1x4x18x128xbf16, #tpu.memory_space<vmem>>, vector<1x4x18x128xbf16>
    %3 = vector.shape_cast %2 : vector<1x4x18x128xbf16> to vector<4x18x128xbf16>
    %4 = tpu.concatenate %1, %3 in 0 : vector<16x18x128xbf16>, vector<4x18x128xbf16> -> vector<20x18x128xbf16>
    %5 = vector.extract_strided_slice %4 {offsets = [0, 0, 0], sizes = [18, 16, 128], strides = [1, 1, 1]} : vector<20x18x128xbf16> to vector<18x16x128xbf16>
    %6 = vector.shape_cast %5 : vector<18x16x128xbf16> to vector<288x128xbf16>
    %7 = vector.extract_strided_slice %4 {offsets = [0, 1, 0], sizes = [18, 16, 128], strides = [1, 1, 1]} : vector<20x18x128xbf16> to vector<18x16x128xbf16>
    %8 = vector.shape_cast %7 : vector<18x16x128xbf16> to vector<288x128xbf16>
    %9 = vector.extract_strided_slice %4 {offsets = [0, 2, 0], sizes = [18, 16, 128], strides = [1, 1, 1]} : vector<20x18x128xbf16> to vector<18x16x128xbf16>
    %10 = vector.shape_cast %9 : vector<18x16x128xbf16> to vector<288x128xbf16>
    %11 = vector.extract_strided_slice %4 {offsets = [1, 0, 0], sizes = [18, 16, 128], strides = [1, 1, 1]} : vector<20x18x128xbf16> to vector<18x16x128xbf16>
    %12 = vector.shape_cast %11 : vector<18x16x128xbf16> to vector<288x128xbf16>
    %13 = vector.extract_strided_slice %4 {offsets = [1, 1, 0], sizes = [18, 16, 128], strides = [1, 1, 1]} : vector<20x18x128xbf16> to vector<18x16x128xbf16>
    %14 = vector.shape_cast %13 : vector<18x16x128xbf16> to vector<288x128xbf16>
    %15 = vector.extract_strided_slice %4 {offsets = [1, 2, 0], sizes = [18, 16, 128], strides = [1, 1, 1]} : vector<20x18x128xbf16> to vector<18x16x128xbf16>
    %16 = vector.shape_cast %15 : vector<18x16x128xbf16> to vector<288x128xbf16>
    %17 = vector.extract_strided_slice %4 {offsets = [2, 0, 0], sizes = [18, 16, 128], strides = [1, 1, 1]} : vector<20x18x128xbf16> to vector<18x16x128xbf16>
    %18 = vector.shape_cast %17 : vector<18x16x128xbf16> to vector<288x128xbf16>
    %19 = vector.extract_strided_slice %4 {offsets = [2, 1, 0], sizes = [18, 16, 128], strides = [1, 1, 1]} : vector<20x18x128xbf16> to vector<18x16x128xbf16>
    %20 = vector.shape_cast %19 : vector<18x16x128xbf16> to vector<288x128xbf16>
    %21 = vector.extract_strided_slice %4 {offsets = [2, 2, 0], sizes = [18, 16, 128], strides = [1, 1, 1]} : vector<20x18x128xbf16> to vector<18x16x128xbf16>
    %22 = vector.shape_cast %21 : vector<18x16x128xbf16> to vector<288x128xbf16>
    %23 = tpu.concatenate %6, %8, %10, %12, %14, %16, %18, %20, %22 in 1 : vector<288x128xbf16>, vector<288x128xbf16>, vector<288x128xbf16>, vector<288x128xbf16>, vector<288x128xbf16>, vector<288x128xbf16>, vector<288x128xbf16>, vector<288x128xbf16>, vector<288x128xbf16> -> vector<288x1152xbf16>
    %c0_7 = arith.constant 0 : index
    %c0_8 = arith.constant 0 : index
    %24 = vector.load %arg4[%c0_7, %c0_8] : memref<1152x128xbf16, #tpu.memory_space<vmem>>, vector<1152x128xbf16>
    %cst = arith.constant dense<0.000000e+00> : vector<288x128xf32>
    %25 = tpu.matmul %23, %24, %cst {dimension_numbers = #tpu.dot_dimension_numbers<[1], [0], [0], [1], [0, 0, 1, 1], [], []>} : vector<288x1152xbf16>, vector<1152x128xbf16>, vector<288x128xf32> -> vector<288x128xf32>
    %c0_9 = arith.constant 0 : index
    %c0_10 = arith.constant 0 : index
    %26 = vector.load %arg5[%c0_9, %c0_10] : memref<1x128xf32, #tpu.memory_space<vmem>>, vector<1x128xf32>
    %27 = vector.broadcast %26 : vector<1x128xf32> to vector<288x128xf32>
    %28 = arith.addf %25, %27 : vector<288x128xf32>
    %cst_11 = arith.constant 0.000000e+00 : f32
    %29 = vector.broadcast %cst_11 : f32 to vector<288x128xf32>
    %30 = arith.maximumf %28, %29 : vector<288x128xf32>
    %31 = vector.shape_cast %30 : vector<288x128xf32> to vector<18x16x128xf32>
    %c16_i32 = arith.constant 16 : i32
    %32 = arith.muli %arg1, %c16_i32 : i32
    %c1_i32 = arith.constant 1 : i32
    %33 = arith.subi %32, %c1_i32 : i32
    %34 = tpu.iota {dimensions = array<i32: 0>} : vector<18x1x1xi32>
    %35 = vector.broadcast %33 : i32 to vector<18x1x1xi32>
    %36 = arith.addi %35, %34 : vector<18x1x1xi32>
    %c0_i32 = arith.constant 0 : i32
    %37 = vector.broadcast %c0_i32 : i32 to vector<18x1x1xi32>
    %38 = arith.cmpi sge, %36, %37 : vector<18x1x1xi32>
    %c16_i32_12 = arith.constant 16 : i32
    %39 = vector.broadcast %c16_i32_12 : i32 to vector<18x1x1xi32>
    %40 = arith.cmpi slt, %36, %39 : vector<18x1x1xi32>
    %41 = arith.andi %38, %40 : vector<18x1x1xi1>
    %cst_13 = arith.constant 0.000000e+00 : f32
    %42 = vector.shape_cast %41 : vector<18x1x1xi1> to vector<18x1x1xi1>
    %43 = vector.broadcast %42 : vector<18x1x1xi1> to vector<18x16x128xi1>
    %44 = vector.broadcast %cst_13 : f32 to vector<18x16x128xf32>
    %45 = arith.select %43, %31, %44 : vector<18x16x128xi1>, vector<18x16x128xf32>
    %cst_14 = arith.constant 0.000000e+00 : bf16
    %46 = vector.broadcast %cst_14 : bf16 to vector<18x1x128xbf16>
    %c0_15 = arith.constant 0 : index
    %c0_16 = arith.constant 0 : index
    %c0_17 = arith.constant 0 : index
    %47 = vector.load %arg11[%c0_15, %c0_16, %c0_17] : memref<18x18x128xbf16, #tpu.memory_space<vmem>>, vector<18x1x128xbf16>
    tpu.vector_store %arg11[%c0_15, %c0_16, %c0_17], %46 {strides = array<i32>} : memref<18x18x128xbf16, #tpu.memory_space<vmem>>, vector<18x1x128xbf16>,
    %c0_18 = arith.constant 0 : index
    %c17 = arith.constant 17 : index
    %c0_19 = arith.constant 0 : index
    %48 = vector.load %arg11[%c0_18, %c17, %c0_19] : memref<18x18x128xbf16, #tpu.memory_space<vmem>>, vector<18x1x128xbf16>
    tpu.vector_store %arg11[%c0_18, %c17, %c0_19], %46 {strides = array<i32>} : memref<18x18x128xbf16, #tpu.memory_space<vmem>>, vector<18x1x128xbf16>,
    %49 = arith.truncf %45 : vector<18x16x128xf32> to vector<18x16x128xbf16>
    %c0_20 = arith.constant 0 : index
    %c1 = arith.constant 1 : index
    %c0_21 = arith.constant 0 : index
    %50 = vector.load %arg11[%c0_20, %c1, %c0_21] : memref<18x18x128xbf16, #tpu.memory_space<vmem>>, vector<18x16x128xbf16>
    tpu.vector_store %arg11[%c0_20, %c1, %c0_21], %49 {strides = array<i32>} : memref<18x18x128xbf16, #tpu.memory_space<vmem>>, vector<18x16x128xbf16>,
    %c0_22 = arith.constant 0 : index
    %c0_23 = arith.constant 0 : index
    %c0_24 = arith.constant 0 : index
    %51 = vector.load %arg11[%c0_22, %c0_23, %c0_24] : memref<18x18x128xbf16, #tpu.memory_space<vmem>>, vector<18x18x128xbf16>
    %52 = vector.extract_strided_slice %51 {offsets = [0, 0, 0], sizes = [16, 16, 128], strides = [1, 1, 1]} : vector<18x18x128xbf16> to vector<16x16x128xbf16>
    %53 = vector.shape_cast %52 : vector<16x16x128xbf16> to vector<256x128xbf16>
    %54 = vector.extract_strided_slice %51 {offsets = [0, 1, 0], sizes = [16, 16, 128], strides = [1, 1, 1]} : vector<18x18x128xbf16> to vector<16x16x128xbf16>
    %55 = vector.shape_cast %54 : vector<16x16x128xbf16> to vector<256x128xbf16>
    %56 = vector.extract_strided_slice %51 {offsets = [0, 2, 0], sizes = [16, 16, 128], strides = [1, 1, 1]} : vector<18x18x128xbf16> to vector<16x16x128xbf16>
    %57 = vector.shape_cast %56 : vector<16x16x128xbf16> to vector<256x128xbf16>
    %58 = vector.extract_strided_slice %51 {offsets = [1, 0, 0], sizes = [16, 16, 128], strides = [1, 1, 1]} : vector<18x18x128xbf16> to vector<16x16x128xbf16>
    %59 = vector.shape_cast %58 : vector<16x16x128xbf16> to vector<256x128xbf16>
    %60 = vector.extract_strided_slice %51 {offsets = [1, 1, 0], sizes = [16, 16, 128], strides = [1, 1, 1]} : vector<18x18x128xbf16> to vector<16x16x128xbf16>
    %61 = vector.shape_cast %60 : vector<16x16x128xbf16> to vector<256x128xbf16>
    %62 = vector.extract_strided_slice %51 {offsets = [1, 2, 0], sizes = [16, 16, 128], strides = [1, 1, 1]} : vector<18x18x128xbf16> to vector<16x16x128xbf16>
    %63 = vector.shape_cast %62 : vector<16x16x128xbf16> to vector<256x128xbf16>
    %64 = vector.extract_strided_slice %51 {offsets = [2, 0, 0], sizes = [16, 16, 128], strides = [1, 1, 1]} : vector<18x18x128xbf16> to vector<16x16x128xbf16>
    %65 = vector.shape_cast %64 : vector<16x16x128xbf16> to vector<256x128xbf16>
    %66 = vector.extract_strided_slice %51 {offsets = [2, 1, 0], sizes = [16, 16, 128], strides = [1, 1, 1]} : vector<18x18x128xbf16> to vector<16x16x128xbf16>
    %67 = vector.shape_cast %66 : vector<16x16x128xbf16> to vector<256x128xbf16>
    %68 = vector.extract_strided_slice %51 {offsets = [2, 2, 0], sizes = [16, 16, 128], strides = [1, 1, 1]} : vector<18x18x128xbf16> to vector<16x16x128xbf16>
    %69 = vector.shape_cast %68 : vector<16x16x128xbf16> to vector<256x128xbf16>
    %70 = tpu.concatenate %53, %55, %57, %59, %61, %63, %65, %67, %69 in 1 : vector<256x128xbf16>, vector<256x128xbf16>, vector<256x128xbf16>, vector<256x128xbf16>, vector<256x128xbf16>, vector<256x128xbf16>, vector<256x128xbf16>, vector<256x128xbf16>, vector<256x128xbf16> -> vector<256x1152xbf16>
    %c0_25 = arith.constant 0 : index
    %c0_26 = arith.constant 0 : index
    %71 = vector.load %arg6[%c0_25, %c0_26] : memref<1152x128xbf16, #tpu.memory_space<vmem>>, vector<1152x128xbf16>
    %cst_27 = arith.constant dense<0.000000e+00> : vector<256x128xf32>
    %72 = tpu.matmul %70, %71, %cst_27 {dimension_numbers = #tpu.dot_dimension_numbers<[1], [0], [0], [1], [0, 0, 1, 1], [], []>} : vector<256x1152xbf16>, vector<1152x128xbf16>, vector<256x128xf32> -> vector<256x128xf32>
    %c0_28 = arith.constant 0 : index
    %c0_29 = arith.constant 0 : index
    %73 = vector.load %arg7[%c0_28, %c0_29] : memref<1x128xf32, #tpu.memory_space<vmem>>, vector<1x128xf32>
    %74 = vector.broadcast %73 : vector<1x128xf32> to vector<256x128xf32>
    %75 = arith.addf %72, %74 : vector<256x128xf32>
    %76 = vector.extract_strided_slice %4 {offsets = [2, 1, 0], sizes = [16, 16, 128], strides = [1, 1, 1]} : vector<20x18x128xbf16> to vector<16x16x128xbf16>
    %77 = vector.shape_cast %76 : vector<16x16x128xbf16> to vector<256x128xbf16>
    %c0_30 = arith.constant 0 : index
    %c0_31 = arith.constant 0 : index
    %78 = vector.load %arg8[%c0_30, %c0_31] : memref<128x128xbf16, #tpu.memory_space<vmem>>, vector<128x128xbf16>
    %cst_32 = arith.constant dense<0.000000e+00> : vector<256x128xf32>
    %79 = tpu.matmul %77, %78, %cst_32 {dimension_numbers = #tpu.dot_dimension_numbers<[1], [0], [0], [1], [0, 0, 1, 1], [], []>} : vector<256x128xbf16>, vector<128x128xbf16>, vector<256x128xf32> -> vector<256x128xf32>
    %c0_33 = arith.constant 0 : index
    %c0_34 = arith.constant 0 : index
    %80 = vector.load %arg9[%c0_33, %c0_34] : memref<1x128xf32, #tpu.memory_space<vmem>>, vector<1x128xf32>
    %81 = vector.broadcast %80 : vector<1x128xf32> to vector<256x128xf32>
    %82 = arith.addf %79, %81 : vector<256x128xf32>
    %83 = arith.addf %75, %82 : vector<256x128xf32>
    %cst_35 = arith.constant 0.000000e+00 : f32
    %84 = vector.broadcast %cst_35 : f32 to vector<256x128xf32>
    %85 = arith.maximumf %83, %84 : vector<256x128xf32>
    %86 = vector.shape_cast %85 : vector<256x128xf32> to vector<16x16x128xf32>
    %87 = arith.truncf %86 : vector<16x16x128xf32> to vector<16x16x128xbf16>
    %c0_36 = arith.constant 0 : index
    %c0_37 = arith.constant 0 : index
    %c0_38 = arith.constant 0 : index
    %c0_39 = arith.constant 0 : index
    %88 = vector.load %arg10[%c0_36, %c0_37, %c0_38, %c0_39] : memref<1x16x16x128xbf16, #tpu.memory_space<vmem>>, vector<1x16x16x128xbf16>
    %89 = vector.shape_cast %88 : vector<1x16x16x128xbf16> to vector<16x16x128xbf16>
    %90 = vector.shape_cast %87 : vector<16x16x128xbf16> to vector<1x16x16x128xbf16>
    tpu.vector_store %arg10[%c0_36, %c0_37, %c0_38, %c0_39], %90 {strides = array<i32>} : memref<1x16x16x128xbf16, #tpu.memory_space<vmem>>, vector<1x16x16x128xbf16>,
    return
  }
  func.func @transform_0(%arg0: i32, %arg1: i32) -> (i32, i32, i32, i32) {
    %c0_i32 = arith.constant 0 : i32
    %c0_i32_0 = arith.constant 0 : i32
    %c0_i32_1 = arith.constant 0 : i32
    return %arg0, %arg1, %c0_i32, %c0_i32_0 : i32, i32, i32, i32
  }
  func.func @transform_1(%arg0: i32, %arg1: i32) -> (i32, i32, i32, i32) {
    %c1_i32 = arith.constant 1 : i32
    %0 = arith.addi %arg1, %c1_i32 : i32
    %c4_i32 = arith.constant 4 : i32
    %1 = arith.muli %0, %c4_i32 : i32
    %c0_i32 = arith.constant 0 : i32
    %c0_i32_0 = arith.constant 0 : i32
    %c0_i32_1 = arith.constant 0 : i32
    return %arg0, %1, %c0_i32, %c0_i32_0 : i32, i32, i32, i32
  }
  func.func @transform_2(%arg0: i32, %arg1: i32) -> (i32, i32) {
    %c0_i32 = arith.constant 0 : i32
    %c0_i32_0 = arith.constant 0 : i32
    %c0_i32_1 = arith.constant 0 : i32
    return %c0_i32, %c0_i32_0 : i32, i32
  }
  func.func @transform_3(%arg0: i32, %arg1: i32) -> (i32, i32) {
    %c0_i32 = arith.constant 0 : i32
    %c0_i32_0 = arith.constant 0 : i32
    %c0_i32_1 = arith.constant 0 : i32
    return %c0_i32, %c0_i32_0 : i32, i32
  }
  func.func @transform_4(%arg0: i32, %arg1: i32) -> (i32, i32) {
    %c0_i32 = arith.constant 0 : i32
    %c0_i32_0 = arith.constant 0 : i32
    %c0_i32_1 = arith.constant 0 : i32
    return %c0_i32, %c0_i32_0 : i32, i32
  }
  func.func @transform_5(%arg0: i32, %arg1: i32) -> (i32, i32) {
    %c0_i32 = arith.constant 0 : i32
    %c0_i32_0 = arith.constant 0 : i32
    %c0_i32_1 = arith.constant 0 : i32
    return %c0_i32, %c0_i32_0 : i32, i32
  }
  func.func @transform_6(%arg0: i32, %arg1: i32) -> (i32, i32) {
    %c0_i32 = arith.constant 0 : i32
    %c0_i32_0 = arith.constant 0 : i32
    %c0_i32_1 = arith.constant 0 : i32
    return %c0_i32, %c0_i32_0 : i32, i32
  }
  func.func @transform_7(%arg0: i32, %arg1: i32) -> (i32, i32) {
    %c0_i32 = arith.constant 0 : i32
    %c0_i32_0 = arith.constant 0 : i32
    %c0_i32_1 = arith.constant 0 : i32
    return %c0_i32, %c0_i32_0 : i32, i32
  }
  func.func @transform_8(%arg0: i32, %arg1: i32) -> (i32, i32, i32, i32) {
    %c0_i32 = arith.constant 0 : i32
    %c0_i32_0 = arith.constant 0 : i32
    %c0_i32_1 = arith.constant 0 : i32
    return %arg0, %arg1, %c0_i32, %c0_i32_0 : i32, i32, i32, i32
  }
}

</mosaic_0001>

<llo_original>
// kernel: basic_block_forward.1
$region0: #{basic_block_forward.1}
  #allocation0 [shape = 'u32[]', space=smem, size = 0x4, offset = 0x4, fixed_abs, tag = 'smem constant byte address 0x4 - core index']
  #allocation1 [shape = 'u32[144,128]{1,0:T(1,128)}', space=vmem, size = 0x12000, scoped, tag = 'internal scratch']
  #allocation2 [shape = 'bf16[18,18,128]{2,1,0:T(8,128)(2,1)}', space=vmem, size = 0x1b000, scoped, tag = 'scratch operand']
  %s0 = inlined_call_operand.vmem [shape: bf16[2,20,18,128], index: 0, kind: input, shape index: {}, may-alias: {0,1}]
  %s1 = inlined_call_operand.vmem [shape: bf16[2,20,18,128], index: 1, kind: input, shape index: {}, may-alias: {0,1}]
  %s2 = inlined_call_operand.vmem [shape: bf16[1152,128], index: 2, kind: input, shape index: {}]
  %s3 = inlined_call_operand.vmem [shape: f32[1,128], index: 3, kind: input, shape index: {}]
  %s4 = inlined_call_operand.vmem [shape: bf16[1152,128], index: 4, kind: input, shape index: {}]
  %s5 = inlined_call_operand.vmem [shape: f32[1,128], index: 5, kind: input, shape index: {}]
  %s6 = inlined_call_operand.vmem [shape: bf16[128,128], index: 6, kind: input, shape index: {}]
  %s7 = inlined_call_operand.vmem [shape: f32[1,128], index: 7, kind: input, shape index: {}]
  %s8 = inlined_call_operand.vmem [shape: bf16[2,16,16,128], index: 8, kind: output, shape index: {}]
  %s9 = sld [smem:[#allocation0]]
  $region65: #{basic_block_forward.1} parent=0
    _
  %s11 = ssub.s32 1, %s9
  %s12 = scalar_select 0, %s11, %s9
  loop: start=0, step=1, limit=4
  $region2: #{basic_block_forward.1} parent=0 // loop_pre_header
    _
  $region3: #{basic_block_forward.1} parent=0 // loop_header
    %s14 = sphi 0, %s18
    %p15 = scmp.ge.s32.totalorder %s14, 4
    %s21 = sphi 0, %s33
    %s22 = sphi 0, %s29
    %s23 = sphi 0, %s21
    %s24 = sphi 0, %s22
    %s25 = sphi 0, %s23
    %s26 = sphi 0, %s24
    %s38 = sphi 0, %s40
    %s41 = sphi 0, %s38
    %s42 = sphi 0, %s41
    %s58 = sphi 0, %s42
    %s70 = sphi 0, %s72
    %s73 = sphi 0, %s70
    %s74 = sphi 0, %s73
    %s90 = sphi 0, %s74
    %s94 = sphi 0, %s94
    %s96 = sphi 0, %s94
    %s97 = sphi 0, %s96
    %s111 = sphi 0, %s97
    %s115 = sphi 0, %s115
    %s117 = sphi 0, %s115
    %s118 = sphi 0, %s117
    %s132 = sphi 0, %s118
    %s136 = sphi 0, %s136
    %s138 = sphi 0, %s136
    %s139 = sphi 0, %s138
    %s153 = sphi 0, %s139
    %s157 = sphi 0, %s157
    %s159 = sphi 0, %s157
    %s160 = sphi 0, %s159
    %s174 = sphi 0, %s160
    %s178 = sphi 0, %s178
    %s180 = sphi 0, %s178
    %s181 = sphi 0, %s180
    %s195 = sphi 0, %s181
    %s199 = sphi 0, %s199
    %s201 = sphi 0, %s199
    %s202 = sphi 0, %s201
    %s216 = sphi 0, %s202
    %s224 = sphi 0, %s226
    %s227 = sphi 0, %s224
    %s228 = sphi 0, %s227
    %s244 = sphi 0, %s228
  $region4: #{basic_block_forward.1} parent=0 // loop_header_branch
    %17 = sbr.rel (%p15) target = $region8
  $region5: #{basic_block_forward.1} parent=0 // loop_body
    %s19 = ssub.s32 %s14, 1
    %s20 = ssub.s32 %s14, 2
    %s27 = sadd.s32 1, %s22
    %p28 = scmp.ge.s32.totalorder %s27, 1
    %s29 = scalar_select %p28, 0, %s27
    %s30 = sadd.s32 1, %s21
    %s31 = scalar_select %p28, %s30, %s21
    %p32 = scmp.ge.s32.totalorder %s31, 2
    %s33 = scalar_select %p32, 0, %s31
    %s34 = ssub.s32 %s21, %s33
    %s35 = ssub.s32 %s22, %s29
    %s36 = sor.u32 %s34, %s35
    %p37 = scmp.eq.s32.totalorder %s36, 0
    %s39 = sadd.s32 %s38, 1
    %s40 = scalar_select %p37, %s38, %s39
    %p43 = pneg %p37
    %p44 = scmp.eq.s32.totalorder %s14, 1
    %p45 = por %p43, %p44
    %p46 = scmp.ne.s32.totalorder %s38, %s41
    %p47 = scmp.eq.s32.totalorder %s14, 0
    %p48 = por %p46, %p47
    %p49 = scmp.ne.s32.totalorder %s38, %s41
    %p50 = scmp.eq.s32.totalorder %s19, 1
    %p51 = por %p49, %p50
    %p52 = scmp.ne.s32.totalorder %s41, %s42
    %p53 = scmp.eq.s32.totalorder %s19, 0
    %p54 = por %p52, %p53
    %p55 = scmp.ne.s32.totalorder %s41, %s42
    %p56 = scmp.eq.s32.totalorder %s20, 1
    %p57 = por %p55, %p56
    %p59 = scmp.ne.s32.totalorder %s42, %s58
    %p60 = scmp.eq.s32.totalorder %s20, 0
    %p61 = por %p59, %p60
    %s62 = sadd.s32 %s22, 1
    %s63 = smul.u32 %s62, 4
    %s64 = sadd.s32 %s29, 1
    %s65 = smul.u32 %s64, 4
    %s66 = ssub.s32 %s21, %s33
    %s67 = ssub.s32 %s63, %s65
    %s68 = sor.u32 %s66, %s67
    %p69 = scmp.eq.s32.totalorder %s68, 0
    %s71 = sadd.s32 %s70, 1
    %s72 = scalar_select %p69, %s70, %s71
    %p75 = pneg %p69
    %p76 = scmp.eq.s32.totalorder %s14, 1
    %p77 = por %p75, %p76
    %p78 = scmp.ne.s32.totalorder %s70, %s73
    %p79 = scmp.eq.s32.totalorder %s14, 0
    %p80 = por %p78, %p79
    %p81 = scmp.ne.s32.totalorder %s70, %s73
    %p82 = scmp.eq.s32.totalorder %s19, 1
    %p83 = por %p81, %p82
    %p84 = scmp.ne.s32.totalorder %s73, %s74
    %p85 = scmp.eq.s32.totalorder %s19, 0
    %p86 = por %p84, %p85
    %p87 = scmp.ne.s32.totalorder %s73, %s74
    %p88 = scmp.eq.s32.totalorder %s20, 1
    %p89 = por %p87, %p88
    %p91 = scmp.ne.s32.totalorder %s74, %s90
    %p92 = scmp.eq.s32.totalorder %s20, 0
    %p93 = por %p91, %p92
    %s95 = sadd.s32 %s94, 1
    %p98 = scmp.eq.s32.totalorder %s14, 1
    %p99 = scmp.ne.s32.totalorder %s94, %s96
    %p100 = scmp.eq.s32.totalorder %s14, 0
    %p101 = por %p99, %p100
    %p102 = scmp.ne.s32.totalorder %s94, %s96
    %p103 = scmp.eq.s32.totalorder %s19, 1
    %p104 = por %p102, %p103
    %p105 = scmp.ne.s32.totalorder %s96, %s97
    %p106 = scmp.eq.s32.totalorder %s19, 0
    %p107 = por %p105, %p106
    %p108 = scmp.ne.s32.totalorder %s96, %s97
    %p109 = scmp.eq.s32.totalorder %s20, 1
    %p110 = por %p108, %p109
    %p112 = scmp.ne.s32.totalorder %s97, %s111
    %p113 = scmp.eq.s32.totalorder %s20, 0
    %p114 = por %p112, %p113
    %s116 = sadd.s32 %s115, 1
    %p119 = scmp.eq.s32.totalorder %s14, 1
    %p120 = scmp.ne.s32.totalorder %s115, %s117
    %p121 = scmp.eq.s32.totalorder %s14, 0
    %p122 = por %p120, %p121
    %p123 = scmp.ne.s32.totalorder %s115, %s117
    %p124 = scmp.eq.s32.totalorder %s19, 1
    %p125 = por %p123, %p124
    %p126 = scmp.ne.s32.totalorder %s117, %s118
    %p127 = scmp.eq.s32.totalorder %s19, 0
    %p128 = por %p126, %p127
    %p129 = scmp.ne.s32.totalorder %s117, %s118
    %p130 = scmp.eq.s32.totalorder %s20, 1
    %p131 = por %p129, %p130
    %p133 = scmp.ne.s32.totalorder %s118, %s132
    %p134 = scmp.eq.s32.totalorder %s20, 0
    %p135 = por %p133, %p134
    %s137 = sadd.s32 %s136, 1
    %p140 = scmp.eq.s32.totalorder %s14, 1
    %p141 = scmp.ne.s32.totalorder %s136, %s138
    %p142 = scmp.eq.s32.totalorder %s14, 0
    %p143 = por %p141, %p142
    %p144 = scmp.ne.s32.totalorder %s136, %s138
    %p145 = scmp.eq.s32.totalorder %s19, 1
    %p146 = por %p144, %p145
    %p147 = scmp.ne.s32.totalorder %s138, %s139
    %p148 = scmp.eq.s32.totalorder %s19, 0
    %p149 = por %p147, %p148
    %p150 = scmp.ne.s32.totalorder %s138, %s139
    %p151 = scmp.eq.s32.totalorder %s20, 1
    %p152 = por %p150, %p151
    %p154 = scmp.ne.s32.totalorder %s139, %s153
    %p155 = scmp.eq.s32.totalorder %s20, 0
    %p156 = por %p154, %p155
    %s158 = sadd.s32 %s157, 1
    %p161 = scmp.eq.s32.totalorder %s14, 1
    %p162 = scmp.ne.s32.totalorder %s157, %s159
    %p163 = scmp.eq.s32.totalorder %s14, 0
    %p164 = por %p162, %p163
    %p165 = scmp.ne.s32.totalorder %s157, %s159
    %p166 = scmp.eq.s32.totalorder %s19, 1
    %p167 = por %p165, %p166
    %p168 = scmp.ne.s32.totalorder %s159, %s160
    %p169 = scmp.eq.s32.totalorder %s19, 0
    %p170 = por %p168, %p169
    %p171 = scmp.ne.s32.totalorder %s159, %s160
    %p172 = scmp.eq.s32.totalorder %s20, 1
    %p173 = por %p171, %p172
    %p175 = scmp.ne.s32.totalorder %s160, %s174
    %p176 = scmp.eq.s32.totalorder %s20, 0
    %p177 = por %p175, %p176
    %s179 = sadd.s32 %s178, 1
    %p182 = scmp.eq.s32.totalorder %s14, 1
    %p183 = scmp.ne.s32.totalorder %s178, %s180
    %p184 = scmp.eq.s32.totalorder %s14, 0
    %p185 = por %p183, %p184
    %p186 = scmp.ne.s32.totalorder %s178, %s180
    %p187 = scmp.eq.s32.totalorder %s19, 1
    %p188 = por %p186, %p187
    %p189 = scmp.ne.s32.totalorder %s180, %s181
    %p190 = scmp.eq.s32.totalorder %s19, 0
    %p191 = por %p189, %p190
    %p192 = scmp.ne.s32.totalorder %s180, %s181
    %p193 = scmp.eq.s32.totalorder %s20, 1
    %p194 = por %p192, %p193
    %p196 = scmp.ne.s32.totalorder %s181, %s195
    %p197 = scmp.eq.s32.totalorder %s20, 0
    %p198 = por %p196, %p197
    %s200 = sadd.s32 %s199, 1
    %p203 = scmp.eq.s32.totalorder %s14, 1
    %p204 = scmp.ne.s32.totalorder %s199, %s201
    %p205 = scmp.eq.s32.totalorder %s14, 0
    %p206 = por %p204, %p205
    %p207 = scmp.ne.s32.totalorder %s199, %s201
    %p208 = scmp.eq.s32.totalorder %s19, 1
    %p209 = por %p207, %p208
    %p210 = scmp.ne.s32.totalorder %s201, %s202
    %p211 = scmp.eq.s32.totalorder %s19, 0
    %p212 = por %p210, %p211
    %p213 = scmp.ne.s32.totalorder %s201, %s202
    %p214 = scmp.eq.s32.totalorder %s20, 1
    %p215 = por %p213, %p214
    %p217 = scmp.ne.s32.totalorder %s202, %s216
    %p218 = scmp.eq.s32.totalorder %s20, 0
    %p219 = por %p217, %p218
    %s220 = ssub.s32 %s21, %s33
    %s221 = ssub.s32 %s22, %s29
    %s222 = sor.u32 %s220, %s221
    %p223 = scmp.eq.s32.totalorder %s222, 0
    %s225 = sadd.s32 %s224, 1
    %s226 = scalar_select %p223, %s224, %s225
    %p229 = pneg %p223
    %p230 = scmp.eq.s32.totalorder %s14, 1
    %p231 = por %p229, %p230
    %p232 = scmp.ne.s32.totalorder %s224, %s227
    %p233 = scmp.eq.s32.totalorder %s14, 0
    %p234 = por %p232, %p233
    %p235 = scmp.ne.s32.totalorder %s224, %s227
    %p236 = scmp.eq.s32.totalorder %s19, 1
    %p237 = por %p235, %p236
    %p238 = scmp.ne.s32.totalorder %s227, %s228
    %p239 = scmp.eq.s32.totalorder %s19, 0
    %p240 = por %p238, %p239
    %p241 = scmp.ne.s32.totalorder %s227, %s228
    %p242 = scmp.eq.s32.totalorder %s20, 1
    %p243 = por %p241, %p242
    %p245 = scmp.ne.s32.totalorder %s228, %s244
    %p246 = scmp.eq.s32.totalorder %s20, 0
    %p247 = por %p245, %p246
    %p248 = scmp.le.s32.totalorder 1, %s14
    %p249 = scmp.lt.s32.totalorder %s14, 3
    %p250 = pnand %p248, %p249
    %p251 = pneg %p250
    // Predicated region
    $region9: #{basic_block_forward.1} parent=5 // pred_check
      _
    $region10: #{basic_block_forward.1} parent=5 // pred_check_branch
      %253 = sbr.rel (%p250) target = $region12
    $region11: #{basic_block_forward.1} parent=5 // pred_region
      %s254 = ssub.s32 %s14, 1
      // Predicated region
      $region13: #{basic_block_forward.1} parent=11 // pred_check
        %p255 = pneg %p107
      $region14: #{basic_block_forward.1} parent=11 // pred_check_branch
        %257 = sbr.rel (%p255) target = $region16
      $region15: #{basic_block_forward.1} parent=11 // pred_region
        _
      $region16: #{basic_block_forward.1} parent=11 // pred_fallthru
        _
      // Predicated region
      $region17: #{basic_block_forward.1} parent=11 // pred_check
        %p258 = pneg %p128
      $region18: #{basic_block_forward.1} parent=11 // pred_check_branch
        %260 = sbr.rel (%p258) target = $region20
      $region19: #{basic_block_forward.1} parent=11 // pred_region
        _
      $region20: #{basic_block_forward.1} parent=11 // pred_fallthru
        _
      // Predicated region
      $region21: #{basic_block_forward.1} parent=11 // pred_check
        %p261 = pneg %p149
      $region22: #{basic_block_forward.1} parent=11 // pred_check_branch
        %263 = sbr.rel (%p261) target = $region24
      $region23: #{basic_block_forward.1} parent=11 // pred_region
        _
      $region24: #{basic_block_forward.1} parent=11 // pred_fallthru
        _
      // Predicated region
      $region25: #{basic_block_forward.1} parent=11 // pred_check
        %p264 = pneg %p170
      $region26: #{basic_block_forward.1} parent=11 // pred_check_branch
        %266 = sbr.rel (%p264) target = $region28
      $region27: #{basic_block_forward.1} parent=11 // pred_region
        _
      $region28: #{basic_block_forward.1} parent=11 // pred_fallthru
        _
      // Predicated region
      $region29: #{basic_block_forward.1} parent=11 // pred_check
        %p267 = pneg %p191
      $region30: #{basic_block_forward.1} parent=11 // pred_check_branch
        %269 = sbr.rel (%p267) target = $region32
      $region31: #{basic_block_forward.1} parent=11 // pred_region
        _
      $region32: #{basic_block_forward.1} parent=11 // pred_fallthru
        _
      // Predicated region
      $region33: #{basic_block_forward.1} parent=11 // pred_check
        %p270 = pneg %p212
      $region34: #{basic_block_forward.1} parent=11 // pred_check_branch
        %272 = sbr.rel (%p270) target = $region36
      $region35: #{basic_block_forward.1} parent=11 // pred_region
        _
      $region36: #{basic_block_forward.1} parent=11 // pred_fallthru
        _
    $region12: #{basic_block_forward.1} parent=5 // pred_fallthru
      _
    %p273 = scmp.lt.s32.totalorder %s14, 2
    // Predicated region
    $region37: #{basic_block_forward.1} parent=5 // pred_check
      %p274 = pneg %p273
    $region38: #{basic_block_forward.1} parent=5 // pred_check_branch
      %276 = sbr.rel (%p274) target = $region40
    $region39: #{basic_block_forward.1} parent=5 // pred_region
      // Predicated region
      $region41: #{basic_block_forward.1} parent=39 // pred_check
        %p277 = pneg %p48
      $region42: #{basic_block_forward.1} parent=39 // pred_check_branch
        %279 = sbr.rel (%p277) target = $region44
      $region43: #{basic_block_forward.1} parent=39 // pred_region
        %s280 = smul.u32 16, %s22
        %s281 = ssub.s32 20, %s280
        %p282 = scmp.lt.s32.totalorder %s281, 16
        %s283 = scalar_select %p282, %s281, 16
        %s284 = smul.u32 64, %s283
        %s285 = smul.u32 %s284, 3
        %p286 = scmp.lt.s32.totalorder %s21, 1
        %s287 = scalar_select %p286, %s21, 1
        %p288 = scmp.lt.s32.totalorder %s280, 19
        %s289 = scalar_select %p288, %s280, 19
        %s290 = smul.addr %s289, 3
        %s291 = smul.addr %s287, 60
        %s292 = sadd.s32 %s290, %s291
        %s293 = smul.addr %s292, 4
        %s294 = scalar_lea.vmem %s0, %s293
        %s295 = smul.u32 16, %s22
        %s296 = ssub.s32 20, %s295
        %p297 = scmp.lt.s32.totalorder %s296, 16
        %s298 = scalar_select %p297, %s296, 16
        %s299 = smul.u32 64, %s298
        %s300 = smul.u32 %s299, 3
      $region44: #{basic_block_forward.1} parent=39 // pred_fallthru
        _
      // Predicated region
      $region45: #{basic_block_forward.1} parent=39 // pred_check
        %p301 = pneg %p80
      $region46: #{basic_block_forward.1} parent=39 // pred_check_branch
        %303 = sbr.rel (%p301) target = $region48
      $region47: #{basic_block_forward.1} parent=39 // pred_region
        %s304 = sadd.s32 %s22, 1
        %s305 = smul.u32 %s304, 4
        %s306 = smul.u32 4, %s305
        %p307 = scmp.lt.s32.totalorder %s21, 1
        %s308 = scalar_select %p307, %s21, 1
        %p309 = scmp.lt.s32.totalorder %s306, 19
        %s310 = scalar_select %p309, %s306, 19
        %s311 = smul.addr %s310, 3
        %s312 = smul.addr %s308, 60
        %s313 = sadd.s32 %s311, %s312
        %s314 = smul.addr %s313, 4
        %s315 = scalar_lea.vmem %s1, %s314
        %s316 = sadd.s32 %s22, 1
        %s317 = smul.u32 %s316, 4
        %s318 = smul.u32 4, %s317
      $region48: #{basic_block_forward.1} parent=39 // pred_fallthru
        _
    $region40: #{basic_block_forward.1} parent=5 // pred_fallthru
      _
    %p319 = scmp.le.s32.totalorder 1, %s14
    %p320 = scmp.lt.s32.totalorder %s14, 3
    %p321 = pnand %p319, %p320
    %p322 = pneg %p321
    // Predicated region
    $region49: #{basic_block_forward.1} parent=5 // pred_check
      _
    $region50: #{basic_block_forward.1} parent=5 // pred_check_branch
      %324 = sbr.rel (%p321) target = $region52
    $region51: #{basic_block_forward.1} parent=5 // pred_region
      %s325 = ssub.s32 %s14, 1
      %s326 = smul.u32 16, %s24
      %s327 = ssub.s32 20, %s326
      %p328 = scmp.lt.s32.totalorder %s327, 16
      %s329 = scalar_select %p328, %s327, 16
      %s330 = smul.u32 64, %s329
      %s331 = smul.u32 %s330, 3
      %p332 = scmp.lt.s32.totalorder %s23, 1
      %s333 = scalar_select %p332, %s23, 1
      %p334 = scmp.lt.s32.totalorder %s326, 19
      %s335 = scalar_select %p334, %s326, 19
      %s336 = smul.addr %s335, 3
      %s337 = smul.addr %s333, 60
      %s338 = sadd.s32 %s336, %s337
      %s339 = smul.addr %s338, 4
      %s340 = scalar_lea.vmem %s0, %s339
      %p341 = pneg %p54
      %p342 = pneg %p51
      %s343 = sadd.s32 %s24, 1
      %s344 = smul.u32 %s343, 4
      %s345 = smul.u32 4, %s344
      %p346 = scmp.lt.s32.totalorder %s23, 1
      %s347 = scalar_select %p346, %s23, 1
      %p348 = scmp.lt.s32.totalorder %s345, 19
      %s349 = scalar_select %p348, %s345, 19
      %s350 = smul.addr %s349, 3
      %s351 = smul.addr %s347, 60
      %s352 = sadd.s32 %s350, %s351
      %s353 = smul.addr %s352, 4
      %s354 = scalar_lea.vmem %s1, %s353
      %p355 = pneg %p86
      %p356 = pneg %p83
      %p357 = pneg %p107
      %p358 = pneg %p104
      %p359 = pneg %p128
      %p360 = pneg %p125
      %p361 = pneg %p149
      %p362 = pneg %p146
      %p363 = pneg %p170
      %p364 = pneg %p167
      %p365 = pneg %p191
      %p366 = pneg %p188
      %p367 = pneg %p212
      %p368 = pneg %p209
      %p369 = pneg %p240
      %p370 = pneg %p237
      %s371 = smul.u32 16, %s24
      %p372 = scmp.lt.s32.totalorder %s23, 1
      %s373 = scalar_select %p372, %s23, 1
      %p374 = scmp.lt.s32.totalorder %s371, 15
      %s375 = scalar_select %p374, %s371, 15
      %s376 = smul.addr %s375, 2
      %s377 = smul.addr %s373, 32
      %s378 = sadd.s32 %s376, %s377
      %s379 = smul.addr %s378, 4
      %s380 = scalar_lea.vmem %s8, %s379
      %s381 = smul.u32 16, %s24
      %s382 = ssub.s32 20, %s381
      %p383 = scmp.lt.s32.totalorder %s382, 16
      %s384 = scalar_select %p383, %s382, 16
      %s385 = smul.u32 64, %s384
      %s386 = smul.u32 %s385, 3
      %p387 = scmp.lt.s32.totalorder %s23, 1
      %s388 = scalar_select %p387, %s23, 1
      %p389 = scmp.lt.s32.totalorder %s381, 19
      %s390 = scalar_select %p389, %s381, 19
      %s391 = smul.addr %s390, 3
      %s392 = smul.addr %s388, 60
      %s393 = sadd.s32 %s391, %s392
      %s394 = smul.addr %s393, 4
      %s395 = scalar_lea.vmem %s0, %s394
      %s396 = smul.u32 16, %s24
      %s397 = ssub.s32 20, %s396
      %p398 = scmp.lt.s32.totalorder %s397, 16
      %s399 = scalar_select %p398, %s397, 16
      %s400 = smul.u32 64, %s399
      %s401 = smul.u32 %s400, 3
      %s402 = sadd.s32 %s24, 1
      %s403 = smul.u32 %s402, 4
      %s404 = smul.u32 4, %s403
      %p405 = scmp.lt.s32.totalorder %s23, 1
      %s406 = scalar_select %p405, %s23, 1
      %p407 = scmp.lt.s32.totalorder %s404, 19
      %s408 = scalar_select %p407, %s404, 19
      %s409 = smul.addr %s408, 3
      %s410 = smul.addr %s406, 60
      %s411 = sadd.s32 %s409, %s410
      %s412 = smul.addr %s411, 4
      %s413 = scalar_lea.vmem %s1, %s412
      %s414 = sadd.s32 %s24, 1
      %s415 = smul.u32 %s414, 4
      %s416 = smul.u32 4, %s415
      %s417 = smul.u32 16, %s24
      %p418 = scmp.lt.s32.totalorder %s23, 1
      %s419 = scalar_select %p418, %s23, 1
      %p420 = scmp.lt.s32.totalorder %s417, 15
      %s421 = scalar_select %p420, %s417, 15
      %s422 = smul.addr %s421, 2
      %s423 = smul.addr %s419, 32
      %s424 = sadd.s32 %s422, %s423
      %s425 = smul.addr %s424, 4
      %s426 = scalar_lea.vmem %s8, %s425
      %s427 = smul.u32 16, %s24
      %v429 = vld [vmem:[%s395] sm:$0xf]
      %v430 = vld [vmem:[%s395 + $0x4] sm:$0xf]
      %v431 = vld [vmem:[%s395 + $0x8] sm:$0x1]
      %v432 = vld [vmem:[%s395 + $0xc] sm:$0xf]
      %v433 = vld [vmem:[%s395 + $0x10] sm:$0xf]
      %v434 = vld [vmem:[%s395 + $0x14] sm:$0x1]
      %v435 = vld [vmem:[%s395 + $0x18] sm:$0xf]
      %v436 = vld [vmem:[%s395 + $0x1c] sm:$0xf]
      %v437 = vld [vmem:[%s395 + $0x20] sm:$0x1]
      %v438 = vld [vmem:[%s395 + $0x24] sm:$0xf]
      %v439 = vld [vmem:[%s395 + $0x28] sm:$0xf]
      %v440 = vld [vmem:[%s395 + $0x2c] sm:$0x1]
      %v441 = vld [vmem:[%s395 + $0x30] sm:$0xf]
      %v442 = vld [vmem:[%s395 + $0x34] sm:$0xf]
      %v443 = vld [vmem:[%s395 + $0x38] sm:$0x1]
      %v444 = vld [vmem:[%s395 + $0x3c] sm:$0xf]
      %v445 = vld [vmem:[%s395 + $0x40] sm:$0xf]
      %v446 = vld [vmem:[%s395 + $0x44] sm:$0x1]
      %v447 = vld [vmem:[%s395 + $0x48] sm:$0xf]
      %v448 = vld [vmem:[%s395 + $0x4c] sm:$0xf]
      %v449 = vld [vmem:[%s395 + $0x50] sm:$0x1]
      %v450 = vld [vmem:[%s395 + $0x54] sm:$0xf]
      %v451 = vld [vmem:[%s395 + $0x58] sm:$0xf]
      %v452 = vld [vmem:[%s395 + $0x5c] sm:$0x1]
      %v453 = vld [vmem:[%s395 + $0x60] sm:$0xf]
      %v454 = vld [vmem:[%s395 + $0x64] sm:$0xf]
      %v455 = vld [vmem:[%s395 + $0x68] sm:$0x1]
      %v456 = vld [vmem:[%s395 + $0x6c] sm:$0xf]
      %v457 = vld [vmem:[%s395 + $0x70] sm:$0xf]
      %v458 = vld [vmem:[%s395 + $0x74] sm:$0x1]
      %v459 = vld [vmem:[%s395 + $0x78] sm:$0xf]
      %v460 = vld [vmem:[%s395 + $0x7c] sm:$0xf]
      %v461 = vld [vmem:[%s395 + $0x80] sm:$0x1]
      %v462 = vld [vmem:[%s395 + $0x84] sm:$0xf]
      %v463 = vld [vmem:[%s395 + $0x88] sm:$0xf]
      %v464 = vld [vmem:[%s395 + $0x8c] sm:$0x1]
      %v465 = vld [vmem:[%s395 + $0x90] sm:$0xf]
      %v466 = vld [vmem:[%s395 + $0x94] sm:$0xf]
      %v467 = vld [vmem:[%s395 + $0x98] sm:$0x1]
      %v468 = vld [vmem:[%s395 + $0x9c] sm:$0xf]
      %v469 = vld [vmem:[%s395 + $0xa0] sm:$0xf]
      %v470 = vld [vmem:[%s395 + $0xa4] sm:$0x1]
      %v471 = vld [vmem:[%s395 + $0xa8] sm:$0xf]
      %v472 = vld [vmem:[%s395 + $0xac] sm:$0xf]
      %v473 = vld [vmem:[%s395 + $0xb0] sm:$0x1]
      %v474 = vld [vmem:[%s395 + $0xb4] sm:$0xf]
      %v475 = vld [vmem:[%s395 + $0xb8] sm:$0xf]
      %v476 = vld [vmem:[%s395 + $0xbc] sm:$0x1]
      %v477 = vld [vmem:[%s413] sm:$0xf]
      %v478 = vld [vmem:[%s413 + $0x4] sm:$0xf]
      %v479 = vld [vmem:[%s413 + $0x8] sm:$0x1]
      %v480 = vld [vmem:[%s413 + $0xc] sm:$0xf]
      %v481 = vld [vmem:[%s413 + $0x10] sm:$0xf]
      %v482 = vld [vmem:[%s413 + $0x14] sm:$0x1]
      %v483 = vld [vmem:[%s413 + $0x18] sm:$0xf]
      %v484 = vld [vmem:[%s413 + $0x1c] sm:$0xf]
      %v485 = vld [vmem:[%s413 + $0x20] sm:$0x1]
      %v486 = vld [vmem:[%s413 + $0x24] sm:$0xf]
      %v487 = vld [vmem:[%s413 + $0x28] sm:$0xf]
      %v488 = vld [vmem:[%s413 + $0x2c] sm:$0x1]
      %vm489 = vsmask.f32 3328
      %vm490 = vsmask.f32 7440
      %vm491 = vmor %vm489, %vm490
      %v493 = vshrl.u32 %v429, 16
      %v495 = vrot.slane %v493, 4
      %v496 = vshll.u32 %v429, 16
      %v498 = vrot.slane %v496, 5
      %v499 = vor.u32 %v495, %v498
      %v500 = vrot.slane %v499, 4
      %v502 = vshll.u32 %v430, 16
      %v504 = vrot.slane %v502, 5
      %v505 = vsel %vm491, %v500, %v504
      %v506 = vshrl.u32 %v430, 16
      %v508 = vrot.slane %v506, 4
      %v509 = vor.u32 %v508, %v504
      %v510 = vrot.slane %v509, 4
      %v512 = vshll.u32 %v431, 16
      %v514 = vrot.slane %v512, 5
      %v515 = vsel %vm491, %v510, %v514
      %v517 = vshrl.u32 %v432, 16
      %v519 = vrot.slane %v517, 4
      %v520 = vshll.u32 %v432, 16
      %v522 = vrot.slane %v520, 5
      %v523 = vor.u32 %v519, %v522
      %v524 = vrot.slane %v523, 4
      %v526 = vshll.u32 %v433, 16
      %v528 = vrot.slane %v526, 5
      %v529 = vsel %vm491, %v524, %v528
      %v530 = vshrl.u32 %v433, 16
      %v532 = vrot.slane %v530, 4
      %v533 = vor.u32 %v532, %v528
      %v534 = vrot.slane %v533, 4
      %v536 = vshll.u32 %v434, 16
      %v538 = vrot.slane %v536, 5
      %v539 = vsel %vm491, %v534, %v538
      %v541 = vshrl.u32 %v435, 16
      %v543 = vrot.slane %v541, 4
      %v544 = vshll.u32 %v435, 16
      %v546 = vrot.slane %v544, 5
      %v547 = vor.u32 %v543, %v546
      %v548 = vrot.slane %v547, 4
      %v550 = vshll.u32 %v436, 16
      %v552 = vrot.slane %v550, 5
      %v553 = vsel %vm491, %v548, %v552
      %v554 = vshrl.u32 %v436, 16
      %v556 = vrot.slane %v554, 4
      %v557 = vor.u32 %v556, %v552
      %v558 = vrot.slane %v557, 4
      %v560 = vshll.u32 %v437, 16
      %v562 = vrot.slane %v560, 5
      %v563 = vsel %vm491, %v558, %v562
      %v565 = vshrl.u32 %v438, 16
      %v567 = vrot.slane %v565, 4
      %v568 = vshll.u32 %v438, 16
      %v570 = vrot.slane %v568, 5
      %v571 = vor.u32 %v567, %v570
      %v572 = vrot.slane %v571, 4
      %v574 = vshll.u32 %v439, 16
      %v576 = vrot.slane %v574, 5
      %v577 = vsel %vm491, %v572, %v576
      %v578 = vshrl.u32 %v439, 16
      %v580 = vrot.slane %v578, 4
      %v581 = vor.u32 %v580, %v576
      %v582 = vrot.slane %v581, 4
      %v584 = vshll.u32 %v440, 16
      %v586 = vrot.slane %v584, 5
      %v587 = vsel %vm491, %v582, %v586
      %v589 = vshrl.u32 %v441, 16
      %v591 = vrot.slane %v589, 4
      %v592 = vshll.u32 %v441, 16
      %v594 = vrot.slane %v592, 5
      %v595 = vor.u32 %v591, %v594
      %v596 = vrot.slane %v595, 4
      %v598 = vshll.u32 %v442, 16
      %v600 = vrot.slane %v598, 5
      %v601 = vsel %vm491, %v596, %v600
      %v602 = vshrl.u32 %v442, 16
      %v604 = vrot.slane %v602, 4
      %v605 = vor.u32 %v604, %v600
      %v606 = vrot.slane %v605, 4
      %v608 = vshll.u32 %v443, 16
      %v610 = vrot.slane %v608, 5
      %v611 = vsel %vm491, %v606, %v610
      %v613 = vshrl.u32 %v444, 16
      %v615 = vrot.slane %v613, 4
      %v616 = vshll.u32 %v444, 16
      %v618 = vrot.slane %v616, 5
      %v619 = vor.u32 %v615, %v618
      %v620 = vrot.slane %v619, 4
      %v622 = vshll.u32 %v445, 16
      %v624 = vrot.slane %v622, 5
      %v625 = vsel %vm491, %v620, %v624
      %v626 = vshrl.u32 %v445, 16
      %v628 = vrot.slane %v626, 4
      %v629 = vor.u32 %v628, %v624
      %v630 = vrot.slane %v629, 4
      %v632 = vshll.u32 %v446, 16
      %v634 = vrot.slane %v632, 5
      %v635 = vsel %vm491, %v630, %v634
      %v637 = vshrl.u32 %v447, 16
      %v639 = vrot.slane %v637, 4
      %v640 = vshll.u32 %v447, 16
      %v642 = vrot.slane %v640, 5
      %v643 = vor.u32 %v639, %v642
      %v644 = vrot.slane %v643, 4
      %v646 = vshll.u32 %v448, 16
      %v648 = vrot.slane %v646, 5
      %v649 = vsel %vm491, %v644, %v648
      %v650 = vshrl.u32 %v448, 16
      %v652 = vrot.slane %v650, 4
      %v653 = vor.u32 %v652, %v648
      %v654 = vrot.slane %v653, 4
      %v656 = vshll.u32 %v449, 16
      %v658 = vrot.slane %v656, 5
      %v659 = vsel %vm491, %v654, %v658
      %v661 = vshrl.u32 %v450, 16
      %v663 = vrot.slane %v661, 4
      %v664 = vshll.u32 %v450, 16
      %v666 = vrot.slane %v664, 5
      %v667 = vor.u32 %v663, %v666
      %v668 = vrot.slane %v667, 4
      %v670 = vshll.u32 %v451, 16
      %v672 = vrot.slane %v670, 5
      %v673 = vsel %vm491, %v668, %v672
      %v674 = vshrl.u32 %v451, 16
      %v676 = vrot.slane %v674, 4
      %v677 = vor.u32 %v676, %v672
      %v678 = vrot.slane %v677, 4
      %v680 = vshll.u32 %v452, 16
      %v682 = vrot.slane %v680, 5
      %v683 = vsel %vm491, %v678, %v682
      %v685 = vshrl.u32 %v453, 16
      %v687 = vrot.slane %v685, 4
      %v688 = vshll.u32 %v453, 16
      %v690 = vrot.slane %v688, 5
      %v691 = vor.u32 %v687, %v690
      %v692 = vrot.slane %v691, 4
      %v694 = vshll.u32 %v454, 16
      %v696 = vrot.slane %v694, 5
      %v697 = vsel %vm491, %v692, %v696
      %v698 = vshrl.u32 %v454, 16
      %v700 = vrot.slane %v698, 4
      %v701 = vor.u32 %v700, %v696
      %v702 = vrot.slane %v701, 4
      %v704 = vshll.u32 %v455, 16
      %v706 = vrot.slane %v704, 5
      %v707 = vsel %vm491, %v702, %v706
      %v709 = vshrl.u32 %v456, 16
      %v711 = vrot.slane %v709, 4
      %v712 = vshll.u32 %v456, 16
      %v714 = vrot.slane %v712, 5
      %v715 = vor.u32 %v711, %v714
      %v716 = vrot.slane %v715, 4
      %v718 = vshll.u32 %v457, 16
      %v720 = vrot.slane %v718, 5
      %v721 = vsel %vm491, %v716, %v720
      %v722 = vshrl.u32 %v457, 16
      %v724 = vrot.slane %v722, 4
      %v725 = vor.u32 %v724, %v720
      %v726 = vrot.slane %v725, 4
      %v728 = vshll.u32 %v458, 16
      %v730 = vrot.slane %v728, 5
      %v731 = vsel %vm491, %v726, %v730
      %v733 = vshrl.u32 %v459, 16
      %v735 = vrot.slane %v733, 4
      %v736 = vshll.u32 %v459, 16
      %v738 = vrot.slane %v736, 5
      %v739 = vor.u32 %v735, %v738
      %v740 = vrot.slane %v739, 4
      %v742 = vshll.u32 %v460, 16
      %v744 = vrot.slane %v742, 5
      %v745 = vsel %vm491, %v740, %v744
      %v746 = vshrl.u32 %v460, 16
      %v748 = vrot.slane %v746, 4
      %v749 = vor.u32 %v748, %v744
      %v750 = vrot.slane %v749, 4
      %v752 = vshll.u32 %v461, 16
      %v754 = vrot.slane %v752, 5
      %v755 = vsel %vm491, %v750, %v754
      %v757 = vshrl.u32 %v462, 16
      %v759 = vrot.slane %v757, 4
      %v760 = vshll.u32 %v462, 16
      %v762 = vrot.slane %v760, 5
      %v763 = vor.u32 %v759, %v762
      %v764 = vrot.slane %v763, 4
      %v766 = vshll.u32 %v463, 16
      %v768 = vrot.slane %v766, 5
      %v769 = vsel %vm491, %v764, %v768
      %v770 = vshrl.u32 %v463, 16
      %v772 = vrot.slane %v770, 4
      %v773 = vor.u32 %v772, %v768
      %v774 = vrot.slane %v773, 4
      %v776 = vshll.u32 %v464, 16
      %v778 = vrot.slane %v776, 5
      %v779 = vsel %vm491, %v774, %v778
      %v781 = vshrl.u32 %v465, 16
      %v783 = vrot.slane %v781, 4
      %v784 = vshll.u32 %v465, 16
      %v786 = vrot.slane %v784, 5
      %v787 = vor.u32 %v783, %v786
      %v788 = vrot.slane %v787, 4
      %v790 = vshll.u32 %v466, 16
      %v792 = vrot.slane %v790, 5
      %v793 = vsel %vm491, %v788, %v792
      %v794 = vshrl.u32 %v466, 16
      %v796 = vrot.slane %v794, 4
      %v797 = vor.u32 %v796, %v792
      %v798 = vrot.slane %v797, 4
      %v800 = vshll.u32 %v467, 16
      %v802 = vrot.slane %v800, 5
      %v803 = vsel %vm491, %v798, %v802
      %v805 = vshrl.u32 %v468, 16
      %v807 = vrot.slane %v805, 4
      %v808 = vshll.u32 %v468, 16
      %v810 = vrot.slane %v808, 5
      %v811 = vor.u32 %v807, %v810
      %v812 = vrot.slane %v811, 4
      %v814 = vshll.u32 %v469, 16
      %v816 = vrot.slane %v814, 5
      %v817 = vsel %vm491, %v812, %v816
      %v818 = vshrl.u32 %v469, 16
      %v820 = vrot.slane %v818, 4
      %v821 = vor.u32 %v820, %v816
      %v822 = vrot.slane %v821, 4
      %v824 = vshll.u32 %v470, 16
      %v826 = vrot.slane %v824, 5
      %v827 = vsel %vm491, %v822, %v826
      %v829 = vshrl.u32 %v471, 16
      %v831 = vrot.slane %v829, 4
      %v832 = vshll.u32 %v471, 16
      %v834 = vrot.slane %v832, 5
      %v835 = vor.u32 %v831, %v834
      %v836 = vrot.slane %v835, 4
      %v838 = vshll.u32 %v472, 16
      %v840 = vrot.slane %v838, 5
      %v841 = vsel %vm491, %v836, %v840
      %v842 = vshrl.u32 %v472, 16
      %v844 = vrot.slane %v842, 4
      %v845 = vor.u32 %v844, %v840
      %v846 = vrot.slane %v845, 4
      %v848 = vshll.u32 %v473, 16
      %v850 = vrot.slane %v848, 5
      %v851 = vsel %vm491, %v846, %v850
      %v853 = vshrl.u32 %v474, 16
      %v855 = vrot.slane %v853, 4
      %v856 = vshll.u32 %v474, 16
      %v858 = vrot.slane %v856, 5
      %v859 = vor.u32 %v855, %v858
      %v860 = vrot.slane %v859, 4
      %v862 = vshll.u32 %v475, 16
      %v864 = vrot.slane %v862, 5
      %v865 = vsel %vm491, %v860, %v864
      %v866 = vshrl.u32 %v475, 16
      %v868 = vrot.slane %v866, 4
      %v869 = vor.u32 %v868, %v864
      %v870 = vrot.slane %v869, 4
      %v872 = vshll.u32 %v476, 16
      %v874 = vrot.slane %v872, 5
      %v875 = vsel %vm491, %v870, %v874
      %v877 = vshrl.u32 %v477, 16
      %v879 = vrot.slane %v877, 4
      %v880 = vshll.u32 %v477, 16
      %v882 = vrot.slane %v880, 5
      %v883 = vor.u32 %v879, %v882
      %v884 = vrot.slane %v883, 4
      %v886 = vshll.u32 %v478, 16
      %v888 = vrot.slane %v886, 5
      %v889 = vsel %vm491, %v884, %v888
      %v890 = vshrl.u32 %v478, 16
      %v892 = vrot.slane %v890, 4
      %v893 = vor.u32 %v892, %v888
      %v894 = vrot.slane %v893, 4
      %v896 = vshll.u32 %v479, 16
      %v898 = vrot.slane %v896, 5
      %v899 = vsel %vm491, %v894, %v898
      %v901 = vshrl.u32 %v480, 16
      %v903 = vrot.slane %v901, 4
      %v904 = vshll.u32 %v480, 16
      %v906 = vrot.slane %v904, 5
      %v907 = vor.u32 %v903, %v906
      %v908 = vrot.slane %v907, 4
      %v910 = vshll.u32 %v481, 16
      %v912 = vrot.slane %v910, 5
      %v913 = vsel %vm491, %v908, %v912
      %v914 = vshrl.u32 %v481, 16
      %v916 = vrot.slane %v914, 4
      %v917 = vor.u32 %v916, %v912
      %v918 = vrot.slane %v917, 4
      %v920 = vshll.u32 %v482, 16
      %v922 = vrot.slane %v920, 5
      %v923 = vsel %vm491, %v918, %v922
      %vm978 = vcmask 1042432
      %vm979 = vcmask 1046532
      %vm980 = vmor %vm978, %vm979
      %v981 = vrot.slane %v429, 5
      %v982 = vrot.slane %v981, 4
      %v983 = vrot.slane %v430, 5
      %v984 = vsel %vm980, %v982, %v983
      %v985 = vrot.slane %v983, 4
      %v986 = vrot.slane %v431, 5
      %v987 = vsel %vm980, %v985, %v986
      %v988 = vrot.slane %v432, 5
      %v989 = vrot.slane %v988, 4
      %v990 = vrot.slane %v433, 5
      %v991 = vsel %vm980, %v989, %v990
      %v992 = vrot.slane %v990, 4
      %v993 = vrot.slane %v434, 5
      %v994 = vsel %vm980, %v992, %v993
      %v995 = vrot.slane %v435, 5
      %v996 = vrot.slane %v995, 4
      %v997 = vrot.slane %v436, 5
      %v998 = vsel %vm980, %v996, %v997
      %v999 = vrot.slane %v997, 4
      %v1000 = vrot.slane %v437, 5
      %v1001 = vsel %vm980, %v999, %v1000
      %v1002 = vrot.slane %v438, 5
      %v1003 = vrot.slane %v1002, 4
      %v1004 = vrot.slane %v439, 5
      %v1005 = vsel %vm980, %v1003, %v1004
      %v1006 = vrot.slane %v1004, 4
      %v1007 = vrot.slane %v440, 5
      %v1008 = vsel %vm980, %v1006, %v1007
      %v1009 = vrot.slane %v441, 5
      %v1010 = vrot.slane %v1009, 4
      %v1011 = vrot.slane %v442, 5
      %v1012 = vsel %vm980, %v1010, %v1011
      %v1013 = vrot.slane %v1011, 4
      %v1014 = vrot.slane %v443, 5
      %v1015 = vsel %vm980, %v1013, %v1014
      %v1016 = vrot.slane %v444, 5
      %v1017 = vrot.slane %v1016, 4
      %v1018 = vrot.slane %v445, 5
      %v1019 = vsel %vm980, %v1017, %v1018
      %v1020 = vrot.slane %v1018, 4
      %v1021 = vrot.slane %v446, 5
      %v1022 = vsel %vm980, %v1020, %v1021
      %v1023 = vrot.slane %v447, 5
      %v1024 = vrot.slane %v1023, 4
      %v1025 = vrot.slane %v448, 5
      %v1026 = vsel %vm980, %v1024, %v1025
      %v1027 = vrot.slane %v1025, 4
      %v1028 = vrot.slane %v449, 5
      %v1029 = vsel %vm980, %v1027, %v1028
      %v1030 = vrot.slane %v450, 5
      %v1031 = vrot.slane %v1030, 4
      %v1032 = vrot.slane %v451, 5
      %v1033 = vsel %vm980, %v1031, %v1032
      %v1034 = vrot.slane %v1032, 4
      %v1035 = vrot.slane %v452, 5
      %v1036 = vsel %vm980, %v1034, %v1035
      %v1037 = vrot.slane %v453, 5
      %v1038 = vrot.slane %v1037, 4
      %v1039 = vrot.slane %v454, 5
      %v1040 = vsel %vm980, %v1038, %v1039
      %v1041 = vrot.slane %v1039, 4
      %v1042 = vrot.slane %v455, 5
      %v1043 = vsel %vm980, %v1041, %v1042
      %v1044 = vrot.slane %v456, 5
      %v1045 = vrot.slane %v1044, 4
      %v1046 = vrot.slane %v457, 5
      %v1047 = vsel %vm980, %v1045, %v1046
      %v1048 = vrot.slane %v1046, 4
      %v1049 = vrot.slane %v458, 5
      %v1050 = vsel %vm980, %v1048, %v1049
      %v1051 = vrot.slane %v459, 5
      %v1052 = vrot.slane %v1051, 4
      %v1053 = vrot.slane %v460, 5
      %v1054 = vsel %vm980, %v1052, %v1053
      %v1055 = vrot.slane %v1053, 4
      %v1056 = vrot.slane %v461, 5
      %v1057 = vsel %vm980, %v1055, %v1056
      %v1058 = vrot.slane %v462, 5
      %v1059 = vrot.slane %v1058, 4
      %v1060 = vrot.slane %v463, 5
      %v1061 = vsel %vm980, %v1059, %v1060
      %v1062 = vrot.slane %v1060, 4
      %v1063 = vrot.slane %v464, 5
      %v1064 = vsel %vm980, %v1062, %v1063
      %v1065 = vrot.slane %v465, 5
      %v1066 = vrot.slane %v1065, 4
      %v1067 = vrot.slane %v466, 5
      %v1068 = vsel %vm980, %v1066, %v1067
      %v1069 = vrot.slane %v1067, 4
      %v1070 = vrot.slane %v467, 5
      %v1071 = vsel %vm980, %v1069, %v1070
      %v1072 = vrot.slane %v468, 5
      %v1073 = vrot.slane %v1072, 4
      %v1074 = vrot.slane %v469, 5
      %v1075 = vsel %vm980, %v1073, %v1074
      %v1076 = vrot.slane %v1074, 4
      %v1077 = vrot.slane %v470, 5
      %v1078 = vsel %vm980, %v1076, %v1077
      %v1079 = vrot.slane %v471, 5
      %v1080 = vrot.slane %v1079, 4
      %v1081 = vrot.slane %v472, 5
      %v1082 = vsel %vm980, %v1080, %v1081
      %v1083 = vrot.slane %v1081, 4
      %v1084 = vrot.slane %v473, 5
      %v1085 = vsel %vm980, %v1083, %v1084
      %v1086 = vrot.slane %v474, 5
      %v1087 = vrot.slane %v1086, 4
      %v1088 = vrot.slane %v475, 5
      %v1089 = vsel %vm980, %v1087, %v1088
      %v1090 = vrot.slane %v1088, 4
      %v1091 = vrot.slane %v476, 5
      %v1092 = vsel %vm980, %v1090, %v1091
      %v1093 = vrot.slane %v477, 5
      %v1094 = vrot.slane %v1093, 4
      %v1095 = vrot.slane %v478, 5
      %v1096 = vsel %vm980, %v1094, %v1095
      %v1097 = vrot.slane %v1095, 4
      %v1098 = vrot.slane %v479, 5
      %v1099 = vsel %vm980, %v1097, %v1098
      %v1100 = vrot.slane %v480, 5
      %v1101 = vrot.slane %v1100, 4
      %v1102 = vrot.slane %v481, 5
      %v1103 = vsel %vm980, %v1101, %v1102
      %v1104 = vrot.slane %v1102, 4
      %v1105 = vrot.slane %v482, 5
      %v1106 = vsel %vm980, %v1104, %v1105
      %v1108 = vshrl.u32 %v483, 16
      %v1110 = vrot.slane %v1108, 4
      %v1111 = vshll.u32 %v483, 16
      %v1113 = vrot.slane %v1111, 5
      %v1114 = vor.u32 %v1110, %v1113
      %v1115 = vrot.slane %v1114, 4
      %v1117 = vshll.u32 %v484, 16
      %v1119 = vrot.slane %v1117, 5
      %v1120 = vsel %vm491, %v1115, %v1119
      %v1121 = vshrl.u32 %v484, 16
      %v1123 = vrot.slane %v1121, 4
      %v1124 = vor.u32 %v1123, %v1119
      %v1125 = vrot.slane %v1124, 4
      %v1127 = vshll.u32 %v485, 16
      %v1129 = vrot.slane %v1127, 5
      %v1130 = vsel %vm491, %v1125, %v1129
      %v1134 = vrot.slane %v483, 5
      %v1135 = vrot.slane %v1134, 4
      %v1136 = vrot.slane %v484, 5
      %v1137 = vsel %vm980, %v1135, %v1136
      %v1138 = vrot.slane %v1136, 4
      %v1139 = vrot.slane %v485, 5
      %v1140 = vsel %vm980, %v1138, %v1139
      %v1142 = vshrl.u32 %v486, 16
      %v1144 = vrot.slane %v1142, 4
      %v1145 = vshll.u32 %v486, 16
      %v1147 = vrot.slane %v1145, 5
      %v1148 = vor.u32 %v1144, %v1147
      %v1149 = vrot.slane %v1148, 4
      %v1151 = vshll.u32 %v487, 16
      %v1153 = vrot.slane %v1151, 5
      %v1154 = vsel %vm491, %v1149, %v1153
      %v1155 = vshrl.u32 %v487, 16
      %v1157 = vrot.slane %v1155, 4
      %v1158 = vor.u32 %v1157, %v1153
      %v1159 = vrot.slane %v1158, 4
      %v1161 = vshll.u32 %v488, 16
      %v1163 = vrot.slane %v1161, 5
      %v1164 = vsel %vm491, %v1159, %v1163
      %v1168 = vrot.slane %v486, 5
      %v1169 = vrot.slane %v1168, 4
      %v1170 = vrot.slane %v487, 5
      %v1171 = vsel %vm980, %v1169, %v1170
      %v1172 = vrot.slane %v1170, 4
      %v1173 = vrot.slane %v488, 5
      %v1174 = vsel %vm980, %v1172, %v1173
      %v1175 = vunpack.c.l.b16 %v429
      %v1176 = vunpack.c.l.b16 %v430
      %v1177 = vunpack.c.l.b16 %v432
      %v1178 = vunpack.c.l.b16 %v433
      %v1179 = vunpack.c.l.b16 %v435
      %v1180 = vunpack.c.l.b16 %v436
      %v1181 = vunpack.c.l.b16 %v438
      %v1182 = vunpack.c.l.b16 %v439
      %v1183 = vunpack.c.l.b16 %v441
      %v1184 = vunpack.c.l.b16 %v442
      %v1185 = vunpack.c.l.b16 %v444
      %v1186 = vunpack.c.l.b16 %v445
      %v1187 = vunpack.c.l.b16 %v447
      %v1188 = vunpack.c.l.b16 %v448
      %v1189 = vunpack.c.l.b16 %v450
      %v1190 = vunpack.c.l.b16 %v451
      %v1191 = vunpack.c.l.b16 %v453
      %v1192 = vunpack.c.l.b16 %v454
      %v1193 = vunpack.c.l.b16 %v456
      %v1194 = vunpack.c.l.b16 %v457
      %v1195 = vunpack.c.l.b16 %v459
      %v1196 = vunpack.c.l.b16 %v460
      %v1197 = vunpack.c.l.b16 %v462
      %v1198 = vunpack.c.l.b16 %v463
      %v1199 = vunpack.c.l.b16 %v465
      %v1200 = vunpack.c.l.b16 %v466
      %v1201 = vunpack.c.l.b16 %v468
      %v1202 = vunpack.c.l.b16 %v469
      %v1203 = vunpack.c.l.b16 %v471
      %v1204 = vunpack.c.l.b16 %v472
      %v1205 = vunpack.c.l.b16 %v474
      %v1206 = vunpack.c.l.b16 %v475
      %v1207 = vunpack.c.l.b16 %v477
      %v1208 = vunpack.c.l.b16 %v478
      %v1209 = vunpack.c.l.b16 %v480
      %v1210 = vunpack.c.l.b16 %v481
      %v1211 = vpack.c.b16 %v1176, %v1175
      %v1212 = vpack.c.b16 %v1178, %v1177
      %v1213 = vpack.c.b16 %v1180, %v1179
      %v1214 = vpack.c.b16 %v1182, %v1181
      %v1215 = vpack.c.b16 %v1184, %v1183
      %v1216 = vpack.c.b16 %v1186, %v1185
      %v1217 = vpack.c.b16 %v1188, %v1187
      %v1218 = vpack.c.b16 %v1190, %v1189
      %v1219 = vpack.c.b16 %v1192, %v1191
      %v1220 = vpack.c.b16 %v1194, %v1193
      %v1221 = vpack.c.b16 %v1196, %v1195
      %v1222 = vpack.c.b16 %v1198, %v1197
      %v1223 = vpack.c.b16 %v1200, %v1199
      %v1224 = vpack.c.b16 %v1202, %v1201
      %v1225 = vpack.c.b16 %v1204, %v1203
      %v1226 = vpack.c.b16 %v1206, %v1205
      %v1227 = vpack.c.b16 %v1208, %v1207
      %v1228 = vpack.c.b16 %v1210, %v1209
      %v1247 = vunpack.c.l.b16 %v505
      %v1248 = vunpack.c.l.b16 %v515
      %v1249 = vunpack.c.l.b16 %v529
      %v1250 = vunpack.c.l.b16 %v539
      %v1251 = vunpack.c.l.b16 %v553
      %v1252 = vunpack.c.l.b16 %v563
      %v1253 = vunpack.c.l.b16 %v577
      %v1254 = vunpack.c.l.b16 %v587
      %v1255 = vunpack.c.l.b16 %v601
      %v1256 = vunpack.c.l.b16 %v611
      %v1257 = vunpack.c.l.b16 %v625
      %v1258 = vunpack.c.l.b16 %v635
      %v1259 = vunpack.c.l.b16 %v649
      %v1260 = vunpack.c.l.b16 %v659
      %v1261 = vunpack.c.l.b16 %v673
      %v1262 = vunpack.c.l.b16 %v683
      %v1263 = vunpack.c.l.b16 %v697
      %v1264 = vunpack.c.l.b16 %v707
      %v1265 = vunpack.c.l.b16 %v721
      %v1266 = vunpack.c.l.b16 %v731
      %v1267 = vunpack.c.l.b16 %v745
      %v1268 = vunpack.c.l.b16 %v755
      %v1269 = vunpack.c.l.b16 %v769
      %v1270 = vunpack.c.l.b16 %v779
      %v1271 = vunpack.c.l.b16 %v793
      %v1272 = vunpack.c.l.b16 %v803
      %v1273 = vunpack.c.l.b16 %v817
      %v1274 = vunpack.c.l.b16 %v827
      %v1275 = vunpack.c.l.b16 %v841
      %v1276 = vunpack.c.l.b16 %v851
      %v1277 = vunpack.c.l.b16 %v865
      %v1278 = vunpack.c.l.b16 %v875
      %v1279 = vunpack.c.l.b16 %v889
      %v1280 = vunpack.c.l.b16 %v899
      %v1281 = vunpack.c.l.b16 %v913
      %v1282 = vunpack.c.l.b16 %v923
      %v1283 = vpack.c.b16 %v1248, %v1247
      %v1284 = vpack.c.b16 %v1250, %v1249
      %v1285 = vpack.c.b16 %v1252, %v1251
      %v1286 = vpack.c.b16 %v1254, %v1253
      %v1287 = vpack.c.b16 %v1256, %v1255
      %v1288 = vpack.c.b16 %v1258, %v1257
      %v1289 = vpack.c.b16 %v1260, %v1259
      %v1290 = vpack.c.b16 %v1262, %v1261
      %v1291 = vpack.c.b16 %v1264, %v1263
      %v1292 = vpack.c.b16 %v1266, %v1265
      %v1293 = vpack.c.b16 %v1268, %v1267
      %v1294 = vpack.c.b16 %v1270, %v1269
      %v1295 = vpack.c.b16 %v1272, %v1271
      %v1296 = vpack.c.b16 %v1274, %v1273
      %v1297 = vpack.c.b16 %v1276, %v1275
      %v1298 = vpack.c.b16 %v1278, %v1277
      %v1299 = vpack.c.b16 %v1280, %v1279
      %v1300 = vpack.c.b16 %v1282, %v1281
      %v1319 = vunpack.c.l.b16 %v984
      %v1320 = vunpack.c.l.b16 %v987
      %v1321 = vunpack.c.l.b16 %v991
      %v1322 = vunpack.c.l.b16 %v994
      %v1323 = vunpack.c.l.b16 %v998
      %v1324 = vunpack.c.l.b16 %v1001
      %v1325 = vunpack.c.l.b16 %v1005
      %v1326 = vunpack.c.l.b16 %v1008
      %v1327 = vunpack.c.l.b16 %v1012
      %v1328 = vunpack.c.l.b16 %v1015
      %v1329 = vunpack.c.l.b16 %v1019
      %v1330 = vunpack.c.l.b16 %v1022
      %v1331 = vunpack.c.l.b16 %v1026
      %v1332 = vunpack.c.l.b16 %v1029
      %v1333 = vunpack.c.l.b16 %v1033
      %v1334 = vunpack.c.l.b16 %v1036
      %v1335 = vunpack.c.l.b16 %v1040
      %v1336 = vunpack.c.l.b16 %v1043
      %v1337 = vunpack.c.l.b16 %v1047
      %v1338 = vunpack.c.l.b16 %v1050
      %v1339 = vunpack.c.l.b16 %v1054
      %v1340 = vunpack.c.l.b16 %v1057
      %v1341 = vunpack.c.l.b16 %v1061
      %v1342 = vunpack.c.l.b16 %v1064
      %v1343 = vunpack.c.l.b16 %v1068
      %v1344 = vunpack.c.l.b16 %v1071
      %v1345 = vunpack.c.l.b16 %v1075
      %v1346 = vunpack.c.l.b16 %v1078
      %v1347 = vunpack.c.l.b16 %v1082
      %v1348 = vunpack.c.l.b16 %v1085
      %v1349 = vunpack.c.l.b16 %v1089
      %v1350 = vunpack.c.l.b16 %v1092
      %v1351 = vunpack.c.l.b16 %v1096
      %v1352 = vunpack.c.l.b16 %v1099
      %v1353 = vunpack.c.l.b16 %v1103
      %v1354 = vunpack.c.l.b16 %v1106
      %v1355 = vpack.c.b16 %v1320, %v1319
      %v1356 = vpack.c.b16 %v1322, %v1321
      %v1357 = vpack.c.b16 %v1324, %v1323
      %v1358 = vpack.c.b16 %v1326, %v1325
      %v1359 = vpack.c.b16 %v1328, %v1327
      %v1360 = vpack.c.b16 %v1330, %v1329
      %v1361 = vpack.c.b16 %v1332, %v1331
      %v1362 = vpack.c.b16 %v1334, %v1333
      %v1363 = vpack.c.b16 %v1336, %v1335
      %v1364 = vpack.c.b16 %v1338, %v1337
      %v1365 = vpack.c.b16 %v1340, %v1339
      %v1366 = vpack.c.b16 %v1342, %v1341
      %v1367 = vpack.c.b16 %v1344, %v1343
      %v1368 = vpack.c.b16 %v1346, %v1345
      %v1369 = vpack.c.b16 %v1348, %v1347
      %v1370 = vpack.c.b16 %v1350, %v1349
      %v1371 = vpack.c.b16 %v1352, %v1351
      %v1372 = vpack.c.b16 %v1354, %v1353
      %v1391 = vunpack.c.l.b16 %v483
      %v1392 = vunpack.c.l.b16 %v484
      %v1393 = vpack.c.b16 %v1392, %v1391
      %v1395 = vunpack.c.l.b16 %v1120
      %v1396 = vunpack.c.l.b16 %v1130
      %v1397 = vpack.c.b16 %v1396, %v1395
      %v1399 = vunpack.c.l.b16 %v1137
      %v1400 = vunpack.c.l.b16 %v1140
      %v1401 = vpack.c.b16 %v1400, %v1399
      %v1403 = vunpack.c.l.b16 %v486
      %v1404 = vunpack.c.l.b16 %v487
      %v1405 = vpack.c.b16 %v1404, %v1403
      %v1407 = vunpack.c.l.b16 %v1154
      %v1408 = vunpack.c.l.b16 %v1164
      %v1409 = vpack.c.b16 %v1408, %v1407
      %v1411 = vunpack.c.l.b16 %v1171
      %v1412 = vunpack.c.l.b16 %v1174
      %v1413 = vpack.c.b16 %v1412, %v1411
      %v1415 = vld [vmem:[%s2] sm:$0xf]
      %v1416 = vld [vmem:[%s2 + $0x4] sm:$0xf]
      %v1417 = vld [vmem:[%s2 + $0x8] sm:$0xf]
      %v1418 = vld [vmem:[%s2 + $0xc] sm:$0xf]
      %v1419 = vld [vmem:[%s2 + $0x10] sm:$0xf]
      %v1420 = vld [vmem:[%s2 + $0x14] sm:$0xf]
      %v1421 = vld [vmem:[%s2 + $0x18] sm:$0xf]
      %v1422 = vld [vmem:[%s2 + $0x1c] sm:$0xf]
      %v1423 = vld [vmem:[%s2 + $0x20] sm:$0xf]
      %v1424 = vld [vmem:[%s2 + $0x24] sm:$0xf]
      %v1425 = vld [vmem:[%s2 + $0x28] sm:$0xf]
      %v1426 = vld [vmem:[%s2 + $0x2c] sm:$0xf]
      %v1427 = vld [vmem:[%s2 + $0x30] sm:$0xf]
      %v1428 = vld [vmem:[%s2 + $0x34] sm:$0xf]
      %v1429 = vld [vmem:[%s2 + $0x38] sm:$0xf]
      %v1430 = vld [vmem:[%s2 + $0x3c] sm:$0xf]
      %v1431 = vld [vmem:[%s2 + $0x40] sm:$0xf]
      %v1432 = vld [vmem:[%s2 + $0x44] sm:$0xf]
      %v1433 = vld [vmem:[%s2 + $0x48] sm:$0xf]
      %v1434 = vld [vmem:[%s2 + $0x4c] sm:$0xf]
      %v1435 = vld [vmem:[%s2 + $0x50] sm:$0xf]
      %v1436 = vld [vmem:[%s2 + $0x54] sm:$0xf]
      %v1437 = vld [vmem:[%s2 + $0x58] sm:$0xf]
      %v1438 = vld [vmem:[%s2 + $0x5c] sm:$0xf]
      %v1439 = vld [vmem:[%s2 + $0x60] sm:$0xf]
      %v1440 = vld [vmem:[%s2 + $0x64] sm:$0xf]
      %v1441 = vld [vmem:[%s2 + $0x68] sm:$0xf]
      %v1442 = vld [vmem:[%s2 + $0x6c] sm:$0xf]
      %v1443 = vld [vmem:[%s2 + $0x70] sm:$0xf]
      %v1444 = vld [vmem:[%s2 + $0x74] sm:$0xf]
      %v1445 = vld [vmem:[%s2 + $0x78] sm:$0xf]
      %v1446 = vld [vmem:[%s2 + $0x7c] sm:$0xf]
      %v1447 = vld [vmem:[%s2 + $0x80] sm:$0xf]
      %v1448 = vld [vmem:[%s2 + $0x84] sm:$0xf]
      %v1449 = vld [vmem:[%s2 + $0x88] sm:$0xf]
      %v1450 = vld [vmem:[%s2 + $0x8c] sm:$0xf]
      %v1451 = vld [vmem:[%s2 + $0x90] sm:$0xf]
      %v1452 = vld [vmem:[%s2 + $0x94] sm:$0xf]
      %v1453 = vld [vmem:[%s2 + $0x98] sm:$0xf]
      %v1454 = vld [vmem:[%s2 + $0x9c] sm:$0xf]
      %v1455 = vld [vmem:[%s2 + $0xa0] sm:$0xf]
      %v1456 = vld [vmem:[%s2 + $0xa4] sm:$0xf]
      %v1457 = vld [vmem:[%s2 + $0xa8] sm:$0xf]
      %v1458 = vld [vmem:[%s2 + $0xac] sm:$0xf]
      %v1459 = vld [vmem:[%s2 + $0xb0] sm:$0xf]
      %v1460 = vld [vmem:[%s2 + $0xb4] sm:$0xf]
      %v1461 = vld [vmem:[%s2 + $0xb8] sm:$0xf]
      %v1462 = vld [vmem:[%s2 + $0xbc] sm:$0xf]
      %v1463 = vld [vmem:[%s2 + $0xc0] sm:$0xf]
      %v1464 = vld [vmem:[%s2 + $0xc4] sm:$0xf]
      %v1465 = vld [vmem:[%s2 + $0xc8] sm:$0xf]
      %v1466 = vld [vmem:[%s2 + $0xcc] sm:$0xf]
      %v1467 = vld [vmem:[%s2 + $0xd0] sm:$0xf]
      %v1468 = vld [vmem:[%s2 + $0xd4] sm:$0xf]
      %v1469 = vld [vmem:[%s2 + $0xd8] sm:$0xf]
      %v1470 = vld [vmem:[%s2 + $0xdc] sm:$0xf]
      %v1471 = vld [vmem:[%s2 + $0xe0] sm:$0xf]
      %v1472 = vld [vmem:[%s2 + $0xe4] sm:$0xf]
      %v1473 = vld [vmem:[%s2 + $0xe8] sm:$0xf]
      %v1474 = vld [vmem:[%s2 + $0xec] sm:$0xf]
      %v1475 = vld [vmem:[%s2 + $0xf0] sm:$0xf]
      %v1476 = vld [vmem:[%s2 + $0xf4] sm:$0xf]
      %v1477 = vld [vmem:[%s2 + $0xf8] sm:$0xf]
      %v1478 = vld [vmem:[%s2 + $0xfc] sm:$0xf]
      %v1479 = vld [vmem:[%s2 + $0x100] sm:$0xf]
      %v1480 = vld [vmem:[%s2 + $0x104] sm:$0xf]
      %v1481 = vld [vmem:[%s2 + $0x108] sm:$0xf]
      %v1482 = vld [vmem:[%s2 + $0x10c] sm:$0xf]
      %v1483 = vld [vmem:[%s2 + $0x110] sm:$0xf]
      %v1484 = vld [vmem:[%s2 + $0x114] sm:$0xf]
      %v1485 = vld [vmem:[%s2 + $0x118] sm:$0xf]
      %v1486 = vld [vmem:[%s2 + $0x11c] sm:$0xf]
      %v1487 = vld [vmem:[%s2 + $0x120] sm:$0xf]
      %v1488 = vld [vmem:[%s2 + $0x124] sm:$0xf]
      %v1489 = vld [vmem:[%s2 + $0x128] sm:$0xf]
      %v1490 = vld [vmem:[%s2 + $0x12c] sm:$0xf]
      %v1491 = vld [vmem:[%s2 + $0x130] sm:$0xf]
      %v1492 = vld [vmem:[%s2 + $0x134] sm:$0xf]
      %v1493 = vld [vmem:[%s2 + $0x138] sm:$0xf]
      %v1494 = vld [vmem:[%s2 + $0x13c] sm:$0xf]
      %v1495 = vld [vmem:[%s2 + $0x140] sm:$0xf]
      %v1496 = vld [vmem:[%s2 + $0x144] sm:$0xf]
      %v1497 = vld [vmem:[%s2 + $0x148] sm:$0xf]
      %v1498 = vld [vmem:[%s2 + $0x14c] sm:$0xf]
      %v1499 = vld [vmem:[%s2 + $0x150] sm:$0xf]
      %v1500 = vld [vmem:[%s2 + $0x154] sm:$0xf]
      %v1501 = vld [vmem:[%s2 + $0x158] sm:$0xf]
      %v1502 = vld [vmem:[%s2 + $0x15c] sm:$0xf]
      %v1503 = vld [vmem:[%s2 + $0x160] sm:$0xf]
      %v1504 = vld [vmem:[%s2 + $0x164] sm:$0xf]
      %v1505 = vld [vmem:[%s2 + $0x168] sm:$0xf]
      %v1506 = vld [vmem:[%s2 + $0x16c] sm:$0xf]
      %v1507 = vld [vmem:[%s2 + $0x170] sm:$0xf]
      %v1508 = vld [vmem:[%s2 + $0x174] sm:$0xf]
      %v1509 = vld [vmem:[%s2 + $0x178] sm:$0xf]
      %v1510 = vld [vmem:[%s2 + $0x17c] sm:$0xf]
      %v1511 = vld [vmem:[%s2 + $0x180] sm:$0xf]
      %v1512 = vld [vmem:[%s2 + $0x184] sm:$0xf]
      %v1513 = vld [vmem:[%s2 + $0x188] sm:$0xf]
      %v1514 = vld [vmem:[%s2 + $0x18c] sm:$0xf]
      %v1515 = vld [vmem:[%s2 + $0x190] sm:$0xf]
      %v1516 = vld [vmem:[%s2 + $0x194] sm:$0xf]
      %v1517 = vld [vmem:[%s2 + $0x198] sm:$0xf]
      %v1518 = vld [vmem:[%s2 + $0x19c] sm:$0xf]
      %v1519 = vld [vmem:[%s2 + $0x1a0] sm:$0xf]
      %v1520 = vld [vmem:[%s2 + $0x1a4] sm:$0xf]
      %v1521 = vld [vmem:[%s2 + $0x1a8] sm:$0xf]
      %v1522 = vld [vmem:[%s2 + $0x1ac] sm:$0xf]
      %v1523 = vld [vmem:[%s2 + $0x1b0] sm:$0xf]
      %v1524 = vld [vmem:[%s2 + $0x1b4] sm:$0xf]
      %v1525 = vld [vmem:[%s2 + $0x1b8] sm:$0xf]
      %v1526 = vld [vmem:[%s2 + $0x1bc] sm:$0xf]
      %v1527 = vld [vmem:[%s2 + $0x1c0] sm:$0xf]
      %v1528 = vld [vmem:[%s2 + $0x1c4] sm:$0xf]
      %v1529 = vld [vmem:[%s2 + $0x1c8] sm:$0xf]
      %v1530 = vld [vmem:[%s2 + $0x1cc] sm:$0xf]
      %v1531 = vld [vmem:[%s2 + $0x1d0] sm:$0xf]
      %v1532 = vld [vmem:[%s2 + $0x1d4] sm:$0xf]
      %v1533 = vld [vmem:[%s2 + $0x1d8] sm:$0xf]
      %v1534 = vld [vmem:[%s2 + $0x1dc] sm:$0xf]
      %v1535 = vld [vmem:[%s2 + $0x1e0] sm:$0xf]
      %v1536 = vld [vmem:[%s2 + $0x1e4] sm:$0xf]
      %v1537 = vld [vmem:[%s2 + $0x1e8] sm:$0xf]
      %v1538 = vld [vmem:[%s2 + $0x1ec] sm:$0xf]
      %v1539 = vld [vmem:[%s2 + $0x1f0] sm:$0xf]
      %v1540 = vld [vmem:[%s2 + $0x1f4] sm:$0xf]
      %v1541 = vld [vmem:[%s2 + $0x1f8] sm:$0xf]
      %v1542 = vld [vmem:[%s2 + $0x1fc] sm:$0xf]
      %v1543 = vld [vmem:[%s2 + $0x200] sm:$0xf]
      %v1544 = vld [vmem:[%s2 + $0x204] sm:$0xf]
      %v1545 = vld [vmem:[%s2 + $0x208] sm:$0xf]
      %v1546 = vld [vmem:[%s2 + $0x20c] sm:$0xf]
      %v1547 = vld [vmem:[%s2 + $0x210] sm:$0xf]
      %v1548 = vld [vmem:[%s2 + $0x214] sm:$0xf]
      %v1549 = vld [vmem:[%s2 + $0x218] sm:$0xf]
      %v1550 = vld [vmem:[%s2 + $0x21c] sm:$0xf]
      %v1551 = vld [vmem:[%s2 + $0x220] sm:$0xf]
      %v1552 = vld [vmem:[%s2 + $0x224] sm:$0xf]
      %v1553 = vld [vmem:[%s2 + $0x228] sm:$0xf]
      %v1554 = vld [vmem:[%s2 + $0x22c] sm:$0xf]
      %v1555 = vld [vmem:[%s2 + $0x230] sm:$0xf]
      %v1556 = vld [vmem:[%s2 + $0x234] sm:$0xf]
      %v1557 = vld [vmem:[%s2 + $0x238] sm:$0xf]
      %v1558 = vld [vmem:[%s2 + $0x23c] sm:$0xf]
      %v1559 = vld [vmem:[%s3] sm:$0x1]
      %v1561 = vlaneseq
      %v1562 = vshrl.u32 %v1561, 7
      %v1563 = vsub.s32 0, %v1562
      %v1564 = vrot.slane %v1559, %v1563
      %v1710 = vunpack.c.l.b16 %v1415
      %v1711 = vunpack.c.l.b16 %v1416
      %v1712 = vunpack.c.l.b16 %v1417
      %v1713 = vunpack.c.l.b16 %v1418
      %v1714 = vunpack.c.l.b16 %v1419
      %v1715 = vunpack.c.l.b16 %v1420
      %v1716 = vunpack.c.l.b16 %v1421
      %v1717 = vunpack.c.l.b16 %v1422
      %v1718 = vunpack.c.l.b16 %v1423
      %v1719 = vunpack.c.l.b16 %v1424
      %v1720 = vunpack.c.l.b16 %v1425
      %v1721 = vunpack.c.l.b16 %v1426
      %v1722 = vunpack.c.l.b16 %v1427
      %v1723 = vunpack.c.l.b16 %v1428
      %v1724 = vunpack.c.l.b16 %v1429
      %v1725 = vunpack.c.l.b16 %v1430
      %v1726 = vunpack.c.l.b16 %v1431
      %v1727 = vunpack.c.l.b16 %v1432
      %v1728 = vunpack.c.l.b16 %v1433
      %v1729 = vunpack.c.l.b16 %v1434
      %v1730 = vunpack.c.l.b16 %v1435
      %v1731 = vunpack.c.l.b16 %v1436
      %v1732 = vunpack.c.l.b16 %v1437
      %v1733 = vunpack.c.l.b16 %v1438
      %v1734 = vunpack.c.l.b16 %v1439
      %v1735 = vunpack.c.l.b16 %v1440
      %v1736 = vunpack.c.l.b16 %v1441
      %v1737 = vunpack.c.l.b16 %v1442
      %v1738 = vunpack.c.l.b16 %v1443
      %v1739 = vunpack.c.l.b16 %v1444
      %v1740 = vunpack.c.l.b16 %v1445
      %v1741 = vunpack.c.l.b16 %v1446
      %v1742 = vunpack.c.l.b16 %v1447
      %v1743 = vunpack.c.l.b16 %v1448
      %v1744 = vunpack.c.l.b16 %v1449
      %v1745 = vunpack.c.l.b16 %v1450
      %v1746 = vunpack.c.l.b16 %v1451
      %v1747 = vunpack.c.l.b16 %v1452
      %v1748 = vunpack.c.l.b16 %v1453
      %v1749 = vunpack.c.l.b16 %v1454
      %v1750 = vunpack.c.l.b16 %v1455
      %v1751 = vunpack.c.l.b16 %v1456
      %v1752 = vunpack.c.l.b16 %v1457
      %v1753 = vunpack.c.l.b16 %v1458
      %v1754 = vunpack.c.l.b16 %v1459
      %v1755 = vunpack.c.l.b16 %v1460
      %v1756 = vunpack.c.l.b16 %v1461
      %v1757 = vunpack.c.l.b16 %v1462
      %v1758 = vunpack.c.l.b16 %v1463
      %v1759 = vunpack.c.l.b16 %v1464
      %v1760 = vunpack.c.l.b16 %v1465
      %v1761 = vunpack.c.l.b16 %v1466
      %v1762 = vunpack.c.l.b16 %v1467
      %v1763 = vunpack.c.l.b16 %v1468
      %v1764 = vunpack.c.l.b16 %v1469
      %v1765 = vunpack.c.l.b16 %v1470
      %v1766 = vunpack.c.l.b16 %v1471
      %v1767 = vunpack.c.l.b16 %v1472
      %v1768 = vunpack.c.l.b16 %v1473
      %v1769 = vunpack.c.l.b16 %v1474
      %v1770 = vunpack.c.l.b16 %v1475
      %v1771 = vunpack.c.l.b16 %v1476
      %v1772 = vunpack.c.l.b16 %v1477
      %v1773 = vunpack.c.l.b16 %v1478
      %v1774 = vunpack.c.l.b16 %v1479
      %v1775 = vunpack.c.l.b16 %v1480
      %v1776 = vunpack.c.l.b16 %v1481
      %v1777 = vunpack.c.l.b16 %v1482
      %v1778 = vunpack.c.l.b16 %v1483
      %v1779 = vunpack.c.l.b16 %v1484
      %v1780 = vunpack.c.l.b16 %v1485
      %v1781 = vunpack.c.l.b16 %v1486
      %v1782 = vunpack.c.l.b16 %v1487
      %v1783 = vunpack.c.l.b16 %v1488
      %v1784 = vunpack.c.l.b16 %v1489
      %v1785 = vunpack.c.l.b16 %v1490
      %v1786 = vunpack.c.l.b16 %v1491
      %v1787 = vunpack.c.l.b16 %v1492
      %v1788 = vunpack.c.l.b16 %v1493
      %v1789 = vunpack.c.l.b16 %v1494
      %v1790 = vunpack.c.l.b16 %v1495
      %v1791 = vunpack.c.l.b16 %v1496
      %v1792 = vunpack.c.l.b16 %v1497
      %v1793 = vunpack.c.l.b16 %v1498
      %v1794 = vunpack.c.l.b16 %v1499
      %v1795 = vunpack.c.l.b16 %v1500
      %v1796 = vunpack.c.l.b16 %v1501
      %v1797 = vunpack.c.l.b16 %v1502
      %v1798 = vunpack.c.l.b16 %v1503
      %v1799 = vunpack.c.l.b16 %v1504
      %v1800 = vunpack.c.l.b16 %v1505
      %v1801 = vunpack.c.l.b16 %v1506
      %v1802 = vunpack.c.l.b16 %v1507
      %v1803 = vunpack.c.l.b16 %v1508
      %v1804 = vunpack.c.l.b16 %v1509
      %v1805 = vunpack.c.l.b16 %v1510
      %v1806 = vunpack.c.l.b16 %v1511
      %v1807 = vunpack.c.l.b16 %v1512
      %v1808 = vunpack.c.l.b16 %v1513
      %v1809 = vunpack.c.l.b16 %v1514
      %v1810 = vunpack.c.l.b16 %v1515
      %v1811 = vunpack.c.l.b16 %v1516
      %v1812 = vunpack.c.l.b16 %v1517
      %v1813 = vunpack.c.l.b16 %v1518
      %v1814 = vunpack.c.l.b16 %v1519
      %v1815 = vunpack.c.l.b16 %v1520
      %v1816 = vunpack.c.l.b16 %v1521
      %v1817 = vunpack.c.l.b16 %v1522
      %v1818 = vunpack.c.l.b16 %v1523
      %v1819 = vunpack.c.l.b16 %v1524
      %v1820 = vunpack.c.l.b16 %v1525
      %v1821 = vunpack.c.l.b16 %v1526
      %v1822 = vunpack.c.l.b16 %v1527
      %v1823 = vunpack.c.l.b16 %v1528
      %v1824 = vunpack.c.l.b16 %v1529
      %v1825 = vunpack.c.l.b16 %v1530
      %v1826 = vunpack.c.l.b16 %v1531
      %v1827 = vunpack.c.l.b16 %v1532
      %v1828 = vunpack.c.l.b16 %v1533
      %v1829 = vunpack.c.l.b16 %v1534
      %v1830 = vunpack.c.l.b16 %v1535
      %v1831 = vunpack.c.l.b16 %v1536
      %v1832 = vunpack.c.l.b16 %v1537
      %v1833 = vunpack.c.l.b16 %v1538
      %v1834 = vunpack.c.l.b16 %v1539
      %v1835 = vunpack.c.l.b16 %v1540
      %v1836 = vunpack.c.l.b16 %v1541
      %v1837 = vunpack.c.l.b16 %v1542
      %v1838 = vunpack.c.l.b16 %v1543
      %v1839 = vunpack.c.l.b16 %v1544
      %v1840 = vunpack.c.l.b16 %v1545
      %v1841 = vunpack.c.l.b16 %v1546
      %v1842 = vunpack.c.l.b16 %v1547
      %v1843 = vunpack.c.l.b16 %v1548
      %v1844 = vunpack.c.l.b16 %v1549
      %v1845 = vunpack.c.l.b16 %v1550
      %v1846 = vunpack.c.l.b16 %v1551
      %v1847 = vunpack.c.l.b16 %v1552
      %v1848 = vunpack.c.l.b16 %v1553
      %v1849 = vunpack.c.l.b16 %v1554
      %v1850 = vunpack.c.l.b16 %v1555
      %v1851 = vunpack.c.l.b16 %v1556
      %v1852 = vunpack.c.l.b16 %v1557
      %v1853 = vunpack.c.l.b16 %v1558
      %v1854 = vpack.c.b16 %v1711, %v1710
      %v1855 = vpack.c.b16 %v1713, %v1712
      %v1856 = vpack.c.b16 %v1715, %v1714
      %v1857 = vpack.c.b16 %v1717, %v1716
      %v1858 = vpack.c.b16 %v1719, %v1718
      %v1859 = vpack.c.b16 %v1721, %v1720
      %v1860 = vpack.c.b16 %v1723, %v1722
      %v1861 = vpack.c.b16 %v1725, %v1724
      %v1862 = vpack.c.b16 %v1727, %v1726
      %v1863 = vpack.c.b16 %v1729, %v1728
      %v1864 = vpack.c.b16 %v1731, %v1730
      %v1865 = vpack.c.b16 %v1733, %v1732
      %v1866 = vpack.c.b16 %v1735, %v1734
      %v1867 = vpack.c.b16 %v1737, %v1736
      %v1868 = vpack.c.b16 %v1739, %v1738
      %v1869 = vpack.c.b16 %v1741, %v1740
      %v1870 = vpack.c.b16 %v1743, %v1742
      %v1871 = vpack.c.b16 %v1745, %v1744
      %v1872 = vpack.c.b16 %v1747, %v1746
      %v1873 = vpack.c.b16 %v1749, %v1748
      %v1874 = vpack.c.b16 %v1751, %v1750
      %v1875 = vpack.c.b16 %v1753, %v1752
      %v1876 = vpack.c.b16 %v1755, %v1754
      %v1877 = vpack.c.b16 %v1757, %v1756
      %v1878 = vpack.c.b16 %v1759, %v1758
      %v1879 = vpack.c.b16 %v1761, %v1760
      %v1880 = vpack.c.b16 %v1763, %v1762
      %v1881 = vpack.c.b16 %v1765, %v1764
      %v1882 = vpack.c.b16 %v1767, %v1766
      %v1883 = vpack.c.b16 %v1769, %v1768
      %v1884 = vpack.c.b16 %v1771, %v1770
      %v1885 = vpack.c.b16 %v1773, %v1772
      %v1886 = vpack.c.b16 %v1775, %v1774
      %v1887 = vpack.c.b16 %v1777, %v1776
      %v1888 = vpack.c.b16 %v1779, %v1778
      %v1889 = vpack.c.b16 %v1781, %v1780
      %v1890 = vpack.c.b16 %v1783, %v1782
      %v1891 = vpack.c.b16 %v1785, %v1784
      %v1892 = vpack.c.b16 %v1787, %v1786
      %v1893 = vpack.c.b16 %v1789, %v1788
      %v1894 = vpack.c.b16 %v1791, %v1790
      %v1895 = vpack.c.b16 %v1793, %v1792
      %v1896 = vpack.c.b16 %v1795, %v1794
      %v1897 = vpack.c.b16 %v1797, %v1796
      %v1898 = vpack.c.b16 %v1799, %v1798
      %v1899 = vpack.c.b16 %v1801, %v1800
      %v1900 = vpack.c.b16 %v1803, %v1802
      %v1901 = vpack.c.b16 %v1805, %v1804
      %v1902 = vpack.c.b16 %v1807, %v1806
      %v1903 = vpack.c.b16 %v1809, %v1808
      %v1904 = vpack.c.b16 %v1811, %v1810
      %v1905 = vpack.c.b16 %v1813, %v1812
      %v1906 = vpack.c.b16 %v1815, %v1814
      %v1907 = vpack.c.b16 %v1817, %v1816
      %v1908 = vpack.c.b16 %v1819, %v1818
      %v1909 = vpack.c.b16 %v1821, %v1820
      %v1910 = vpack.c.b16 %v1823, %v1822
      %v1911 = vpack.c.b16 %v1825, %v1824
      %v1912 = vpack.c.b16 %v1827, %v1826
      %v1913 = vpack.c.b16 %v1829, %v1828
      %v1914 = vpack.c.b16 %v1831, %v1830
      %v1915 = vpack.c.b16 %v1833, %v1832
      %v1916 = vpack.c.b16 %v1835, %v1834
      %v1917 = vpack.c.b16 %v1837, %v1836
      %v1918 = vpack.c.b16 %v1839, %v1838
      %v1919 = vpack.c.b16 %v1841, %v1840
      %v1920 = vpack.c.b16 %v1843, %v1842
      %v1921 = vpack.c.b16 %v1845, %v1844
      %v1922 = vpack.c.b16 %v1847, %v1846
      %v1923 = vpack.c.b16 %v1849, %v1848
      %v1924 = vpack.c.b16 %v1851, %v1850
      %v1925 = vpack.c.b16 %v1853, %v1852
      %1998 = vmatprep.subr.bf16.mxu0 0
      %1999 = vmatpush1.bf16.msra.mxu0 %v1854
      %2000 = vmatprep.subr.bf16.mxu0 0
      %2001 = vmatpush1.bf16.msra.mxu0 %v1855
      %2002 = vmatprep.subr.bf16.mxu0 0
      %2003 = vmatpush1.bf16.msra.mxu0 %v1856
      %2004 = vmatprep.subr.bf16.mxu0 0
      %2005 = vmatpush1.bf16.msra.mxu0 %v1857
      %2006 = vmatprep.subr.bf16.mxu0 0
      %2007 = vmatpush1.bf16.msra.mxu0 %v1858
      %2008 = vmatprep.subr.bf16.mxu0 0
      %2009 = vmatpush1.bf16.msra.mxu0 %v1859
      %2010 = vmatprep.subr.bf16.mxu0 0
      %2011 = vmatpush1.bf16.msra.mxu0 %v1860
      %2012 = vmatprep.subr.bf16.mxu0 0
      %2013 = vmatpush1.bf16.msra.mxu0 %v1861
      %2014 = vmatprep.subr.bf16.mxu0 0
      %2015 = vmatpush1.bf16.msra.mxu0 %v1862
      %2016 = vmatprep.subr.bf16.mxu0 0
      %2017 = vmatpush1.bf16.msra.mxu0 %v1863
      %2018 = vmatprep.subr.bf16.mxu0 0
      %2019 = vmatpush1.bf16.msra.mxu0 %v1864
      %2020 = vmatprep.subr.bf16.mxu0 0
      %2021 = vmatpush1.bf16.msra.mxu0 %v1865
      %2022 = vmatprep.subr.bf16.mxu0 0
      %2023 = vmatpush1.bf16.msra.mxu0 %v1866
      %2024 = vmatprep.subr.bf16.mxu0 0
      %2025 = vmatpush1.bf16.msra.mxu0 %v1867
      %2026 = vmatprep.subr.bf16.mxu0 0
      %2027 = vmatpush1.bf16.msra.mxu0 %v1868
      %2028 = vmatprep.subr.bf16.mxu0 0
      %2029 = vmatpush1.bf16.msra.mxu0 %v1869
      %2030 = vmatprep.mubr.bf16.mxu0 %v1283
      %2031 = vmatmul.mubr.bf16.gmra.mrb[0].mxu0 %v1211
      %v2032 = vpop.f32.mrb[0].mxu0
      %v2033 = vadd.f32 %v1564, %v2032
      %v2034 = vpop.f32.mrb[0].mxu0
      %v2035 = vpop.f32.mrb[0].mxu0
      %v2036 = vadd.f32 %v1564, %v2035
      %v2037 = vpop.f32.mrb[0].mxu0
      %2038 = vmatprep.mubr.bf16.mxu0 %v1284
      %2039 = vmatmul.mubr.bf16.gmra.mrb[0].mxu0 %v1212
      %v2040 = vpop.f32.mrb[0].mxu0
      %v2041 = vadd.f32 %v1564, %v2040
      %v2042 = vpop.f32.mrb[0].mxu0
      %v2043 = vpop.f32.mrb[0].mxu0
      %v2044 = vadd.f32 %v1564, %v2043
      %v2045 = vpop.f32.mrb[0].mxu0
      %2046 = vmatprep.mubr.bf16.mxu0 %v1285
      %2047 = vmatmul.mubr.bf16.gmra.mrb[0].mxu0 %v1213
      %v2048 = vpop.f32.mrb[0].mxu0
      %v2049 = vadd.f32 %v1564, %v2048
      %v2050 = vpop.f32.mrb[0].mxu0
      %v2051 = vpop.f32.mrb[0].mxu0
      %v2052 = vadd.f32 %v1564, %v2051
      %v2053 = vpop.f32.mrb[0].mxu0
      %2054 = vmatprep.mubr.bf16.mxu0 %v1286
      %2055 = vmatmul.mubr.bf16.gmra.mrb[0].mxu0 %v1214
      %v2056 = vpop.f32.mrb[0].mxu0
      %v2057 = vadd.f32 %v1564, %v2056
      %v2058 = vpop.f32.mrb[0].mxu0
      %v2059 = vpop.f32.mrb[0].mxu0
      %v2060 = vadd.f32 %v1564, %v2059
      %v2061 = vpop.f32.mrb[0].mxu0
      %2062 = vmatprep.mubr.bf16.mxu0 %v1287
      %2063 = vmatmul.mubr.bf16.gmra.mrb[0].mxu0 %v1215
      %v2064 = vpop.f32.mrb[0].mxu0
      %v2065 = vadd.f32 %v1564, %v2064
      %v2066 = vpop.f32.mrb[0].mxu0
      %v2067 = vpop.f32.mrb[0].mxu0
      %v2068 = vadd.f32 %v1564, %v2067
      %v2069 = vpop.f32.mrb[0].mxu0
      %2070 = vmatprep.mubr.bf16.mxu0 %v1288
      %2071 = vmatmul.mubr.bf16.gmra.mrb[0].mxu0 %v1216
      %v2072 = vpop.f32.mrb[0].mxu0
      %v2073 = vadd.f32 %v1564, %v2072
      %v2074 = vpop.f32.mrb[0].mxu0
      %v2075 = vpop.f32.mrb[0].mxu0
      %v2076 = vadd.f32 %v1564, %v2075
      %v2077 = vpop.f32.mrb[0].mxu0
      %2078 = vmatprep.mubr.bf16.mxu0 %v1289
      %2079 = vmatmul.mubr.bf16.gmra.mrb[0].mxu0 %v1217
      %v2080 = vpop.f32.mrb[0].mxu0
      %v2081 = vadd.f32 %v1564, %v2080
      %v2082 = vpop.f32.mrb[0].mxu0
      %v2083 = vpop.f32.mrb[0].mxu0
      %v2084 = vadd.f32 %v1564, %v2083
      %v2085 = vpop.f32.mrb[0].mxu0
      %2086 = vmatprep.mubr.bf16.mxu0 %v1290
      %2087 = vmatmul.mubr.bf16.gmra.mrb[0].mxu0 %v1218
      %v2088 = vpop.f32.mrb[0].mxu0
      %v2089 = vadd.f32 %v1564, %v2088
      %v2090 = vpop.f32.mrb[0].mxu0
      %v2091 = vpop.f32.mrb[0].mxu0
      %v2092 = vadd.f32 %v1564, %v2091
      %v2093 = vpop.f32.mrb[0].mxu0
      %2094 = vmatprep.mubr.bf16.mxu0 %v1291
      %2095 = vmatmul.mubr.bf16.gmra.mrb[0].mxu0 %v1219
      %v2096 = vpop.f32.mrb[0].mxu0
      %v2097 = vadd.f32 %v1564, %v2096
      %v2098 = vpop.f32.mrb[0].mxu0
      %v2099 = vpop.f32.mrb[0].mxu0
      %v2100 = vadd.f32 %v1564, %v2099
      %v2101 = vpop.f32.mrb[0].mxu0
      %2102 = vmatprep.mubr.bf16.mxu0 %v1292
      %2103 = vmatmul.mubr.bf16.gmra.mrb[0].mxu0 %v1220
      %v2104 = vpop.f32.mrb[0].mxu0
      %v2105 = vadd.f32 %v1564, %v2104
      %v2106 = vpop.f32.mrb[0].mxu0
      %v2107 = vpop.f32.mrb[0].mxu0
      %v2108 = vadd.f32 %v1564, %v2107
      %v2109 = vpop.f32.mrb[0].mxu0
      %2110 = vmatprep.mubr.bf16.mxu0 %v1293
      %2111 = vmatmul.mubr.bf16.gmra.mrb[0].mxu0 %v1221
      %v2112 = vpop.f32.mrb[0].mxu0
      %v2113 = vadd.f32 %v1564, %v2112
      %v2114 = vpop.f32.mrb[0].mxu0
      %v2115 = vpop.f32.mrb[0].mxu0
      %v2116 = vadd.f32 %v1564, %v2115
      %v2117 = vpop.f32.mrb[0].mxu0
      %2118 = vmatprep.mubr.bf16.mxu0 %v1294
      %2119 = vmatmul.mubr.bf16.gmra.mrb[0].mxu0 %v1222
      %v2120 = vpop.f32.mrb[0].mxu0
      %v2121 = vadd.f32 %v1564, %v2120
      %v2122 = vpop.f32.mrb[0].mxu0
      %v2123 = vpop.f32.mrb[0].mxu0
      %v2124 = vadd.f32 %v1564, %v2123
      %v2125 = vpop.f32.mrb[0].mxu0
      %2126 = vmatprep.mubr.bf16.mxu0 %v1295
      %2127 = vmatmul.mubr.bf16.gmra.mrb[0].mxu0 %v1223
      %v2128 = vpop.f32.mrb[0].mxu0
      %v2129 = vadd.f32 %v1564, %v2128
      %v2130 = vpop.f32.mrb[0].mxu0
      %v2131 = vpop.f32.mrb[0].mxu0
      %v2132 = vadd.f32 %v1564, %v2131
      %v2133 = vpop.f32.mrb[0].mxu0
      %2134 = vmatprep.mubr.bf16.mxu0 %v1296
      %2135 = vmatmul.mubr.bf16.gmra.mrb[0].mxu0 %v1224
      %v2136 = vpop.f32.mrb[0].mxu0
      %v2137 = vadd.f32 %v1564, %v2136
      %v2138 = vpop.f32.mrb[0].mxu0
      %v2139 = vpop.f32.mrb[0].mxu0
      %v2140 = vadd.f32 %v1564, %v2139
      %v2141 = vpop.f32.mrb[0].mxu0
      %2142 = vmatprep.mubr.bf16.mxu0 %v1297
      %2143 = vmatmul.mubr.bf16.gmra.mrb[0].mxu0 %v1225
      %v2144 = vpop.f32.mrb[0].mxu0
      %v2145 = vadd.f32 %v1564, %v2144
      %v2146 = vpop.f32.mrb[0].mxu0
      %v2147 = vpop.f32.mrb[0].mxu0
      %v2148 = vadd.f32 %v1564, %v2147
      %v2149 = vpop.f32.mrb[0].mxu0
      %2150 = vmatprep.mubr.bf16.mxu0 %v1298
      %2151 = vmatmul.mubr.bf16.gmra.mrb[0].mxu0 %v1226
      %v2152 = vpop.f32.mrb[0].mxu0
      %v2153 = vadd.f32 %v1564, %v2152
      %v2154 = vpop.f32.mrb[0].mxu0
      %v2155 = vpop.f32.mrb[0].mxu0
      %v2156 = vadd.f32 %v1564, %v2155
      %v2157 = vpop.f32.mrb[0].mxu0
      %2158 = vmatprep.mubr.bf16.mxu0 %v1299
      %2159 = vmatmul.mubr.bf16.gmra.mrb[0].mxu0 %v1227
      %v2160 = vpop.f32.mrb[0].mxu0
      %v2161 = vadd.f32 %v1564, %v2160
      %v2162 = vpop.f32.mrb[0].mxu0
      %v2163 = vpop.f32.mrb[0].mxu0
      %v2164 = vadd.f32 %v1564, %v2163
      %v2165 = vpop.f32.mrb[0].mxu0
      %2166 = vmatprep.mubr.bf16.mxu0 %v1300
      %2167 = vmatmul.mubr.bf16.gmra.mrb[0].mxu0 %v1228
      %v2168 = vpop.f32.mrb[0].mxu0
      %v2169 = vadd.f32 %v1564, %v2168
      %v2170 = vpop.f32.mrb[0].mxu0
      %v2171 = vpop.f32.mrb[0].mxu0
      %v2172 = vadd.f32 %v1564, %v2171
      %v2173 = vpop.f32.mrb[0].mxu0
      %2174 = vdwg.mxu0
      %2175 = vmatprep.subr.bf16.mxu0 0
      %2176 = vmatpush1.bf16.msra.mxu0 %v1870
      %2177 = vmatprep.subr.bf16.mxu0 0
      %2178 = vmatpush1.bf16.msra.mxu0 %v1871
      %2179 = vmatprep.subr.bf16.mxu0 0
      %2180 = vmatpush1.bf16.msra.mxu0 %v1872
      %2181 = vmatprep.subr.bf16.mxu0 0
      %2182 = vmatpush1.bf16.msra.mxu0 %v1873
      %2183 = vmatprep.subr.bf16.mxu0 0
      %2184 = vmatpush1.bf16.msra.mxu0 %v1874
      %2185 = vmatprep.subr.bf16.mxu0 0
      %2186 = vmatpush1.bf16.msra.mxu0 %v1875
      %2187 = vmatprep.subr.bf16.mxu0 0
      %2188 = vmatpush1.bf16.msra.mxu0 %v1876
      %2189 = vmatprep.subr.bf16.mxu0 0
      %2190 = vmatpush1.bf16.msra.mxu0 %v1877
      %2191 = vmatprep.subr.bf16.mxu0 0
      %2192 = vmatpush1.bf16.msra.mxu0 %v1878
      %2193 = vmatprep.subr.bf16.mxu0 0
      %2194 = vmatpush1.bf16.msra.mxu0 %v1879
      %2195 = vmatprep.subr.bf16.mxu0 0
      %2196 = vmatpush1.bf16.msra.mxu0 %v1880
      %2197 = vmatprep.subr.bf16.mxu0 0
      %2198 = vmatpush1.bf16.msra.mxu0 %v1881
      %2199 = vmatprep.subr.bf16.mxu0 0
      %2200 = vmatpush1.bf16.msra.mxu0 %v1882
      %2201 = vmatprep.subr.bf16.mxu0 0
      %2202 = vmatpush1.bf16.msra.mxu0 %v1883
      %2203 = vmatprep.subr.bf16.mxu0 0
      %2204 = vmatpush1.bf16.msra.mxu0 %v1884
      %2205 = vmatprep.subr.bf16.mxu0 0
      %2206 = vmatpush1.bf16.msra.mxu0 %v1885
      %2207 = vmatprep.mubr.bf16.mxu0 %v1212
      %2208 = vmatmul.mubr.bf16.gmra.mrb[0].mxu0 %v1355
      %v2209 = vpop.f32.mrb[0].mxu0
      %v2210 = vadd.f32 %v2033, %v2209
      %v2211 = vpop.f32.mrb[0].mxu0
      %v2212 = vpop.f32.mrb[0].mxu0
      %v2213 = vadd.f32 %v2036, %v2212
      %v2214 = vpop.f32.mrb[0].mxu0
      %2215 = vmatprep.mubr.bf16.mxu0 %v1213
      %2216 = vmatmul.mubr.bf16.gmra.mrb[0].mxu0 %v1356
      %v2217 = vpop.f32.mrb[0].mxu0
      %v2218 = vadd.f32 %v2041, %v2217
      %v2219 = vpop.f32.mrb[0].mxu0
      %v2220 = vpop.f32.mrb[0].mxu0
      %v2221 = vadd.f32 %v2044, %v2220
      %v2222 = vpop.f32.mrb[0].mxu0
      %2223 = vmatprep.mubr.bf16.mxu0 %v1214
      %2224 = vmatmul.mubr.bf16.gmra.mrb[0].mxu0 %v1357
      %v2225 = vpop.f32.mrb[0].mxu0
      %v2226 = vadd.f32 %v2049, %v2225
      %v2227 = vpop.f32.mrb[0].mxu0
      %v2228 = vpop.f32.mrb[0].mxu0
      %v2229 = vadd.f32 %v2052, %v2228
      %v2230 = vpop.f32.mrb[0].mxu0
      %2231 = vmatprep.mubr.bf16.mxu0 %v1215
      %2232 = vmatmul.mubr.bf16.gmra.mrb[0].mxu0 %v1358
      %v2233 = vpop.f32.mrb[0].mxu0
      %v2234 = vadd.f32 %v2057, %v2233
      %v2235 = vpop.f32.mrb[0].mxu0
      %v2236 = vpop.f32.mrb[0].mxu0
      %v2237 = vadd.f32 %v2060, %v2236
      %v2238 = vpop.f32.mrb[0].mxu0
      %2239 = vmatprep.mubr.bf16.mxu0 %v1216
      %2240 = vmatmul.mubr.bf16.gmra.mrb[0].mxu0 %v1359
      %v2241 = vpop.f32.mrb[0].mxu0
      %v2242 = vadd.f32 %v2065, %v2241
      %v2243 = vpop.f32.mrb[0].mxu0
      %v2244 = vpop.f32.mrb[0].mxu0
      %v2245 = vadd.f32 %v2068, %v2244
      %v2246 = vpop.f32.mrb[0].mxu0
      %2247 = vmatprep.mubr.bf16.mxu0 %v1217
      %2248 = vmatmul.mubr.bf16.gmra.mrb[0].mxu0 %v1360
      %v2249 = vpop.f32.mrb[0].mxu0
      %v2250 = vadd.f32 %v2073, %v2249
      %v2251 = vpop.f32.mrb[0].mxu0
      %v2252 = vpop.f32.mrb[0].mxu0
      %v2253 = vadd.f32 %v2076, %v2252
      %v2254 = vpop.f32.mrb[0].mxu0
      %2255 = vmatprep.mubr.bf16.mxu0 %v1218
      %2256 = vmatmul.mubr.bf16.gmra.mrb[0].mxu0 %v1361
      %v2257 = vpop.f32.mrb[0].mxu0
      %v2258 = vadd.f32 %v2081, %v2257
      %v2259 = vpop.f32.mrb[0].mxu0
      %v2260 = vpop.f32.mrb[0].mxu0
      %v2261 = vadd.f32 %v2084, %v2260
      %v2262 = vpop.f32.mrb[0].mxu0
      %2263 = vmatprep.mubr.bf16.mxu0 %v1219
      %2264 = vmatmul.mubr.bf16.gmra.mrb[0].mxu0 %v1362
      %v2265 = vpop.f32.mrb[0].mxu0
      %v2266 = vadd.f32 %v2089, %v2265
      %v2267 = vpop.f32.mrb[0].mxu0
      %v2268 = vpop.f32.mrb[0].mxu0
      %v2269 = vadd.f32 %v2092, %v2268
      %v2270 = vpop.f32.mrb[0].mxu0
      %2271 = vmatprep.mubr.bf16.mxu0 %v1220
      %2272 = vmatmul.mubr.bf16.gmra.mrb[0].mxu0 %v1363
      %v2273 = vpop.f32.mrb[0].mxu0
      %v2274 = vadd.f32 %v2097, %v2273
      %v2275 = vpop.f32.mrb[0].mxu0
      %v2276 = vpop.f32.mrb[0].mxu0
      %v2277 = vadd.f32 %v2100, %v2276
      %v2278 = vpop.f32.mrb[0].mxu0
      %2279 = vmatprep.mubr.bf16.mxu0 %v1221
      %2280 = vmatmul.mubr.bf16.gmra.mrb[0].mxu0 %v1364
      %v2281 = vpop.f32.mrb[0].mxu0
      %v2282 = vadd.f32 %v2105, %v2281
      %v2283 = vpop.f32.mrb[0].mxu0
      %v2284 = vpop.f32.mrb[0].mxu0
      %v2285 = vadd.f32 %v2108, %v2284
      %v2286 = vpop.f32.mrb[0].mxu0
      %2287 = vmatprep.mubr.bf16.mxu0 %v1222
      %2288 = vmatmul.mubr.bf16.gmra.mrb[0].mxu0 %v1365
      %v2289 = vpop.f32.mrb[0].mxu0
      %v2290 = vadd.f32 %v2113, %v2289
      %v2291 = vpop.f32.mrb[0].mxu0
      %v2292 = vpop.f32.mrb[0].mxu0
      %v2293 = vadd.f32 %v2116, %v2292
      %v2294 = vpop.f32.mrb[0].mxu0
      %2295 = vmatprep.mubr.bf16.mxu0 %v1223
      %2296 = vmatmul.mubr.bf16.gmra.mrb[0].mxu0 %v1366
      %v2297 = vpop.f32.mrb[0].mxu0
      %v2298 = vadd.f32 %v2121, %v2297
      %v2299 = vpop.f32.mrb[0].mxu0
      %v2300 = vpop.f32.mrb[0].mxu0
      %v2301 = vadd.f32 %v2124, %v2300
      %v2302 = vpop.f32.mrb[0].mxu0
      %2303 = vmatprep.mubr.bf16.mxu0 %v1224
      %2304 = vmatmul.mubr.bf16.gmra.mrb[0].mxu0 %v1367
      %v2305 = vpop.f32.mrb[0].mxu0
      %v2306 = vadd.f32 %v2129, %v2305
      %v2307 = vpop.f32.mrb[0].mxu0
      %v2308 = vpop.f32.mrb[0].mxu0
      %v2309 = vadd.f32 %v2132, %v2308
      %v2310 = vpop.f32.mrb[0].mxu0
      %2311 = vmatprep.mubr.bf16.mxu0 %v1225
      %2312 = vmatmul.mubr.bf16.gmra.mrb[0].mxu0 %v1368
      %v2313 = vpop.f32.mrb[0].mxu0
      %v2314 = vadd.f32 %v2137, %v2313
      %v2315 = vpop.f32.mrb[0].mxu0
      %v2316 = vpop.f32.mrb[0].mxu0
      %v2317 = vadd.f32 %v2140, %v2316
      %v2318 = vpop.f32.mrb[0].mxu0
      %2319 = vmatprep.mubr.bf16.mxu0 %v1226
      %2320 = vmatmul.mubr.bf16.gmra.mrb[0].mxu0 %v1369
      %v2321 = vpop.f32.mrb[0].mxu0
      %v2322 = vadd.f32 %v2145, %v2321
      %v2323 = vpop.f32.mrb[0].mxu0
      %v2324 = vpop.f32.mrb[0].mxu0
      %v2325 = vadd.f32 %v2148, %v2324
      %v2326 = vpop.f32.mrb[0].mxu0
      %2327 = vmatprep.mubr.bf16.mxu0 %v1227
      %2328 = vmatmul.mubr.bf16.gmra.mrb[0].mxu0 %v1370
      %v2329 = vpop.f32.mrb[0].mxu0
      %v2330 = vadd.f32 %v2153, %v2329
      %v2331 = vpop.f32.mrb[0].mxu0
      %v2332 = vpop.f32.mrb[0].mxu0
      %v2333 = vadd.f32 %v2156, %v2332
      %v2334 = vpop.f32.mrb[0].mxu0
      %2335 = vmatprep.mubr.bf16.mxu0 %v1228
      %2336 = vmatmul.mubr.bf16.gmra.mrb[0].mxu0 %v1371
      %v2337 = vpop.f32.mrb[0].mxu0
      %v2338 = vadd.f32 %v2161, %v2337
      %v2339 = vpop.f32.mrb[0].mxu0
      %v2340 = vpop.f32.mrb[0].mxu0
      %v2341 = vadd.f32 %v2164, %v2340
      %v2342 = vpop.f32.mrb[0].mxu0
      %2343 = vmatprep.mubr.bf16.mxu0 %v1393
      %2344 = vmatmul.mubr.bf16.gmra.mrb[0].mxu0 %v1372
      %v2345 = vpop.f32.mrb[0].mxu0
      %v2346 = vadd.f32 %v2169, %v2345
      %v2347 = vpop.f32.mrb[0].mxu0
      %v2348 = vpop.f32.mrb[0].mxu0
      %v2349 = vadd.f32 %v2172, %v2348
      %v2350 = vpop.f32.mrb[0].mxu0
      %2351 = vdwg.mxu0
      %2352 = vmatprep.subr.bf16.mxu0 0
      %2353 = vmatpush1.bf16.msra.mxu0 %v1886
      %2354 = vmatprep.subr.bf16.mxu0 0
      %2355 = vmatpush1.bf16.msra.mxu0 %v1887
      %2356 = vmatprep.subr.bf16.mxu0 0
      %2357 = vmatpush1.bf16.msra.mxu0 %v1888
      %2358 = vmatprep.subr.bf16.mxu0 0
      %2359 = vmatpush1.bf16.msra.mxu0 %v1889
      %2360 = vmatprep.subr.bf16.mxu0 0
      %2361 = vmatpush1.bf16.msra.mxu0 %v1890
      %2362 = vmatprep.subr.bf16.mxu0 0
      %2363 = vmatpush1.bf16.msra.mxu0 %v1891
      %2364 = vmatprep.subr.bf16.mxu0 0
      %2365 = vmatpush1.bf16.msra.mxu0 %v1892
      %2366 = vmatprep.subr.bf16.mxu0 0
      %2367 = vmatpush1.bf16.msra.mxu0 %v1893
      %2368 = vmatprep.subr.bf16.mxu0 0
      %2369 = vmatpush1.bf16.msra.mxu0 %v1894
      %2370 = vmatprep.subr.bf16.mxu0 0
      %2371 = vmatpush1.bf16.msra.mxu0 %v1895
      %2372 = vmatprep.subr.bf16.mxu0 0
      %2373 = vmatpush1.bf16.msra.mxu0 %v1896
      %2374 = vmatprep.subr.bf16.mxu0 0
      %2375 = vmatpush1.bf16.msra.mxu0 %v1897
      %2376 = vmatprep.subr.bf16.mxu0 0
      %2377 = vmatpush1.bf16.msra.mxu0 %v1898
      %2378 = vmatprep.subr.bf16.mxu0 0
      %2379 = vmatpush1.bf16.msra.mxu0 %v1899
      %2380 = vmatprep.subr.bf16.mxu0 0
      %2381 = vmatpush1.bf16.msra.mxu0 %v1900
      %2382 = vmatprep.subr.bf16.mxu0 0
      %2383 = vmatpush1.bf16.msra.mxu0 %v1901
      %2384 = vmatprep.mubr.bf16.mxu0 %v1356
      %2385 = vmatmul.mubr.bf16.gmra.mrb[0].mxu0 %v1284
      %v2386 = vpop.f32.mrb[0].mxu0
      %v2387 = vadd.f32 %v2210, %v2386
      %v2388 = vpop.f32.mrb[0].mxu0
      %v2389 = vpop.f32.mrb[0].mxu0
      %v2390 = vadd.f32 %v2213, %v2389
      %v2391 = vpop.f32.mrb[0].mxu0
      %2392 = vmatprep.mubr.bf16.mxu0 %v1357
      %2393 = vmatmul.mubr.bf16.gmra.mrb[0].mxu0 %v1285
      %v2394 = vpop.f32.mrb[0].mxu0
      %v2395 = vadd.f32 %v2218, %v2394
      %v2396 = vpop.f32.mrb[0].mxu0
      %v2397 = vpop.f32.mrb[0].mxu0
      %v2398 = vadd.f32 %v2221, %v2397
      %v2399 = vpop.f32.mrb[0].mxu0
      %2400 = vmatprep.mubr.bf16.mxu0 %v1358
      %2401 = vmatmul.mubr.bf16.gmra.mrb[0].mxu0 %v1286
      %v2402 = vpop.f32.mrb[0].mxu0
      %v2403 = vadd.f32 %v2226, %v2402
      %v2404 = vpop.f32.mrb[0].mxu0
      %v2405 = vpop.f32.mrb[0].mxu0
      %v2406 = vadd.f32 %v2229, %v2405
      %v2407 = vpop.f32.mrb[0].mxu0
      %2408 = vmatprep.mubr.bf16.mxu0 %v1359
      %2409 = vmatmul.mubr.bf16.gmra.mrb[0].mxu0 %v1287
      %v2410 = vpop.f32.mrb[0].mxu0
      %v2411 = vadd.f32 %v2234, %v2410
      %v2412 = vpop.f32.mrb[0].mxu0
      %v2413 = vpop.f32.mrb[0].mxu0
      %v2414 = vadd.f32 %v2237, %v2413
      %v2415 = vpop.f32.mrb[0].mxu0
      %2416 = vmatprep.mubr.bf16.mxu0 %v1360
      %2417 = vmatmul.mubr.bf16.gmra.mrb[0].mxu0 %v1288
      %v2418 = vpop.f32.mrb[0].mxu0
      %v2419 = vadd.f32 %v2242, %v2418
      %v2420 = vpop.f32.mrb[0].mxu0
      %v2421 = vpop.f32.mrb[0].mxu0
      %v2422 = vadd.f32 %v2245, %v2421
      %v2423 = vpop.f32.mrb[0].mxu0
      %2424 = vmatprep.mubr.bf16.mxu0 %v1361
      %2425 = vmatmul.mubr.bf16.gmra.mrb[0].mxu0 %v1289
      %v2426 = vpop.f32.mrb[0].mxu0
      %v2427 = vadd.f32 %v2250, %v2426
      %v2428 = vpop.f32.mrb[0].mxu0
      %v2429 = vpop.f32.mrb[0].mxu0
      %v2430 = vadd.f32 %v2253, %v2429
      %v2431 = vpop.f32.mrb[0].mxu0
      %2432 = vmatprep.mubr.bf16.mxu0 %v1362
      %2433 = vmatmul.mubr.bf16.gmra.mrb[0].mxu0 %v1290
      %v2434 = vpop.f32.mrb[0].mxu0
      %v2435 = vadd.f32 %v2258, %v2434
      %v2436 = vpop.f32.mrb[0].mxu0
      %v2437 = vpop.f32.mrb[0].mxu0
      %v2438 = vadd.f32 %v2261, %v2437
      %v2439 = vpop.f32.mrb[0].mxu0
      %2440 = vmatprep.mubr.bf16.mxu0 %v1363
      %2441 = vmatmul.mubr.bf16.gmra.mrb[0].mxu0 %v1291
      %v2442 = vpop.f32.mrb[0].mxu0
      %v2443 = vadd.f32 %v2266, %v2442
      %v2444 = vpop.f32.mrb[0].mxu0
      %v2445 = vpop.f32.mrb[0].mxu0
      %v2446 = vadd.f32 %v2269, %v2445
      %v2447 = vpop.f32.mrb[0].mxu0
      %2448 = vmatprep.mubr.bf16.mxu0 %v1364
      %2449 = vmatmul.mubr.bf16.gmra.mrb[0].mxu0 %v1292
      %v2450 = vpop.f32.mrb[0].mxu0
      %v2451 = vadd.f32 %v2274, %v2450
      %v2452 = vpop.f32.mrb[0].mxu0
      %v2453 = vpop.f32.mrb[0].mxu0
      %v2454 = vadd.f32 %v2277, %v2453
      %v2455 = vpop.f32.mrb[0].mxu0
      %2456 = vmatprep.mubr.bf16.mxu0 %v1365
      %2457 = vmatmul.mubr.bf16.gmra.mrb[0].mxu0 %v1293
      %v2458 = vpop.f32.mrb[0].mxu0
      %v2459 = vadd.f32 %v2282, %v2458
      %v2460 = vpop.f32.mrb[0].mxu0
      %v2461 = vpop.f32.mrb[0].mxu0
      %v2462 = vadd.f32 %v2285, %v2461
      %v2463 = vpop.f32.mrb[0].mxu0
      %2464 = vmatprep.mubr.bf16.mxu0 %v1366
      %2465 = vmatmul.mubr.bf16.gmra.mrb[0].mxu0 %v1294
      %v2466 = vpop.f32.mrb[0].mxu0
      %v2467 = vadd.f32 %v2290, %v2466
      %v2468 = vpop.f32.mrb[0].mxu0
      %v2469 = vpop.f32.mrb[0].mxu0
      %v2470 = vadd.f32 %v2293, %v2469
      %v2471 = vpop.f32.mrb[0].mxu0
      %2472 = vmatprep.mubr.bf16.mxu0 %v1367
      %2473 = vmatmul.mubr.bf16.gmra.mrb[0].mxu0 %v1295
      %v2474 = vpop.f32.mrb[0].mxu0
      %v2475 = vadd.f32 %v2298, %v2474
      %v2476 = vpop.f32.mrb[0].mxu0
      %v2477 = vpop.f32.mrb[0].mxu0
      %v2478 = vadd.f32 %v2301, %v2477
      %v2479 = vpop.f32.mrb[0].mxu0
      %2480 = vmatprep.mubr.bf16.mxu0 %v1368
      %2481 = vmatmul.mubr.bf16.gmra.mrb[0].mxu0 %v1296
      %v2482 = vpop.f32.mrb[0].mxu0
      %v2483 = vadd.f32 %v2306, %v2482
      %v2484 = vpop.f32.mrb[0].mxu0
      %v2485 = vpop.f32.mrb[0].mxu0
      %v2486 = vadd.f32 %v2309, %v2485
      %v2487 = vpop.f32.mrb[0].mxu0
      %2488 = vmatprep.mubr.bf16.mxu0 %v1369
      %2489 = vmatmul.mubr.bf16.gmra.mrb[0].mxu0 %v1297
      %v2490 = vpop.f32.mrb[0].mxu0
      %v2491 = vadd.f32 %v2314, %v2490
      %v2492 = vpop.f32.mrb[0].mxu0
      %v2493 = vpop.f32.mrb[0].mxu0
      %v2494 = vadd.f32 %v2317, %v2493
      %v2495 = vpop.f32.mrb[0].mxu0
      %2496 = vmatprep.mubr.bf16.mxu0 %v1370
      %2497 = vmatmul.mubr.bf16.gmra.mrb[0].mxu0 %v1298
      %v2498 = vpop.f32.mrb[0].mxu0
      %v2499 = vadd.f32 %v2322, %v2498
      %v2500 = vpop.f32.mrb[0].mxu0
      %v2501 = vpop.f32.mrb[0].mxu0
      %v2502 = vadd.f32 %v2325, %v2501
      %v2503 = vpop.f32.mrb[0].mxu0
      %2504 = vmatprep.mubr.bf16.mxu0 %v1371
      %2505 = vmatmul.mubr.bf16.gmra.mrb[0].mxu0 %v1299
      %v2506 = vpop.f32.mrb[0].mxu0
      %v2507 = vadd.f32 %v2330, %v2506
      %v2508 = vpop.f32.mrb[0].mxu0
      %v2509 = vpop.f32.mrb[0].mxu0
      %v2510 = vadd.f32 %v2333, %v2509
      %v2511 = vpop.f32.mrb[0].mxu0
      %2512 = vmatprep.mubr.bf16.mxu0 %v1372
      %2513 = vmatmul.mubr.bf16.gmra.mrb[0].mxu0 %v1300
      %v2514 = vpop.f32.mrb[0].mxu0
      %v2515 = vadd.f32 %v2338, %v2514
      %v2516 = vpop.f32.mrb[0].mxu0
      %v2517 = vpop.f32.mrb[0].mxu0
      %v2518 = vadd.f32 %v2341, %v2517
      %v2519 = vpop.f32.mrb[0].mxu0
      %2520 = vmatprep.mubr.bf16.mxu0 %v1401
      %2521 = vmatmul.mubr.bf16.gmra.mrb[0].mxu0 %v1397
      %v2522 = vpop.f32.mrb[0].mxu0
      %v2523 = vadd.f32 %v2346, %v2522
      %v2524 = vpop.f32.mrb[0].mxu0
      %v2525 = vpop.f32.mrb[0].mxu0
      %v2526 = vadd.f32 %v2349, %v2525
      %v2527 = vpop.f32.mrb[0].mxu0
      %2528 = vdwg.mxu0
      %2529 = vmatprep.subr.bf16.mxu0 0
      %2530 = vmatpush1.bf16.msra.mxu0 %v1902
      %2531 = vmatprep.subr.bf16.mxu0 0
      %2532 = vmatpush1.bf16.msra.mxu0 %v1903
      %2533 = vmatprep.subr.bf16.mxu0 0
      %2534 = vmatpush1.bf16.msra.mxu0 %v1904
      %2535 = vmatprep.subr.bf16.mxu0 0
      %2536 = vmatpush1.bf16.msra.mxu0 %v1905
      %2537 = vmatprep.subr.bf16.mxu0 0
      %2538 = vmatpush1.bf16.msra.mxu0 %v1906
      %2539 = vmatprep.subr.bf16.mxu0 0
      %2540 = vmatpush1.bf16.msra.mxu0 %v1907
      %2541 = vmatprep.subr.bf16.mxu0 0
      %2542 = vmatpush1.bf16.msra.mxu0 %v1908
      %2543 = vmatprep.subr.bf16.mxu0 0
      %2544 = vmatpush1.bf16.msra.mxu0 %v1909
      %2545 = vmatprep.subr.bf16.mxu0 0
      %2546 = vmatpush1.bf16.msra.mxu0 %v1910
      %2547 = vmatprep.subr.bf16.mxu0 0
      %2548 = vmatpush1.bf16.msra.mxu0 %v1911
      %2549 = vmatprep.subr.bf16.mxu0 0
      %2550 = vmatpush1.bf16.msra.mxu0 %v1912
      %2551 = vmatprep.subr.bf16.mxu0 0
      %2552 = vmatpush1.bf16.msra.mxu0 %v1913
      %2553 = vmatprep.subr.bf16.mxu0 0
      %2554 = vmatpush1.bf16.msra.mxu0 %v1914
      %2555 = vmatprep.subr.bf16.mxu0 0
      %2556 = vmatpush1.bf16.msra.mxu0 %v1915
      %2557 = vmatprep.subr.bf16.mxu0 0
      %2558 = vmatpush1.bf16.msra.mxu0 %v1916
      %2559 = vmatprep.subr.bf16.mxu0 0
      %2560 = vmatpush1.bf16.msra.mxu0 %v1917
      %2561 = vmatprep.mubr.bf16.mxu0 %v1285
      %2562 = vmatmul.mubr.bf16.gmra.mrb[0].mxu0 %v1213
      %v2563 = vpop.f32.mrb[0].mxu0
      %v2564 = vadd.f32 %v2387, %v2563
      %v2565 = vpop.f32.mrb[0].mxu0
      %v2566 = vpop.f32.mrb[0].mxu0
      %v2567 = vadd.f32 %v2390, %v2566
      %v2568 = vpop.f32.mrb[0].mxu0
      %2569 = vmatprep.mubr.bf16.mxu0 %v1286
      %2570 = vmatmul.mubr.bf16.gmra.mrb[0].mxu0 %v1214
      %v2571 = vpop.f32.mrb[0].mxu0
      %v2572 = vadd.f32 %v2395, %v2571
      %v2573 = vpop.f32.mrb[0].mxu0
      %v2574 = vpop.f32.mrb[0].mxu0
      %v2575 = vadd.f32 %v2398, %v2574
      %v2576 = vpop.f32.mrb[0].mxu0
      %2577 = vmatprep.mubr.bf16.mxu0 %v1287
      %2578 = vmatmul.mubr.bf16.gmra.mrb[0].mxu0 %v1215
      %v2579 = vpop.f32.mrb[0].mxu0
      %v2580 = vadd.f32 %v2403, %v2579
      %v2581 = vpop.f32.mrb[0].mxu0
      %v2582 = vpop.f32.mrb[0].mxu0
      %v2583 = vadd.f32 %v2406, %v2582
      %v2584 = vpop.f32.mrb[0].mxu0
      %2585 = vmatprep.mubr.bf16.mxu0 %v1288
      %2586 = vmatmul.mubr.bf16.gmra.mrb[0].mxu0 %v1216
      %v2587 = vpop.f32.mrb[0].mxu0
      %v2588 = vadd.f32 %v2411, %v2587
      %v2589 = vpop.f32.mrb[0].mxu0
      %v2590 = vpop.f32.mrb[0].mxu0
      %v2591 = vadd.f32 %v2414, %v2590
      %v2592 = vpop.f32.mrb[0].mxu0
      %2593 = vmatprep.mubr.bf16.mxu0 %v1289
      %2594 = vmatmul.mubr.bf16.gmra.mrb[0].mxu0 %v1217
      %v2595 = vpop.f32.mrb[0].mxu0
      %v2596 = vadd.f32 %v2419, %v2595
      %v2597 = vpop.f32.mrb[0].mxu0
      %v2598 = vpop.f32.mrb[0].mxu0
      %v2599 = vadd.f32 %v2422, %v2598
      %v2600 = vpop.f32.mrb[0].mxu0
      %2601 = vmatprep.mubr.bf16.mxu0 %v1290
      %2602 = vmatmul.mubr.bf16.gmra.mrb[0].mxu0 %v1218
      %v2603 = vpop.f32.mrb[0].mxu0
      %v2604 = vadd.f32 %v2427, %v2603
      %v2605 = vpop.f32.mrb[0].mxu0
      %v2606 = vpop.f32.mrb[0].mxu0
      %v2607 = vadd.f32 %v2430, %v2606
      %v2608 = vpop.f32.mrb[0].mxu0
      %2609 = vmatprep.mubr.bf16.mxu0 %v1291
      %2610 = vmatmul.mubr.bf16.gmra.mrb[0].mxu0 %v1219
      %v2611 = vpop.f32.mrb[0].mxu0
      %v2612 = vadd.f32 %v2435, %v2611
      %v2613 = vpop.f32.mrb[0].mxu0
      %v2614 = vpop.f32.mrb[0].mxu0
      %v2615 = vadd.f32 %v2438, %v2614
      %v2616 = vpop.f32.mrb[0].mxu0
      %2617 = vmatprep.mubr.bf16.mxu0 %v1292
      %2618 = vmatmul.mubr.bf16.gmra.mrb[0].mxu0 %v1220
      %v2619 = vpop.f32.mrb[0].mxu0
      %v2620 = vadd.f32 %v2443, %v2619
      %v2621 = vpop.f32.mrb[0].mxu0
      %v2622 = vpop.f32.mrb[0].mxu0
      %v2623 = vadd.f32 %v2446, %v2622
      %v2624 = vpop.f32.mrb[0].mxu0
      %2625 = vmatprep.mubr.bf16.mxu0 %v1293
      %2626 = vmatmul.mubr.bf16.gmra.mrb[0].mxu0 %v1221
      %v2627 = vpop.f32.mrb[0].mxu0
      %v2628 = vadd.f32 %v2451, %v2627
      %v2629 = vpop.f32.mrb[0].mxu0
      %v2630 = vpop.f32.mrb[0].mxu0
      %v2631 = vadd.f32 %v2454, %v2630
      %v2632 = vpop.f32.mrb[0].mxu0
      %2633 = vmatprep.mubr.bf16.mxu0 %v1294
      %2634 = vmatmul.mubr.bf16.gmra.mrb[0].mxu0 %v1222
      %v2635 = vpop.f32.mrb[0].mxu0
      %v2636 = vadd.f32 %v2459, %v2635
      %v2637 = vpop.f32.mrb[0].mxu0
      %v2638 = vpop.f32.mrb[0].mxu0
      %v2639 = vadd.f32 %v2462, %v2638
      %v2640 = vpop.f32.mrb[0].mxu0
      %2641 = vmatprep.mubr.bf16.mxu0 %v1295
      %2642 = vmatmul.mubr.bf16.gmra.mrb[0].mxu0 %v1223
      %v2643 = vpop.f32.mrb[0].mxu0
      %v2644 = vadd.f32 %v2467, %v2643
      %v2645 = vpop.f32.mrb[0].mxu0
      %v2646 = vpop.f32.mrb[0].mxu0
      %v2647 = vadd.f32 %v2470, %v2646
      %v2648 = vpop.f32.mrb[0].mxu0
      %2649 = vmatprep.mubr.bf16.mxu0 %v1296
      %2650 = vmatmul.mubr.bf16.gmra.mrb[0].mxu0 %v1224
      %v2651 = vpop.f32.mrb[0].mxu0
      %v2652 = vadd.f32 %v2475, %v2651
      %v2653 = vpop.f32.mrb[0].mxu0
      %v2654 = vpop.f32.mrb[0].mxu0
      %v2655 = vadd.f32 %v2478, %v2654
      %v2656 = vpop.f32.mrb[0].mxu0
      %2657 = vmatprep.mubr.bf16.mxu0 %v1297
      %2658 = vmatmul.mubr.bf16.gmra.mrb[0].mxu0 %v1225
      %v2659 = vpop.f32.mrb[0].mxu0
      %v2660 = vadd.f32 %v2483, %v2659
      %v2661 = vpop.f32.mrb[0].mxu0
      %v2662 = vpop.f32.mrb[0].mxu0
      %v2663 = vadd.f32 %v2486, %v2662
      %v2664 = vpop.f32.mrb[0].mxu0
      %2665 = vmatprep.mubr.bf16.mxu0 %v1298
      %2666 = vmatmul.mubr.bf16.gmra.mrb[0].mxu0 %v1226
      %v2667 = vpop.f32.mrb[0].mxu0
      %v2668 = vadd.f32 %v2491, %v2667
      %v2669 = vpop.f32.mrb[0].mxu0
      %v2670 = vpop.f32.mrb[0].mxu0
      %v2671 = vadd.f32 %v2494, %v2670
      %v2672 = vpop.f32.mrb[0].mxu0
      %2673 = vmatprep.mubr.bf16.mxu0 %v1299
      %2674 = vmatmul.mubr.bf16.gmra.mrb[0].mxu0 %v1227
      %v2675 = vpop.f32.mrb[0].mxu0
      %v2676 = vadd.f32 %v2499, %v2675
      %v2677 = vpop.f32.mrb[0].mxu0
      %v2678 = vpop.f32.mrb[0].mxu0
      %v2679 = vadd.f32 %v2502, %v2678
      %v2680 = vpop.f32.mrb[0].mxu0
      %2681 = vmatprep.mubr.bf16.mxu0 %v1300
      %2682 = vmatmul.mubr.bf16.gmra.mrb[0].mxu0 %v1228
      %v2683 = vpop.f32.mrb[0].mxu0
      %v2684 = vadd.f32 %v2507, %v2683
      %v2685 = vpop.f32.mrb[0].mxu0
      %v2686 = vpop.f32.mrb[0].mxu0
      %v2687 = vadd.f32 %v2510, %v2686
      %v2688 = vpop.f32.mrb[0].mxu0
      %2689 = vmatprep.mubr.bf16.mxu0 %v1397
      %2690 = vmatmul.mubr.bf16.gmra.mrb[0].mxu0 %v1393
      %v2691 = vpop.f32.mrb[0].mxu0
      %v2692 = vadd.f32 %v2515, %v2691
      %v2693 = vpop.f32.mrb[0].mxu0
      %v2694 = vpop.f32.mrb[0].mxu0
      %v2695 = vadd.f32 %v2518, %v2694
      %v2696 = vpop.f32.mrb[0].mxu0
      %2697 = vmatprep.mubr.bf16.mxu0 %v1409
      %2698 = vmatmul.mubr.bf16.gmra.mrb[0].mxu0 %v1405
      %v2699 = vpop.f32.mrb[0].mxu0
      %v2700 = vadd.f32 %v2523, %v2699
      %v2701 = vpop.f32.mrb[0].mxu0
      %v2702 = vpop.f32.mrb[0].mxu0
      %v2703 = vadd.f32 %v2526, %v2702
      %v2704 = vpop.f32.mrb[0].mxu0
      %2705 = vdwg.mxu0
      %2706 = vmatprep.subr.bf16.mxu0 0
      %2707 = vmatpush1.bf16.msra.mxu0 %v1918
      %2708 = vmatprep.subr.bf16.mxu0 0
      %2709 = vmatpush1.bf16.msra.mxu0 %v1919
      %2710 = vmatprep.subr.bf16.mxu0 0
      %2711 = vmatpush1.bf16.msra.mxu0 %v1920
      %2712 = vmatprep.subr.bf16.mxu0 0
      %2713 = vmatpush1.bf16.msra.mxu0 %v1921
      %2714 = vmatprep.subr.bf16.mxu0 0
      %2715 = vmatpush1.bf16.msra.mxu0 %v1922
      %2716 = vmatprep.subr.bf16.mxu0 0
      %2717 = vmatpush1.bf16.msra.mxu0 %v1923
      %2718 = vmatprep.subr.bf16.mxu0 0
      %2719 = vmatpush1.bf16.msra.mxu0 %v1924
      %2720 = vmatprep.subr.bf16.mxu0 0
      %2721 = vmatpush1.bf16.msra.mxu0 %v1925
      %2722 = vmatprep.subr.bf16.mxu0 0
      %2723 = vmatpush1.bf16.msra.mxu0 0
      %2724 = vmatprep.subr.bf16.mxu0 0
      %2725 = vmatpush1.bf16.msra.mxu0 0
      %2726 = vmatprep.subr.bf16.mxu0 0
      %2727 = vmatpush1.bf16.msra.mxu0 0
      %2728 = vmatprep.subr.bf16.mxu0 0
      %2729 = vmatpush1.bf16.msra.mxu0 0
      %2730 = vmatprep.subr.bf16.mxu0 0
      %2731 = vmatpush1.bf16.msra.mxu0 0
      %2732 = vmatprep.subr.bf16.mxu0 0
      %2733 = vmatpush1.bf16.msra.mxu0 0
      %2734 = vmatprep.subr.bf16.mxu0 0
      %2735 = vmatpush1.bf16.msra.mxu0 0
      %2736 = vmatprep.subr.bf16.mxu0 0
      %2737 = vmatpush1.bf16.msra.mxu0 0
      %2738 = vmatprep.mubr.bf16.mxu0 0
      %2739 = vmatmul.mubr.bf16.gmra.mrb[0].mxu0 %v1357
      %v2740 = vpop.f32.mrb[0].mxu0
      %v2741 = vadd.f32 %v2564, %v2740
      %v2742 = vpop.f32.mrb[0].mxu0
      %v2743 = vpop.f32.mrb[0].mxu0
      %v2744 = vadd.f32 %v2567, %v2743
      %v2745 = vpop.f32.mrb[0].mxu0
      %2746 = vmatprep.mubr.bf16.mxu0 0
      %2747 = vmatmul.mubr.bf16.gmra.mrb[0].mxu0 %v1358
      %v2748 = vpop.f32.mrb[0].mxu0
      %v2749 = vadd.f32 %v2572, %v2748
      %v2750 = vpop.f32.mrb[0].mxu0
      %v2751 = vpop.f32.mrb[0].mxu0
      %v2752 = vadd.f32 %v2575, %v2751
      %v2753 = vpop.f32.mrb[0].mxu0
      %2754 = vmatprep.mubr.bf16.mxu0 0
      %2755 = vmatmul.mubr.bf16.gmra.mrb[0].mxu0 %v1359
      %v2756 = vpop.f32.mrb[0].mxu0
      %v2757 = vadd.f32 %v2580, %v2756
      %v2758 = vpop.f32.mrb[0].mxu0
      %v2759 = vpop.f32.mrb[0].mxu0
      %v2760 = vadd.f32 %v2583, %v2759
      %v2761 = vpop.f32.mrb[0].mxu0
      %2762 = vmatprep.mubr.bf16.mxu0 0
      %2763 = vmatmul.mubr.bf16.gmra.mrb[0].mxu0 %v1360
      %v2764 = vpop.f32.mrb[0].mxu0
      %v2765 = vadd.f32 %v2588, %v2764
      %v2766 = vpop.f32.mrb[0].mxu0
      %v2767 = vpop.f32.mrb[0].mxu0
      %v2768 = vadd.f32 %v2591, %v2767
      %v2769 = vpop.f32.mrb[0].mxu0
      %2770 = vmatprep.mubr.bf16.mxu0 0
      %2771 = vmatmul.mubr.bf16.gmra.mrb[0].mxu0 %v1361
      %v2772 = vpop.f32.mrb[0].mxu0
      %v2773 = vadd.f32 %v2596, %v2772
      %v2774 = vpop.f32.mrb[0].mxu0
      %v2775 = vpop.f32.mrb[0].mxu0
      %v2776 = vadd.f32 %v2599, %v2775
      %v2777 = vpop.f32.mrb[0].mxu0
      %2778 = vmatprep.mubr.bf16.mxu0 0
      %2779 = vmatmul.mubr.bf16.gmra.mrb[0].mxu0 %v1362
      %v2780 = vpop.f32.mrb[0].mxu0
      %v2781 = vadd.f32 %v2604, %v2780
      %v2782 = vpop.f32.mrb[0].mxu0
      %v2783 = vpop.f32.mrb[0].mxu0
      %v2784 = vadd.f32 %v2607, %v2783
      %v2785 = vpop.f32.mrb[0].mxu0
      %2786 = vmatprep.mubr.bf16.mxu0 0
      %2787 = vmatmul.mubr.bf16.gmra.mrb[0].mxu0 %v1363
      %v2788 = vpop.f32.mrb[0].mxu0
      %v2789 = vadd.f32 %v2612, %v2788
      %v2790 = vpop.f32.mrb[0].mxu0
      %v2791 = vpop.f32.mrb[0].mxu0
      %v2792 = vadd.f32 %v2615, %v2791
      %v2793 = vpop.f32.mrb[0].mxu0
      %2794 = vmatprep.mubr.bf16.mxu0 0
      %2795 = vmatmul.mubr.bf16.gmra.mrb[0].mxu0 %v1364
      %v2796 = vpop.f32.mrb[0].mxu0
      %v2797 = vadd.f32 %v2620, %v2796
      %v2798 = vpop.f32.mrb[0].mxu0
      %v2799 = vpop.f32.mrb[0].mxu0
      %v2800 = vadd.f32 %v2623, %v2799
      %v2801 = vpop.f32.mrb[0].mxu0
      %2802 = vmatprep.mubr.bf16.mxu0 0
      %2803 = vmatmul.mubr.bf16.gmra.mrb[0].mxu0 %v1365
      %v2804 = vpop.f32.mrb[0].mxu0
      %v2805 = vadd.f32 %v2628, %v2804
      %v2806 = vpop.f32.mrb[0].mxu0
      %v2807 = vpop.f32.mrb[0].mxu0
      %v2808 = vadd.f32 %v2631, %v2807
      %v2809 = vpop.f32.mrb[0].mxu0
      %2810 = vmatprep.mubr.bf16.mxu0 0
      %2811 = vmatmul.mubr.bf16.gmra.mrb[0].mxu0 %v1366
      %v2812 = vpop.f32.mrb[0].mxu0
      %v2813 = vadd.f32 %v2636, %v2812
      %v2814 = vpop.f32.mrb[0].mxu0
      %v2815 = vpop.f32.mrb[0].mxu0
      %v2816 = vadd.f32 %v2639, %v2815
      %v2817 = vpop.f32.mrb[0].mxu0
      %2818 = vmatprep.mubr.bf16.mxu0 0
      %2819 = vmatmul.mubr.bf16.gmra.mrb[0].mxu0 %v1367
      %v2820 = vpop.f32.mrb[0].mxu0
      %v2821 = vadd.f32 %v2644, %v2820
      %v2822 = vpop.f32.mrb[0].mxu0
      %v2823 = vpop.f32.mrb[0].mxu0
      %v2824 = vadd.f32 %v2647, %v2823
      %v2825 = vpop.f32.mrb[0].mxu0
      %2826 = vmatprep.mubr.bf16.mxu0 0
      %2827 = vmatmul.mubr.bf16.gmra.mrb[0].mxu0 %v1368
      %v2828 = vpop.f32.mrb[0].mxu0
      %v2829 = vadd.f32 %v2652, %v2828
      %v2830 = vpop.f32.mrb[0].mxu0
      %v2831 = vpop.f32.mrb[0].mxu0
      %v2832 = vadd.f32 %v2655, %v2831
      %v2833 = vpop.f32.mrb[0].mxu0
      %2834 = vmatprep.mubr.bf16.mxu0 0
      %2835 = vmatmul.mubr.bf16.gmra.mrb[0].mxu0 %v1369
      %v2836 = vpop.f32.mrb[0].mxu0
      %v2837 = vadd.f32 %v2660, %v2836
      %v2838 = vpop.f32.mrb[0].mxu0
      %v2839 = vpop.f32.mrb[0].mxu0
      %v2840 = vadd.f32 %v2663, %v2839
      %v2841 = vpop.f32.mrb[0].mxu0
      %2842 = vmatprep.mubr.bf16.mxu0 0
      %2843 = vmatmul.mubr.bf16.gmra.mrb[0].mxu0 %v1370
      %v2844 = vpop.f32.mrb[0].mxu0
      %v2845 = vadd.f32 %v2668, %v2844
      %v2846 = vpop.f32.mrb[0].mxu0
      %v2847 = vpop.f32.mrb[0].mxu0
      %v2848 = vadd.f32 %v2671, %v2847
      %v2849 = vpop.f32.mrb[0].mxu0
      %2850 = vmatprep.mubr.bf16.mxu0 0
      %2851 = vmatmul.mubr.bf16.gmra.mrb[0].mxu0 %v1371
      %v2852 = vpop.f32.mrb[0].mxu0
      %v2853 = vadd.f32 %v2676, %v2852
      %v2854 = vpop.f32.mrb[0].mxu0
      %v2855 = vpop.f32.mrb[0].mxu0
      %v2856 = vadd.f32 %v2679, %v2855
      %v2857 = vpop.f32.mrb[0].mxu0
      %2858 = vmatprep.mubr.bf16.mxu0 0
      %2859 = vmatmul.mubr.bf16.gmra.mrb[0].mxu0 %v1372
      %v2860 = vpop.f32.mrb[0].mxu0
      %v2861 = vadd.f32 %v2684, %v2860
      %v2862 = vpop.f32.mrb[0].mxu0
      %v2863 = vpop.f32.mrb[0].mxu0
      %v2864 = vadd.f32 %v2687, %v2863
      %v2865 = vpop.f32.mrb[0].mxu0
      %2866 = vmatprep.mubr.bf16.mxu0 0
      %2867 = vmatmul.mubr.bf16.gmra.mrb[0].mxu0 %v1401
      %v2868 = vpop.f32.mrb[0].mxu0
      %v2869 = vadd.f32 %v2692, %v2868
      %v2870 = vpop.f32.mrb[0].mxu0
      %v2871 = vpop.f32.mrb[0].mxu0
      %v2872 = vadd.f32 %v2695, %v2871
      %v2873 = vpop.f32.mrb[0].mxu0
      %2874 = vmatprep.mubr.bf16.mxu0 0
      %2875 = vmatmul.mubr.bf16.gmra.mrb[0].mxu0 %v1413
      %v2876 = vpop.f32.mrb[0].mxu0
      %v2877 = vadd.f32 %v2700, %v2876
      %v2878 = vpop.f32.mrb[0].mxu0
      %v2879 = vpop.f32.mrb[0].mxu0
      %v2880 = vadd.f32 %v2703, %v2879
      %v2881 = vpop.f32.mrb[0].mxu0
      %2882 = vdwg.mxu0
      %v2883 = vmax.f32 %v2741, 0.0
      %v2884 = vmax.f32 %v2744, 0.0
      %v2885 = vmax.f32 %v2749, 0.0
      %v2886 = vmax.f32 %v2752, 0.0
      %v2887 = vmax.f32 %v2757, 0.0
      %v2888 = vmax.f32 %v2760, 0.0
      %v2889 = vmax.f32 %v2765, 0.0
      %v2890 = vmax.f32 %v2768, 0.0
      %v2891 = vmax.f32 %v2773, 0.0
      %v2892 = vmax.f32 %v2776, 0.0
      %v2893 = vmax.f32 %v2781, 0.0
      %v2894 = vmax.f32 %v2784, 0.0
      %v2895 = vmax.f32 %v2789, 0.0
      %v2896 = vmax.f32 %v2792, 0.0
      %v2897 = vmax.f32 %v2797, 0.0
      %v2898 = vmax.f32 %v2800, 0.0
      %v2899 = vmax.f32 %v2805, 0.0
      %v2900 = vmax.f32 %v2808, 0.0
      %v2901 = vmax.f32 %v2813, 0.0
      %v2902 = vmax.f32 %v2816, 0.0
      %v2903 = vmax.f32 %v2821, 0.0
      %v2904 = vmax.f32 %v2824, 0.0
      %v2905 = vmax.f32 %v2829, 0.0
      %v2906 = vmax.f32 %v2832, 0.0
      %v2907 = vmax.f32 %v2837, 0.0
      %v2908 = vmax.f32 %v2840, 0.0
      %v2909 = vmax.f32 %v2845, 0.0
      %v2910 = vmax.f32 %v2848, 0.0
      %v2911 = vmax.f32 %v2853, 0.0
      %v2912 = vmax.f32 %v2856, 0.0
      %v2913 = vmax.f32 %v2861, 0.0
      %v2914 = vmax.f32 %v2864, 0.0
      %v2915 = vmax.f32 %v2869, 0.0
      %v2916 = vmax.f32 %v2872, 0.0
      %v2917 = vmax.f32 %v2877, 0.0
      %v2918 = vmax.f32 %v2880, 0.0
      %s2919 = smul.u32 %s24, 16
      %s2920 = ssub.s32 %s2919, 1
      %v2921 = vstv %s2920
      %v2922 = vadd.s32 %v2921, 1
      %v2923 = vadd.s32 %v2921, 2
      %v2924 = vadd.s32 %v2921, 3
      %v2925 = vadd.s32 %v2921, 4
      %v2926 = vadd.s32 %v2921, 5
      %v2927 = vadd.s32 %v2921, 6
      %v2928 = vadd.s32 %v2921, 7
      %v2929 = vadd.s32 %v2921, 8
      %v2930 = vadd.s32 %v2921, 9
      %v2931 = vadd.s32 %v2921, 10
      %v2932 = vadd.s32 %v2921, 11
      %v2933 = vadd.s32 %v2921, 12
      %v2934 = vadd.s32 %v2921, 13
      %v2935 = vadd.s32 %v2921, 14
      %v2936 = vadd.s32 %v2921, 15
      %v2937 = vadd.s32 %v2921, 16
      %v2938 = vadd.s32 %v2921, 17
      %vm2939 = vcmp.ge.s32.totalorder %v2921, 0
      %vm2940 = vcmp.ge.s32.totalorder %v2922, 0
      %vm2941 = vcmp.ge.s32.totalorder %v2923, 0
      %vm2942 = vcmp.ge.s32.totalorder %v2924, 0
      %vm2943 = vcmp.ge.s32.totalorder %v2925, 0
      %vm2944 = vcmp.ge.s32.totalorder %v2926, 0
      %vm2945 = vcmp.ge.s32.totalorder %v2927, 0
      %vm2946 = vcmp.ge.s32.totalorder %v2928, 0
      %vm2947 = vcmp.ge.s32.totalorder %v2929, 0
      %vm2948 = vcmp.ge.s32.totalorder %v2930, 0
      %vm2949 = vcmp.ge.s32.totalorder %v2931, 0
      %vm2950 = vcmp.ge.s32.totalorder %v2932, 0
      %vm2951 = vcmp.ge.s32.totalorder %v2933, 0
      %vm2952 = vcmp.ge.s32.totalorder %v2934, 0
      %vm2953 = vcmp.ge.s32.totalorder %v2935, 0
      %vm2954 = vcmp.ge.s32.totalorder %v2936, 0
      %vm2955 = vcmp.ge.s32.totalorder %v2937, 0
      %vm2956 = vcmp.ge.s32.totalorder %v2938, 0
      %vm2957 = vcmp.lt.s32.totalorder %v2921, 16
      %vm2958 = vcmp.lt.s32.totalorder %v2922, 16
      %vm2959 = vcmp.lt.s32.totalorder %v2923, 16
      %vm2960 = vcmp.lt.s32.totalorder %v2924, 16
      %vm2961 = vcmp.lt.s32.totalorder %v2925, 16
      %vm2962 = vcmp.lt.s32.totalorder %v2926, 16
      %vm2963 = vcmp.lt.s32.totalorder %v2927, 16
      %vm2964 = vcmp.lt.s32.totalorder %v2928, 16
      %vm2965 = vcmp.lt.s32.totalorder %v2929, 16
      %vm2966 = vcmp.lt.s32.totalorder %v2930, 16
      %vm2967 = vcmp.lt.s32.totalorder %v2931, 16
      %vm2968 = vcmp.lt.s32.totalorder %v2932, 16
      %vm2969 = vcmp.lt.s32.totalorder %v2933, 16
      %vm2970 = vcmp.lt.s32.totalorder %v2934, 16
      %vm2971 = vcmp.lt.s32.totalorder %v2935, 16
      %vm2972 = vcmp.lt.s32.totalorder %v2936, 16
      %vm2973 = vcmp.lt.s32.totalorder %v2937, 16
      %vm2974 = vcmp.lt.s32.totalorder %v2938, 16
      %vm2975 = vmand %vm2939, %vm2957
      %vm2976 = vmand %vm2940, %vm2958
      %vm2977 = vmand %vm2941, %vm2959
      %vm2978 = vmand %vm2942, %vm2960
      %vm2979 = vmand %vm2943, %vm2961
      %vm2980 = vmand %vm2944, %vm2962
      %vm2981 = vmand %vm2945, %vm2963
      %vm2982 = vmand %vm2946, %vm2964
      %vm2983 = vmand %vm2947, %vm2965
      %vm2984 = vmand %vm2948, %vm2966
      %vm2985 = vmand %vm2949, %vm2967
      %vm2986 = vmand %vm2950, %vm2968
      %vm2987 = vmand %vm2951, %vm2969
      %vm2988 = vmand %vm2952, %vm2970
      %vm2989 = vmand %vm2953, %vm2971
      %vm2990 = vmand %vm2954, %vm2972
      %vm2991 = vmand %vm2955, %vm2973
      %vm2992 = vmand %vm2956, %vm2974
      %v2993 = vsel %vm2975, 1, 0
      %v2994 = vsel %vm2976, 1, 0
      %v2995 = vsel %vm2977, 1, 0
      %v2996 = vsel %vm2978, 1, 0
      %v2997 = vsel %vm2979, 1, 0
      %v2998 = vsel %vm2980, 1, 0
      %v2999 = vsel %vm2981, 1, 0
      %v3000 = vsel %vm2982, 1, 0
      %v3001 = vsel %vm2983, 1, 0
      %v3002 = vsel %vm2984, 1, 0
      %v3003 = vsel %vm2985, 1, 0
      %v3004 = vsel %vm2986, 1, 0
      %v3005 = vsel %vm2987, 1, 0
      %v3006 = vsel %vm2988, 1, 0
      %v3007 = vsel %vm2989, 1, 0
      %v3008 = vsel %vm2990, 1, 0
      %v3009 = vsel %vm2991, 1, 0
      %v3010 = vsel %vm2992, 1, 0
      %vm3011 = vcmp.eq.s32.totalorder %v2993, 1
      %vm3012 = vcmp.eq.s32.totalorder %v2994, 1
      %vm3013 = vcmp.eq.s32.totalorder %v2995, 1
      %vm3014 = vcmp.eq.s32.totalorder %v2996, 1
      %vm3015 = vcmp.eq.s32.totalorder %v2997, 1
      %vm3016 = vcmp.eq.s32.totalorder %v2998, 1
      %vm3017 = vcmp.eq.s32.totalorder %v2999, 1
      %vm3018 = vcmp.eq.s32.totalorder %v3000, 1
      %vm3019 = vcmp.eq.s32.totalorder %v3001, 1
      %vm3020 = vcmp.eq.s32.totalorder %v3002, 1
      %vm3021 = vcmp.eq.s32.totalorder %v3003, 1
      %vm3022 = vcmp.eq.s32.totalorder %v3004, 1
      %vm3023 = vcmp.eq.s32.totalorder %v3005, 1
      %vm3024 = vcmp.eq.s32.totalorder %v3006, 1
      %vm3025 = vcmp.eq.s32.totalorder %v3007, 1
      %vm3026 = vcmp.eq.s32.totalorder %v3008, 1
      %vm3027 = vcmp.eq.s32.totalorder %v3009, 1
      %vm3028 = vcmp.eq.s32.totalorder %v3010, 1
      %v3029 = vsel %vm3011, %v2883, 0.0
      %v3030 = vsel %vm3011, %v2884, 0.0
      %v3031 = vsel %vm3012, %v2885, 0.0
      %v3032 = vsel %vm3012, %v2886, 0.0
      %v3033 = vsel %vm3013, %v2887, 0.0
      %v3034 = vsel %vm3013, %v2888, 0.0
      %v3035 = vsel %vm3014, %v2889, 0.0
      %v3036 = vsel %vm3014, %v2890, 0.0
      %v3037 = vsel %vm3015, %v2891, 0.0
      %v3038 = vsel %vm3015, %v2892, 0.0
      %v3039 = vsel %vm3016, %v2893, 0.0
      %v3040 = vsel %vm3016, %v2894, 0.0
      %v3041 = vsel %vm3017, %v2895, 0.0
      %v3042 = vsel %vm3017, %v2896, 0.0
      %v3043 = vsel %vm3018, %v2897, 0.0
      %v3044 = vsel %vm3018, %v2898, 0.0
      %v3045 = vsel %vm3019, %v2899, 0.0
      %v3046 = vsel %vm3019, %v2900, 0.0
      %v3047 = vsel %vm3020, %v2901, 0.0
      %v3048 = vsel %vm3020, %v2902, 0.0
      %v3049 = vsel %vm3021, %v2903, 0.0
      %v3050 = vsel %vm3021, %v2904, 0.0
      %v3051 = vsel %vm3022, %v2905, 0.0
      %v3052 = vsel %vm3022, %v2906, 0.0
      %v3053 = vsel %vm3023, %v2907, 0.0
      %v3054 = vsel %vm3023, %v2908, 0.0
      %v3055 = vsel %vm3024, %v2909, 0.0
      %v3056 = vsel %vm3024, %v2910, 0.0
      %v3057 = vsel %vm3025, %v2911, 0.0
      %v3058 = vsel %vm3025, %v2912, 0.0
      %v3059 = vsel %vm3026, %v2913, 0.0
      %v3060 = vsel %vm3026, %v2914, 0.0
      %v3061 = vsel %vm3027, %v2915, 0.0
      %v3062 = vsel %vm3027, %v2916, 0.0
      %v3063 = vsel %vm3028, %v2917, 0.0
      %v3064 = vsel %vm3028, %v2918, 0.0
      %vm3065 = vcmask 1040384
      %vm3066 = vsmask.f32 256
      %vm3067 = vmand %vm3065, %vm3066
      %v3068 = vld [vmem:[#allocation2] sm:$0x1]
      %v3069 = vsel %vm3067, 0, %v3068
      %3070 = vst [vmem:[#allocation2] sm:$0x1] %v3069
      %v3071 = vld [vmem:[#allocation2 + $0xc] sm:$0x1]
      %v3072 = vsel %vm3067, 0, %v3071
      %3073 = vst [vmem:[#allocation2 + $0xc] sm:$0x1] %v3072
      %v3074 = vld [vmem:[#allocation2 + $0x18] sm:$0x1]
      %v3075 = vsel %vm3067, 0, %v3074
      %3076 = vst [vmem:[#allocation2 + $0x18] sm:$0x1] %v3075
      %v3077 = vld [vmem:[#allocation2 + $0x24] sm:$0x1]
      %v3078 = vsel %vm3067, 0, %v3077
      %3079 = vst [vmem:[#allocation2 + $0x24] sm:$0x1] %v3078
      %v3080 = vld [vmem:[#allocation2 + $0x30] sm:$0x1]
      %v3081 = vsel %vm3067, 0, %v3080
      %3082 = vst [vmem:[#allocation2 + $0x30] sm:$0x1] %v3081
      %v3083 = vld [vmem:[#allocation2 + $0x3c] sm:$0x1]
      %v3084 = vsel %vm3067, 0, %v3083
      %3085 = vst [vmem:[#allocation2 + $0x3c] sm:$0x1] %v3084
      %v3086 = vld [vmem:[#allocation2 + $0x48] sm:$0x1]
      %v3087 = vsel %vm3067, 0, %v3086
      %3088 = vst [vmem:[#allocation2 + $0x48] sm:$0x1] %v3087
      %v3089 = vld [vmem:[#allocation2 + $0x54] sm:$0x1]
      %v3090 = vsel %vm3067, 0, %v3089
      %3091 = vst [vmem:[#allocation2 + $0x54] sm:$0x1] %v3090
      %v3092 = vld [vmem:[#allocation2 + $0x60] sm:$0x1]
      %v3093 = vsel %vm3067, 0, %v3092
      %3094 = vst [vmem:[#allocation2 + $0x60] sm:$0x1] %v3093
      %v3095 = vld [vmem:[#allocation2 + $0x6c] sm:$0x1]
      %v3096 = vsel %vm3067, 0, %v3095
      %3097 = vst [vmem:[#allocation2 + $0x6c] sm:$0x1] %v3096
      %v3098 = vld [vmem:[#allocation2 + $0x78] sm:$0x1]
      %v3099 = vsel %vm3067, 0, %v3098
      %3100 = vst [vmem:[#allocation2 + $0x78] sm:$0x1] %v3099
      %v3101 = vld [vmem:[#allocation2 + $0x84] sm:$0x1]
      %v3102 = vsel %vm3067, 0, %v3101
      %3103 = vst [vmem:[#allocation2 + $0x84] sm:$0x1] %v3102
      %v3104 = vld [vmem:[#allocation2 + $0x90] sm:$0x1]
      %v3105 = vsel %vm3067, 0, %v3104
      %3106 = vst [vmem:[#allocation2 + $0x90] sm:$0x1] %v3105
      %v3107 = vld [vmem:[#allocation2 + $0x9c] sm:$0x1]
      %v3108 = vsel %vm3067, 0, %v3107
      %3109 = vst [vmem:[#allocation2 + $0x9c] sm:$0x1] %v3108
      %v3110 = vld [vmem:[#allocation2 + $0xa8] sm:$0x1]
      %v3111 = vsel %vm3067, 0, %v3110
      %3112 = vst [vmem:[#allocation2 + $0xa8] sm:$0x1] %v3111
      %v3113 = vld [vmem:[#allocation2 + $0xb4] sm:$0x1]
      %v3114 = vsel %vm3067, 0, %v3113
      %3115 = vst [vmem:[#allocation2 + $0xb4] sm:$0x1] %v3114
      %v3116 = vld [vmem:[#allocation2 + $0xc0] sm:$0x1]
      %v3117 = vsel %vm3067, 0, %v3116
      %3118 = vst [vmem:[#allocation2 + $0xc0] sm:$0x1] %v3117
      %v3119 = vld [vmem:[#allocation2 + $0xcc] sm:$0x1]
      %v3120 = vsel %vm3067, 0, %v3119
      %3121 = vst [vmem:[#allocation2 + $0xcc] sm:$0x1] %v3120
      %vm3122 = vsmask.f32 7938
      %vm3123 = vmand %vm3065, %vm3122
      %v3124 = vld [vmem:[#allocation2 + $0x8] sm:$0x1]
      %v3125 = vsel %vm3123, 0, %v3124
      %3126 = vst [vmem:[#allocation2 + $0x8] sm:$0x1] %v3125
      %v3127 = vld [vmem:[#allocation2 + $0x14] sm:$0x1]
      %v3128 = vsel %vm3123, 0, %v3127
      %3129 = vst [vmem:[#allocation2 + $0x14] sm:$0x1] %v3128
      %v3130 = vld [vmem:[#allocation2 + $0x20] sm:$0x1]
      %v3131 = vsel %vm3123, 0, %v3130
      %3132 = vst [vmem:[#allocation2 + $0x20] sm:$0x1] %v3131
      %v3133 = vld [vmem:[#allocation2 + $0x2c] sm:$0x1]
      %v3134 = vsel %vm3123, 0, %v3133
      %3135 = vst [vmem:[#allocation2 + $0x2c] sm:$0x1] %v3134
      %v3136 = vld [vmem:[#allocation2 + $0x38] sm:$0x1]
      %v3137 = vsel %vm3123, 0, %v3136
      %3138 = vst [vmem:[#allocation2 + $0x38] sm:$0x1] %v3137
      %v3139 = vld [vmem:[#allocation2 + $0x44] sm:$0x1]
      %v3140 = vsel %vm3123, 0, %v3139
      %3141 = vst [vmem:[#allocation2 + $0x44] sm:$0x1] %v3140
      %v3142 = vld [vmem:[#allocation2 + $0x50] sm:$0x1]
      %v3143 = vsel %vm3123, 0, %v3142
      %3144 = vst [vmem:[#allocation2 + $0x50] sm:$0x1] %v3143
      %v3145 = vld [vmem:[#allocation2 + $0x5c] sm:$0x1]
      %v3146 = vsel %vm3123, 0, %v3145
      %3147 = vst [vmem:[#allocation2 + $0x5c] sm:$0x1] %v3146
      %v3148 = vld [vmem:[#allocation2 + $0x68] sm:$0x1]
      %v3149 = vsel %vm3123, 0, %v3148
      %3150 = vst [vmem:[#allocation2 + $0x68] sm:$0x1] %v3149
      %v3151 = vld [vmem:[#allocation2 + $0x74] sm:$0x1]
      %v3152 = vsel %vm3123, 0, %v3151
      %3153 = vst [vmem:[#allocation2 + $0x74] sm:$0x1] %v3152
      %v3154 = vld [vmem:[#allocation2 + $0x80] sm:$0x1]
      %v3155 = vsel %vm3123, 0, %v3154
      %3156 = vst [vmem:[#allocation2 + $0x80] sm:$0x1] %v3155
      %v3157 = vld [vmem:[#allocation2 + $0x8c] sm:$0x1]
      %v3158 = vsel %vm3123, 0, %v3157
      %3159 = vst [vmem:[#allocation2 + $0x8c] sm:$0x1] %v3158
      %v3160 = vld [vmem:[#allocation2 + $0x98] sm:$0x1]
      %v3161 = vsel %vm3123, 0, %v3160
      %3162 = vst [vmem:[#allocation2 + $0x98] sm:$0x1] %v3161
      %v3163 = vld [vmem:[#allocation2 + $0xa4] sm:$0x1]
      %v3164 = vsel %vm3123, 0, %v3163
      %3165 = vst [vmem:[#allocation2 + $0xa4] sm:$0x1] %v3164
      %v3166 = vld [vmem:[#allocation2 + $0xb0] sm:$0x1]
      %v3167 = vsel %vm3123, 0, %v3166
      %3168 = vst [vmem:[#allocation2 + $0xb0] sm:$0x1] %v3167
      %v3169 = vld [vmem:[#allocation2 + $0xbc] sm:$0x1]
      %v3170 = vsel %vm3123, 0, %v3169
      %3171 = vst [vmem:[#allocation2 + $0xbc] sm:$0x1] %v3170
      %v3172 = vld [vmem:[#allocation2 + $0xc8] sm:$0x1]
      %v3173 = vsel %vm3123, 0, %v3172
      %3174 = vst [vmem:[#allocation2 + $0xc8] sm:$0x1] %v3173
      %v3175 = vld [vmem:[#allocation2 + $0xd4] sm:$0x1]
      %v3176 = vsel %vm3123, 0, %v3175
      %3177 = vst [vmem:[#allocation2 + $0xd4] sm:$0x1] %v3176
      %v3178 = vpack.c.bf16 %v3030, %v3029
      %v3179 = vpack.c.bf16 %v3032, %v3031
      %v3180 = vpack.c.bf16 %v3034, %v3033
      %v3181 = vpack.c.bf16 %v3036, %v3035
      %v3182 = vpack.c.bf16 %v3038, %v3037
      %v3183 = vpack.c.bf16 %v3040, %v3039
      %v3184 = vpack.c.bf16 %v3042, %v3041
      %v3185 = vpack.c.bf16 %v3044, %v3043
      %v3186 = vpack.c.bf16 %v3046, %v3045
      %v3187 = vpack.c.bf16 %v3048, %v3047
      %v3188 = vpack.c.bf16 %v3050, %v3049
      %v3189 = vpack.c.bf16 %v3052, %v3051
      %v3190 = vpack.c.bf16 %v3054, %v3053
      %v3191 = vpack.c.bf16 %v3056, %v3055
      %v3192 = vpack.c.bf16 %v3058, %v3057
      %v3193 = vpack.c.bf16 %v3060, %v3059
      %v3194 = vpack.c.bf16 %v3062, %v3061
      %v3195 = vpack.c.bf16 %v3064, %v3063
      %v3214 = vunpack.c.l.b16 %v3178
      %v3215 = vunpack.c.h.b16 %v3178
      %v3216 = vunpack.c.l.b16 %v3179
      %v3217 = vunpack.c.h.b16 %v3179
      %v3218 = vunpack.c.l.b16 %v3180
      %v3219 = vunpack.c.h.b16 %v3180
      %v3220 = vunpack.c.l.b16 %v3181
      %v3221 = vunpack.c.h.b16 %v3181
      %v3222 = vunpack.c.l.b16 %v3182
      %v3223 = vunpack.c.h.b16 %v3182
      %v3224 = vunpack.c.l.b16 %v3183
      %v3225 = vunpack.c.h.b16 %v3183
      %v3226 = vunpack.c.l.b16 %v3184
      %v3227 = vunpack.c.h.b16 %v3184
      %v3228 = vunpack.c.l.b16 %v3185
      %v3229 = vunpack.c.h.b16 %v3185
      %v3230 = vunpack.c.l.b16 %v3186
      %v3231 = vunpack.c.h.b16 %v3186
      %v3232 = vunpack.c.l.b16 %v3187
      %v3233 = vunpack.c.h.b16 %v3187
      %v3234 = vunpack.c.l.b16 %v3188
      %v3235 = vunpack.c.h.b16 %v3188
      %v3236 = vunpack.c.l.b16 %v3189
      %v3237 = vunpack.c.h.b16 %v3189
      %v3238 = vunpack.c.l.b16 %v3190
      %v3239 = vunpack.c.h.b16 %v3190
      %v3240 = vunpack.c.l.b16 %v3191
      %v3241 = vunpack.c.h.b16 %v3191
      %v3242 = vunpack.c.l.b16 %v3192
      %v3243 = vunpack.c.h.b16 %v3192
      %v3244 = vunpack.c.l.b16 %v3193
      %v3245 = vunpack.c.h.b16 %v3193
      %v3246 = vunpack.c.l.b16 %v3194
      %v3247 = vunpack.c.h.b16 %v3194
      %v3248 = vunpack.c.l.b16 %v3195
      %v3249 = vunpack.c.h.b16 %v3195
      %v3250 = vpack.c.b16 %v3214, %v3214
      %v3251 = vpack.c.b16 %v3215, %v3215
      %v3252 = vpack.c.b16 %v3216, %v3216
      %v3253 = vpack.c.b16 %v3217, %v3217
      %v3254 = vpack.c.b16 %v3218, %v3218
      %v3255 = vpack.c.b16 %v3219, %v3219
      %v3256 = vpack.c.b16 %v3220, %v3220
      %v3257 = vpack.c.b16 %v3221, %v3221
      %v3258 = vpack.c.b16 %v3222, %v3222
      %v3259 = vpack.c.b16 %v3223, %v3223
      %v3260 = vpack.c.b16 %v3224, %v3224
      %v3261 = vpack.c.b16 %v3225, %v3225
      %v3262 = vpack.c.b16 %v3226, %v3226
      %v3263 = vpack.c.b16 %v3227, %v3227
      %v3264 = vpack.c.b16 %v3228, %v3228
      %v3265 = vpack.c.b16 %v3229, %v3229
      %v3266 = vpack.c.b16 %v3230, %v3230
      %v3267 = vpack.c.b16 %v3231, %v3231
      %v3268 = vpack.c.b16 %v3232, %v3232
      %v3269 = vpack.c.b16 %v3233, %v3233
      %v3270 = vpack.c.b16 %v3234, %v3234
      %v3271 = vpack.c.b16 %v3235, %v3235
      %v3272 = vpack.c.b16 %v3236, %v3236
      %v3273 = vpack.c.b16 %v3237, %v3237
      %v3274 = vpack.c.b16 %v3238, %v3238
      %v3275 = vpack.c.b16 %v3239, %v3239
      %v3276 = vpack.c.b16 %v3240, %v3240
      %v3277 = vpack.c.b16 %v3241, %v3241
      %v3278 = vpack.c.b16 %v3242, %v3242
      %v3279 = vpack.c.b16 %v3243, %v3243
      %v3280 = vpack.c.b16 %v3244, %v3244
      %v3281 = vpack.c.b16 %v3245, %v3245
      %v3282 = vpack.c.b16 %v3246, %v3246
      %v3283 = vpack.c.b16 %v3247, %v3247
      %v3284 = vpack.c.b16 %v3248, %v3248
      %v3285 = vpack.c.b16 %v3249, %v3249
      %vm3286 = vsmask.f32 4368
      %vm3287 = vmor %vm3066, %vm3286
      %v3289 = vshrl.u32 %v3250, 16
      %v3291 = vrot.slane %v3289, 7
      %v3292 = vshll.u32 %v3250, 16
      %v3294 = vor.u32 %v3291, %v3292
      %v3295 = vrot.slane %v3291, 4
      %v3297 = vshrl.u32 %v3251, 16
      %v3299 = vrot.slane %v3297, 7
      %v3300 = vshll.u32 %v3251, 16
      %v3302 = vor.u32 %v3299, %v3300
      %v3303 = vsel %vm3287, %v3295, %v3302
      %v3304 = vrot.slane %v3299, 4
      %v3306 = vshrl.u32 %v3252, 16
      %v3308 = vrot.slane %v3306, 7
      %v3309 = vshll.u32 %v3252, 16
      %v3311 = vor.u32 %v3308, %v3309
      %v3312 = vrot.slane %v3308, 4
      %v3314 = vshrl.u32 %v3253, 16
      %v3316 = vrot.slane %v3314, 7
      %v3317 = vshll.u32 %v3253, 16
      %v3319 = vor.u32 %v3316, %v3317
      %v3320 = vsel %vm3287, %v3312, %v3319
      %v3321 = vrot.slane %v3316, 4
      %v3323 = vshrl.u32 %v3254, 16
      %v3325 = vrot.slane %v3323, 7
      %v3326 = vshll.u32 %v3254, 16
      %v3328 = vor.u32 %v3325, %v3326
      %v3329 = vrot.slane %v3325, 4
      %v3331 = vshrl.u32 %v3255, 16
      %v3333 = vrot.slane %v3331, 7
      %v3334 = vshll.u32 %v3255, 16
      %v3336 = vor.u32 %v3333, %v3334
      %v3337 = vsel %vm3287, %v3329, %v3336
      %v3338 = vrot.slane %v3333, 4
      %v3340 = vshrl.u32 %v3256, 16
      %v3342 = vrot.slane %v3340, 7
      %v3343 = vshll.u32 %v3256, 16
      %v3345 = vor.u32 %v3342, %v3343
      %v3346 = vrot.slane %v3342, 4
      %v3348 = vshrl.u32 %v3257, 16
      %v3350 = vrot.slane %v3348, 7
      %v3351 = vshll.u32 %v3257, 16
      %v3353 = vor.u32 %v3350, %v3351
      %v3354 = vsel %vm3287, %v3346, %v3353
      %v3355 = vrot.slane %v3350, 4
      %v3357 = vshrl.u32 %v3258, 16
      %v3359 = vrot.slane %v3357, 7
      %v3360 = vshll.u32 %v3258, 16
      %v3362 = vor.u32 %v3359, %v3360
      %v3363 = vrot.slane %v3359, 4
      %v3365 = vshrl.u32 %v3259, 16
      %v3367 = vrot.slane %v3365, 7
      %v3368 = vshll.u32 %v3259, 16
      %v3370 = vor.u32 %v3367, %v3368
      %v3371 = vsel %vm3287, %v3363, %v3370
      %v3372 = vrot.slane %v3367, 4
      %v3374 = vshrl.u32 %v3260, 16
      %v3376 = vrot.slane %v3374, 7
      %v3377 = vshll.u32 %v3260, 16
      %v3379 = vor.u32 %v3376, %v3377
      %v3380 = vrot.slane %v3376, 4
      %v3382 = vshrl.u32 %v3261, 16
      %v3384 = vrot.slane %v3382, 7
      %v3385 = vshll.u32 %v3261, 16
      %v3387 = vor.u32 %v3384, %v3385
      %v3388 = vsel %vm3287, %v3380, %v3387
      %v3389 = vrot.slane %v3384, 4
      %v3391 = vshrl.u32 %v3262, 16
      %v3393 = vrot.slane %v3391, 7
      %v3394 = vshll.u32 %v3262, 16
      %v3396 = vor.u32 %v3393, %v3394
      %v3397 = vrot.slane %v3393, 4
      %v3399 = vshrl.u32 %v3263, 16
      %v3401 = vrot.slane %v3399, 7
      %v3402 = vshll.u32 %v3263, 16
      %v3404 = vor.u32 %v3401, %v3402
      %v3405 = vsel %vm3287, %v3397, %v3404
      %v3406 = vrot.slane %v3401, 4
      %v3408 = vshrl.u32 %v3264, 16
      %v3410 = vrot.slane %v3408, 7
      %v3411 = vshll.u32 %v3264, 16
      %v3413 = vor.u32 %v3410, %v3411
      %v3414 = vrot.slane %v3410, 4
      %v3416 = vshrl.u32 %v3265, 16
      %v3418 = vrot.slane %v3416, 7
      %v3419 = vshll.u32 %v3265, 16
      %v3421 = vor.u32 %v3418, %v3419
      %v3422 = vsel %vm3287, %v3414, %v3421
      %v3423 = vrot.slane %v3418, 4
      %v3425 = vshrl.u32 %v3266, 16
      %v3427 = vrot.slane %v3425, 7
      %v3428 = vshll.u32 %v3266, 16
      %v3430 = vor.u32 %v3427, %v3428
      %v3431 = vrot.slane %v3427, 4
      %v3433 = vshrl.u32 %v3267, 16
      %v3435 = vrot.slane %v3433, 7
      %v3436 = vshll.u32 %v3267, 16
      %v3438 = vor.u32 %v3435, %v3436
      %v3439 = vsel %vm3287, %v3431, %v3438
      %v3440 = vrot.slane %v3435, 4
      %v3442 = vshrl.u32 %v3268, 16
      %v3444 = vrot.slane %v3442, 7
      %v3445 = vshll.u32 %v3268, 16
      %v3447 = vor.u32 %v3444, %v3445
      %v3448 = vrot.slane %v3444, 4
      %v3450 = vshrl.u32 %v3269, 16
      %v3452 = vrot.slane %v3450, 7
      %v3453 = vshll.u32 %v3269, 16
      %v3455 = vor.u32 %v3452, %v3453
      %v3456 = vsel %vm3287, %v3448, %v3455
      %v3457 = vrot.slane %v3452, 4
      %v3459 = vshrl.u32 %v3270, 16
      %v3461 = vrot.slane %v3459, 7
      %v3462 = vshll.u32 %v3270, 16
      %v3464 = vor.u32 %v3461, %v3462
      %v3465 = vrot.slane %v3461, 4
      %v3467 = vshrl.u32 %v3271, 16
      %v3469 = vrot.slane %v3467, 7
      %v3470 = vshll.u32 %v3271, 16
      %v3472 = vor.u32 %v3469, %v3470
      %v3473 = vsel %vm3287, %v3465, %v3472
      %v3474 = vrot.slane %v3469, 4
      %v3476 = vshrl.u32 %v3272, 16
      %v3478 = vrot.slane %v3476, 7
      %v3479 = vshll.u32 %v3272, 16
      %v3481 = vor.u32 %v3478, %v3479
      %v3482 = vrot.slane %v3478, 4
      %v3484 = vshrl.u32 %v3273, 16
      %v3486 = vrot.slane %v3484, 7
      %v3487 = vshll.u32 %v3273, 16
      %v3489 = vor.u32 %v3486, %v3487
      %v3490 = vsel %vm3287, %v3482, %v3489
      %v3491 = vrot.slane %v3486, 4
      %v3493 = vshrl.u32 %v3274, 16
      %v3495 = vrot.slane %v3493, 7
      %v3496 = vshll.u32 %v3274, 16
      %v3498 = vor.u32 %v3495, %v3496
      %v3499 = vrot.slane %v3495, 4
      %v3501 = vshrl.u32 %v3275, 16
      %v3503 = vrot.slane %v3501, 7
      %v3504 = vshll.u32 %v3275, 16
      %v3506 = vor.u32 %v3503, %v3504
      %v3507 = vsel %vm3287, %v3499, %v3506
      %v3508 = vrot.slane %v3503, 4
      %v3510 = vshrl.u32 %v3276, 16
      %v3512 = vrot.slane %v3510, 7
      %v3513 = vshll.u32 %v3276, 16
      %v3515 = vor.u32 %v3512, %v3513
      %v3516 = vrot.slane %v3512, 4
      %v3518 = vshrl.u32 %v3277, 16
      %v3520 = vrot.slane %v3518, 7
      %v3521 = vshll.u32 %v3277, 16
      %v3523 = vor.u32 %v3520, %v3521
      %v3524 = vsel %vm3287, %v3516, %v3523
      %v3525 = vrot.slane %v3520, 4
      %v3527 = vshrl.u32 %v3278, 16
      %v3529 = vrot.slane %v3527, 7
      %v3530 = vshll.u32 %v3278, 16
      %v3532 = vor.u32 %v3529, %v3530
      %v3533 = vrot.slane %v3529, 4
      %v3535 = vshrl.u32 %v3279, 16
      %v3537 = vrot.slane %v3535, 7
      %v3538 = vshll.u32 %v3279, 16
      %v3540 = vor.u32 %v3537, %v3538
      %v3541 = vsel %vm3287, %v3533, %v3540
      %v3542 = vrot.slane %v3537, 4
      %v3544 = vshrl.u32 %v3280, 16
      %v3546 = vrot.slane %v3544, 7
      %v3547 = vshll.u32 %v3280, 16
      %v3549 = vor.u32 %v3546, %v3547
      %v3550 = vrot.slane %v3546, 4
      %v3552 = vshrl.u32 %v3281, 16
      %v3554 = vrot.slane %v3552, 7
      %v3555 = vshll.u32 %v3281, 16
      %v3557 = vor.u32 %v3554, %v3555
      %v3558 = vsel %vm3287, %v3550, %v3557
      %v3559 = vrot.slane %v3554, 4
      %v3561 = vshrl.u32 %v3282, 16
      %v3563 = vrot.slane %v3561, 7
      %v3564 = vshll.u32 %v3282, 16
      %v3566 = vor.u32 %v3563, %v3564
      %v3567 = vrot.slane %v3563, 4
      %v3569 = vshrl.u32 %v3283, 16
      %v3571 = vrot.slane %v3569, 7
      %v3572 = vshll.u32 %v3283, 16
      %v3574 = vor.u32 %v3571, %v3572
      %v3575 = vsel %vm3287, %v3567, %v3574
      %v3576 = vrot.slane %v3571, 4
      %v3578 = vshrl.u32 %v3284, 16
      %v3580 = vrot.slane %v3578, 7
      %v3581 = vshll.u32 %v3284, 16
      %v3583 = vor.u32 %v3580, %v3581
      %v3584 = vrot.slane %v3580, 4
      %v3586 = vshrl.u32 %v3285, 16
      %v3588 = vrot.slane %v3586, 7
      %v3589 = vshll.u32 %v3285, 16
      %v3591 = vor.u32 %v3588, %v3589
      %v3592 = vsel %vm3287, %v3584, %v3591
      %v3593 = vrot.slane %v3588, 4
      %vm3648 = vcmask 1043456
      %vm3649 = vmand %vm3648, %vm3122
      %v3650 = vld [vmem:[#allocation2] sm:$0xf]
      %v3651 = vsel %vm3649, %v3294, %v3650
      %3652 = vst [vmem:[#allocation2] sm:$0xf] %v3651
      %3653 = vst [vmem:[#allocation2 + $0x4] sm:$0xf] %v3303
      %v3654 = vld [vmem:[#allocation2 + $0x8] sm:$0x1]
      %v3655 = vsel %vm3067, %v3304, %v3654
      %3656 = vst [vmem:[#allocation2 + $0x8] sm:$0x1] %v3655
      %v3657 = vld [vmem:[#allocation2 + $0xc] sm:$0xf]
      %v3658 = vsel %vm3649, %v3311, %v3657
      %3659 = vst [vmem:[#allocation2 + $0xc] sm:$0xf] %v3658
      %3660 = vst [vmem:[#allocation2 + $0x10] sm:$0xf] %v3320
      %v3661 = vld [vmem:[#allocation2 + $0x14] sm:$0x1]
      %v3662 = vsel %vm3067, %v3321, %v3661
      %3663 = vst [vmem:[#allocation2 + $0x14] sm:$0x1] %v3662
      %v3664 = vld [vmem:[#allocation2 + $0x18] sm:$0xf]
      %v3665 = vsel %vm3649, %v3328, %v3664
      %3666 = vst [vmem:[#allocation2 + $0x18] sm:$0xf] %v3665
      %3667 = vst [vmem:[#allocation2 + $0x1c] sm:$0xf] %v3337
      %v3668 = vld [vmem:[#allocation2 + $0x20] sm:$0x1]
      %v3669 = vsel %vm3067, %v3338, %v3668
      %3670 = vst [vmem:[#allocation2 + $0x20] sm:$0x1] %v3669
      %v3671 = vld [vmem:[#allocation2 + $0x24] sm:$0xf]
      %v3672 = vsel %vm3649, %v3345, %v3671
      %3673 = vst [vmem:[#allocation2 + $0x24] sm:$0xf] %v3672
      %3674 = vst [vmem:[#allocation2 + $0x28] sm:$0xf] %v3354
      %v3675 = vld [vmem:[#allocation2 + $0x2c] sm:$0x1]
      %v3676 = vsel %vm3067, %v3355, %v3675
      %3677 = vst [vmem:[#allocation2 + $0x2c] sm:$0x1] %v3676
      %v3678 = vld [vmem:[#allocation2 + $0x30] sm:$0xf]
      %v3679 = vsel %vm3649, %v3362, %v3678
      %3680 = vst [vmem:[#allocation2 + $0x30] sm:$0xf] %v3679
      %3681 = vst [vmem:[#allocation2 + $0x34] sm:$0xf] %v3371
      %v3682 = vld [vmem:[#allocation2 + $0x38] sm:$0x1]
      %v3683 = vsel %vm3067, %v3372, %v3682
      %3684 = vst [vmem:[#allocation2 + $0x38] sm:$0x1] %v3683
      %v3685 = vld [vmem:[#allocation2 + $0x3c] sm:$0xf]
      %v3686 = vsel %vm3649, %v3379, %v3685
      %3687 = vst [vmem:[#allocation2 + $0x3c] sm:$0xf] %v3686
      %3688 = vst [vmem:[#allocation2 + $0x40] sm:$0xf] %v3388
      %v3689 = vld [vmem:[#allocation2 + $0x44] sm:$0x1]
      %v3690 = vsel %vm3067, %v3389, %v3689
      %3691 = vst [vmem:[#allocation2 + $0x44] sm:$0x1] %v3690
      %v3692 = vld [vmem:[#allocation2 + $0x48] sm:$0xf]
      %v3693 = vsel %vm3649, %v3396, %v3692
      %3694 = vst [vmem:[#allocation2 + $0x48] sm:$0xf] %v3693
      %3695 = vst [vmem:[#allocation2 + $0x4c] sm:$0xf] %v3405
      %v3696 = vld [vmem:[#allocation2 + $0x50] sm:$0x1]
      %v3697 = vsel %vm3067, %v3406, %v3696
      %3698 = vst [vmem:[#allocation2 + $0x50] sm:$0x1] %v3697
      %v3699 = vld [vmem:[#allocation2 + $0x54] sm:$0xf]
      %v3700 = vsel %vm3649, %v3413, %v3699
      %3701 = vst [vmem:[#allocation2 + $0x54] sm:$0xf] %v3700
      %3702 = vst [vmem:[#allocation2 + $0x58] sm:$0xf] %v3422
      %v3703 = vld [vmem:[#allocation2 + $0x5c] sm:$0x1]
      %v3704 = vsel %vm3067, %v3423, %v3703
      %3705 = vst [vmem:[#allocation2 + $0x5c] sm:$0x1] %v3704
      %v3706 = vld [vmem:[#allocation2 + $0x60] sm:$0xf]
      %v3707 = vsel %vm3649, %v3430, %v3706
      %3708 = vst [vmem:[#allocation2 + $0x60] sm:$0xf] %v3707
      %3709 = vst [vmem:[#allocation2 + $0x64] sm:$0xf] %v3439
      %v3710 = vld [vmem:[#allocation2 + $0x68] sm:$0x1]
      %v3711 = vsel %vm3067, %v3440, %v3710
      %3712 = vst [vmem:[#allocation2 + $0x68] sm:$0x1] %v3711
      %v3713 = vld [vmem:[#allocation2 + $0x6c] sm:$0xf]
      %v3714 = vsel %vm3649, %v3447, %v3713
      %3715 = vst [vmem:[#allocation2 + $0x6c] sm:$0xf] %v3714
      %3716 = vst [vmem:[#allocation2 + $0x70] sm:$0xf] %v3456
      %v3717 = vld [vmem:[#allocation2 + $0x74] sm:$0x1]
      %v3718 = vsel %vm3067, %v3457, %v3717
      %3719 = vst [vmem:[#allocation2 + $0x74] sm:$0x1] %v3718
      %v3720 = vld [vmem:[#allocation2 + $0x78] sm:$0xf]
      %v3721 = vsel %vm3649, %v3464, %v3720
      %3722 = vst [vmem:[#allocation2 + $0x78] sm:$0xf] %v3721
      %3723 = vst [vmem:[#allocation2 + $0x7c] sm:$0xf] %v3473
      %v3724 = vld [vmem:[#allocation2 + $0x80] sm:$0x1]
      %v3725 = vsel %vm3067, %v3474, %v3724
      %3726 = vst [vmem:[#allocation2 + $0x80] sm:$0x1] %v3725
      %v3727 = vld [vmem:[#allocation2 + $0x84] sm:$0xf]
      %v3728 = vsel %vm3649, %v3481, %v3727
      %3729 = vst [vmem:[#allocation2 + $0x84] sm:$0xf] %v3728
      %3730 = vst [vmem:[#allocation2 + $0x88] sm:$0xf] %v3490
      %v3731 = vld [vmem:[#allocation2 + $0x8c] sm:$0x1]
      %v3732 = vsel %vm3067, %v3491, %v3731
      %3733 = vst [vmem:[#allocation2 + $0x8c] sm:$0x1] %v3732
      %v3734 = vld [vmem:[#allocation2 + $0x90] sm:$0xf]
      %v3735 = vsel %vm3649, %v3498, %v3734
      %3736 = vst [vmem:[#allocation2 + $0x90] sm:$0xf] %v3735
      %3737 = vst [vmem:[#allocation2 + $0x94] sm:$0xf] %v3507
      %v3738 = vld [vmem:[#allocation2 + $0x98] sm:$0x1]
      %v3739 = vsel %vm3067, %v3508, %v3738
      %3740 = vst [vmem:[#allocation2 + $0x98] sm:$0x1] %v3739
      %v3741 = vld [vmem:[#allocation2 + $0x9c] sm:$0xf]
      %v3742 = vsel %vm3649, %v3515, %v3741
      %3743 = vst [vmem:[#allocation2 + $0x9c] sm:$0xf] %v3742
      %3744 = vst [vmem:[#allocation2 + $0xa0] sm:$0xf] %v3524
      %v3745 = vld [vmem:[#allocation2 + $0xa4] sm:$0x1]
      %v3746 = vsel %vm3067, %v3525, %v3745
      %3747 = vst [vmem:[#allocation2 + $0xa4] sm:$0x1] %v3746
      %v3748 = vld [vmem:[#allocation2 + $0xa8] sm:$0xf]
      %v3749 = vsel %vm3649, %v3532, %v3748
      %3750 = vst [vmem:[#allocation2 + $0xa8] sm:$0xf] %v3749
      %3751 = vst [vmem:[#allocation2 + $0xac] sm:$0xf] %v3541
      %v3752 = vld [vmem:[#allocation2 + $0xb0] sm:$0x1]
      %v3753 = vsel %vm3067, %v3542, %v3752
      %3754 = vst [vmem:[#allocation2 + $0xb0] sm:$0x1] %v3753
      %v3755 = vld [vmem:[#allocation2 + $0xb4] sm:$0xf]
      %v3756 = vsel %vm3649, %v3549, %v3755
      %3757 = vst [vmem:[#allocation2 + $0xb4] sm:$0xf] %v3756
      %3758 = vst [vmem:[#allocation2 + $0xb8] sm:$0xf] %v3558
      %v3759 = vld [vmem:[#allocation2 + $0xbc] sm:$0x1]
      %v3760 = vsel %vm3067, %v3559, %v3759
      %3761 = vst [vmem:[#allocation2 + $0xbc] sm:$0x1] %v3760
      %v3762 = vld [vmem:[#allocation2 + $0xc0] sm:$0xf]
      %v3763 = vsel %vm3649, %v3566, %v3762
      %3764 = vst [vmem:[#allocation2 + $0xc0] sm:$0xf] %v3763
      %3765 = vst [vmem:[#allocation2 + $0xc4] sm:$0xf] %v3575
      %v3766 = vld [vmem:[#allocation2 + $0xc8] sm:$0x1]
      %v3767 = vsel %vm3067, %v3576, %v3766
      %3768 = vst [vmem:[#allocation2 + $0xc8] sm:$0x1] %v3767
      %v3769 = vld [vmem:[#allocation2 + $0xcc] sm:$0xf]
      %v3770 = vsel %vm3649, %v3583, %v3769
      %3771 = vst [vmem:[#allocation2 + $0xcc] sm:$0xf] %v3770
      %3772 = vst [vmem:[#allocation2 + $0xd0] sm:$0xf] %v3592
      %v3773 = vld [vmem:[#allocation2 + $0xd4] sm:$0x1]
      %v3774 = vsel %vm3067, %v3593, %v3773
      %3775 = vst [vmem:[#allocation2 + $0xd4] sm:$0x1] %v3774
      %v3776 = vld [vmem:[#allocation2] sm:$0xf]
      %v3777 = vld [vmem:[#allocation2 + $0x4] sm:$0xf]
      %v3778 = vld [vmem:[#allocation2 + $0x8] sm:$0x1]
      %v3779 = vld [vmem:[#allocation2 + $0xc] sm:$0xf]
      %v3780 = vld [vmem:[#allocation2 + $0x10] sm:$0xf]
      %v3781 = vld [vmem:[#allocation2 + $0x14] sm:$0x1]
      %v3782 = vld [vmem:[#allocation2 + $0x18] sm:$0xf]
      %v3783 = vld [vmem:[#allocation2 + $0x1c] sm:$0xf]
      %v3784 = vld [vmem:[#allocation2 + $0x20] sm:$0x1]
      %v3785 = vld [vmem:[#allocation2 + $0x24] sm:$0xf]
      %v3786 = vld [vmem:[#allocation2 + $0x28] sm:$0xf]
      %v3787 = vld [vmem:[#allocation2 + $0x2c] sm:$0x1]
      %v3788 = vld [vmem:[#allocation2 + $0x30] sm:$0xf]
      %v3789 = vld [vmem:[#allocation2 + $0x34] sm:$0xf]
      %v3790 = vld [vmem:[#allocation2 + $0x38] sm:$0x1]
      %v3791 = vld [vmem:[#allocation2 + $0x3c] sm:$0xf]
      %v3792 = vld [vmem:[#allocation2 + $0x40] sm:$0xf]
      %v3793 = vld [vmem:[#allocation2 + $0x44] sm:$0x1]
      %v3794 = vld [vmem:[#allocation2 + $0x48] sm:$0xf]
      %v3795 = vld [vmem:[#allocation2 + $0x4c] sm:$0xf]
      %v3796 = vld [vmem:[#allocation2 + $0x50] sm:$0x1]
      %v3797 = vld [vmem:[#allocation2 + $0x54] sm:$0xf]
      %v3798 = vld [vmem:[#allocation2 + $0x58] sm:$0xf]
      %v3799 = vld [vmem:[#allocation2 + $0x5c] sm:$0x1]
      %v3800 = vld [vmem:[#allocation2 + $0x60] sm:$0xf]
      %v3801 = vld [vmem:[#allocation2 + $0x64] sm:$0xf]
      %v3802 = vld [vmem:[#allocation2 + $0x68] sm:$0x1]
      %v3803 = vld [vmem:[#allocation2 + $0x6c] sm:$0xf]
      %v3804 = vld [vmem:[#allocation2 + $0x70] sm:$0xf]
      %v3805 = vld [vmem:[#allocation2 + $0x74] sm:$0x1]
      %v3806 = vld [vmem:[#allocation2 + $0x78] sm:$0xf]
      %v3807 = vld [vmem:[#allocation2 + $0x7c] sm:$0xf]
      %v3808 = vld [vmem:[#allocation2 + $0x80] sm:$0x1]
      %v3809 = vld [vmem:[#allocation2 + $0x84] sm:$0xf]
      %v3810 = vld [vmem:[#allocation2 + $0x88] sm:$0xf]
      %v3811 = vld [vmem:[#allocation2 + $0x8c] sm:$0x1]
      %v3812 = vld [vmem:[#allocation2 + $0x90] sm:$0xf]
      %v3813 = vld [vmem:[#allocation2 + $0x94] sm:$0xf]
      %v3814 = vld [vmem:[#allocation2 + $0x98] sm:$0x1]
      %v3815 = vld [vmem:[#allocation2 + $0x9c] sm:$0xf]
      %v3816 = vld [vmem:[#allocation2 + $0xa0] sm:$0xf]
      %v3817 = vld [vmem:[#allocation2 + $0xa4] sm:$0x1]
      %v3818 = vld [vmem:[#allocation2 + $0xa8] sm:$0xf]
      %v3819 = vld [vmem:[#allocation2 + $0xac] sm:$0xf]
      %v3820 = vld [vmem:[#allocation2 + $0xb0] sm:$0x1]
      %v3821 = vld [vmem:[#allocation2 + $0xb4] sm:$0xf]
      %v3822 = vld [vmem:[#allocation2 + $0xb8] sm:$0xf]
      %v3823 = vld [vmem:[#allocation2 + $0xbc] sm:$0x1]
      %v3824 = vld [vmem:[#allocation2 + $0xc0] sm:$0xf]
      %v3825 = vld [vmem:[#allocation2 + $0xc4] sm:$0xf]
      %v3826 = vld [vmem:[#allocation2 + $0xc8] sm:$0x1]
      %v3827 = vld [vmem:[#allocation2 + $0xcc] sm:$0xf]
      %v3828 = vld [vmem:[#allocation2 + $0xd0] sm:$0xf]
      %v3829 = vld [vmem:[#allocation2 + $0xd4] sm:$0x1]
      %v3831 = vshrl.u32 %v3776, 16
      %v3833 = vrot.slane %v3831, 4
      %v3834 = vshll.u32 %v3776, 16
      %v3836 = vrot.slane %v3834, 5
      %v3837 = vor.u32 %v3833, %v3836
      %v3838 = vrot.slane %v3837, 4
      %v3840 = vshll.u32 %v3777, 16
      %v3842 = vrot.slane %v3840, 5
      %v3843 = vsel %vm491, %v3838, %v3842
      %v3844 = vshrl.u32 %v3777, 16
      %v3846 = vrot.slane %v3844, 4
      %v3847 = vor.u32 %v3846, %v3842
      %v3848 = vrot.slane %v3847, 4
      %v3850 = vshll.u32 %v3778, 16
      %v3852 = vrot.slane %v3850, 5
      %v3853 = vsel %vm491, %v3848, %v3852
      %v3855 = vshrl.u32 %v3779, 16
      %v3857 = vrot.slane %v3855, 4
      %v3858 = vshll.u32 %v3779, 16
      %v3860 = vrot.slane %v3858, 5
      %v3861 = vor.u32 %v3857, %v3860
      %v3862 = vrot.slane %v3861, 4
      %v3864 = vshll.u32 %v3780, 16
      %v3866 = vrot.slane %v3864, 5
      %v3867 = vsel %vm491, %v3862, %v3866
      %v3868 = vshrl.u32 %v3780, 16
      %v3870 = vrot.slane %v3868, 4
      %v3871 = vor.u32 %v3870, %v3866
      %v3872 = vrot.slane %v3871, 4
      %v3874 = vshll.u32 %v3781, 16
      %v3876 = vrot.slane %v3874, 5
      %v3877 = vsel %vm491, %v3872, %v3876
      %v3879 = vshrl.u32 %v3782, 16
      %v3881 = vrot.slane %v3879, 4
      %v3882 = vshll.u32 %v3782, 16
      %v3884 = vrot.slane %v3882, 5
      %v3885 = vor.u32 %v3881, %v3884
      %v3886 = vrot.slane %v3885, 4
      %v3888 = vshll.u32 %v3783, 16
      %v3890 = vrot.slane %v3888, 5
      %v3891 = vsel %vm491, %v3886, %v3890
      %v3892 = vshrl.u32 %v3783, 16
      %v3894 = vrot.slane %v3892, 4
      %v3895 = vor.u32 %v3894, %v3890
      %v3896 = vrot.slane %v3895, 4
      %v3898 = vshll.u32 %v3784, 16
      %v3900 = vrot.slane %v3898, 5
      %v3901 = vsel %vm491, %v3896, %v3900
      %v3903 = vshrl.u32 %v3785, 16
      %v3905 = vrot.slane %v3903, 4
      %v3906 = vshll.u32 %v3785, 16
      %v3908 = vrot.slane %v3906, 5
      %v3909 = vor.u32 %v3905, %v3908
      %v3910 = vrot.slane %v3909, 4
      %v3912 = vshll.u32 %v3786, 16
      %v3914 = vrot.slane %v3912, 5
      %v3915 = vsel %vm491, %v3910, %v3914
      %v3916 = vshrl.u32 %v3786, 16
      %v3918 = vrot.slane %v3916, 4
      %v3919 = vor.u32 %v3918, %v3914
      %v3920 = vrot.slane %v3919, 4
      %v3922 = vshll.u32 %v3787, 16
      %v3924 = vrot.slane %v3922, 5
      %v3925 = vsel %vm491, %v3920, %v3924
      %v3927 = vshrl.u32 %v3788, 16
      %v3929 = vrot.slane %v3927, 4
      %v3930 = vshll.u32 %v3788, 16
      %v3932 = vrot.slane %v3930, 5
      %v3933 = vor.u32 %v3929, %v3932
      %v3934 = vrot.slane %v3933, 4
      %v3936 = vshll.u32 %v3789, 16
      %v3938 = vrot.slane %v3936, 5
      %v3939 = vsel %vm491, %v3934, %v3938
      %v3940 = vshrl.u32 %v3789, 16
      %v3942 = vrot.slane %v3940, 4
      %v3943 = vor.u32 %v3942, %v3938
      %v3944 = vrot.slane %v3943, 4
      %v3946 = vshll.u32 %v3790, 16
      %v3948 = vrot.slane %v3946, 5
      %v3949 = vsel %vm491, %v3944, %v3948
      %v3951 = vshrl.u32 %v3791, 16
      %v3953 = vrot.slane %v3951, 4
      %v3954 = vshll.u32 %v3791, 16
      %v3956 = vrot.slane %v3954, 5
      %v3957 = vor.u32 %v3953, %v3956
      %v3958 = vrot.slane %v3957, 4
      %v3960 = vshll.u32 %v3792, 16
      %v3962 = vrot.slane %v3960, 5
      %v3963 = vsel %vm491, %v3958, %v3962
      %v3964 = vshrl.u32 %v3792, 16
      %v3966 = vrot.slane %v3964, 4
      %v3967 = vor.u32 %v3966, %v3962
      %v3968 = vrot.slane %v3967, 4
      %v3970 = vshll.u32 %v3793, 16
      %v3972 = vrot.slane %v3970, 5
      %v3973 = vsel %vm491, %v3968, %v3972
      %v3975 = vshrl.u32 %v3794, 16
      %v3977 = vrot.slane %v3975, 4
      %v3978 = vshll.u32 %v3794, 16
      %v3980 = vrot.slane %v3978, 5
      %v3981 = vor.u32 %v3977, %v3980
      %v3982 = vrot.slane %v3981, 4
      %v3984 = vshll.u32 %v3795, 16
      %v3986 = vrot.slane %v3984, 5
      %v3987 = vsel %vm491, %v3982, %v3986
      %v3988 = vshrl.u32 %v3795, 16
      %v3990 = vrot.slane %v3988, 4
      %v3991 = vor.u32 %v3990, %v3986
      %v3992 = vrot.slane %v3991, 4
      %v3994 = vshll.u32 %v3796, 16
      %v3996 = vrot.slane %v3994, 5
      %v3997 = vsel %vm491, %v3992, %v3996
      %v3999 = vshrl.u32 %v3797, 16
      %v4001 = vrot.slane %v3999, 4
      %v4002 = vshll.u32 %v3797, 16
      %v4004 = vrot.slane %v4002, 5
      %v4005 = vor.u32 %v4001, %v4004
      %v4006 = vrot.slane %v4005, 4
      %v4008 = vshll.u32 %v3798, 16
      %v4010 = vrot.slane %v4008, 5
      %v4011 = vsel %vm491, %v4006, %v4010
      %v4012 = vshrl.u32 %v3798, 16
      %v4014 = vrot.slane %v4012, 4
      %v4015 = vor.u32 %v4014, %v4010
      %v4016 = vrot.slane %v4015, 4
      %v4018 = vshll.u32 %v3799, 16
      %v4020 = vrot.slane %v4018, 5
      %v4021 = vsel %vm491, %v4016, %v4020
      %v4023 = vshrl.u32 %v3800, 16
      %v4025 = vrot.slane %v4023, 4
      %v4026 = vshll.u32 %v3800, 16
      %v4028 = vrot.slane %v4026, 5
      %v4029 = vor.u32 %v4025, %v4028
      %v4030 = vrot.slane %v4029, 4
      %v4032 = vshll.u32 %v3801, 16
      %v4034 = vrot.slane %v4032, 5
      %v4035 = vsel %vm491, %v4030, %v4034
      %v4036 = vshrl.u32 %v3801, 16
      %v4038 = vrot.slane %v4036, 4
      %v4039 = vor.u32 %v4038, %v4034
      %v4040 = vrot.slane %v4039, 4
      %v4042 = vshll.u32 %v3802, 16
      %v4044 = vrot.slane %v4042, 5
      %v4045 = vsel %vm491, %v4040, %v4044
      %v4047 = vshrl.u32 %v3803, 16
      %v4049 = vrot.slane %v4047, 4
      %v4050 = vshll.u32 %v3803, 16
      %v4052 = vrot.slane %v4050, 5
      %v4053 = vor.u32 %v4049, %v4052
      %v4054 = vrot.slane %v4053, 4
      %v4056 = vshll.u32 %v3804, 16
      %v4058 = vrot.slane %v4056, 5
      %v4059 = vsel %vm491, %v4054, %v4058
      %v4060 = vshrl.u32 %v3804, 16
      %v4062 = vrot.slane %v4060, 4
      %v4063 = vor.u32 %v4062, %v4058
      %v4064 = vrot.slane %v4063, 4
      %v4066 = vshll.u32 %v3805, 16
      %v4068 = vrot.slane %v4066, 5
      %v4069 = vsel %vm491, %v4064, %v4068
      %v4071 = vshrl.u32 %v3806, 16
      %v4073 = vrot.slane %v4071, 4
      %v4074 = vshll.u32 %v3806, 16
      %v4076 = vrot.slane %v4074, 5
      %v4077 = vor.u32 %v4073, %v4076
      %v4078 = vrot.slane %v4077, 4
      %v4080 = vshll.u32 %v3807, 16
      %v4082 = vrot.slane %v4080, 5
      %v4083 = vsel %vm491, %v4078, %v4082
      %v4084 = vshrl.u32 %v3807, 16
      %v4086 = vrot.slane %v4084, 4
      %v4087 = vor.u32 %v4086, %v4082
      %v4088 = vrot.slane %v4087, 4
      %v4090 = vshll.u32 %v3808, 16
      %v4092 = vrot.slane %v4090, 5
      %v4093 = vsel %vm491, %v4088, %v4092
      %v4095 = vshrl.u32 %v3809, 16
      %v4097 = vrot.slane %v4095, 4
      %v4098 = vshll.u32 %v3809, 16
      %v4100 = vrot.slane %v4098, 5
      %v4101 = vor.u32 %v4097, %v4100
      %v4102 = vrot.slane %v4101, 4
      %v4104 = vshll.u32 %v3810, 16
      %v4106 = vrot.slane %v4104, 5
      %v4107 = vsel %vm491, %v4102, %v4106
      %v4108 = vshrl.u32 %v3810, 16
      %v4110 = vrot.slane %v4108, 4
      %v4111 = vor.u32 %v4110, %v4106
      %v4112 = vrot.slane %v4111, 4
      %v4114 = vshll.u32 %v3811, 16
      %v4116 = vrot.slane %v4114, 5
      %v4117 = vsel %vm491, %v4112, %v4116
      %v4119 = vshrl.u32 %v3812, 16
      %v4121 = vrot.slane %v4119, 4
      %v4122 = vshll.u32 %v3812, 16
      %v4124 = vrot.slane %v4122, 5
      %v4125 = vor.u32 %v4121, %v4124
      %v4126 = vrot.slane %v4125, 4
      %v4128 = vshll.u32 %v3813, 16
      %v4130 = vrot.slane %v4128, 5
      %v4131 = vsel %vm491, %v4126, %v4130
      %v4132 = vshrl.u32 %v3813, 16
      %v4134 = vrot.slane %v4132, 4
      %v4135 = vor.u32 %v4134, %v4130
      %v4136 = vrot.slane %v4135, 4
      %v4138 = vshll.u32 %v3814, 16
      %v4140 = vrot.slane %v4138, 5
      %v4141 = vsel %vm491, %v4136, %v4140
      %v4143 = vshrl.u32 %v3815, 16
      %v4145 = vrot.slane %v4143, 4
      %v4146 = vshll.u32 %v3815, 16
      %v4148 = vrot.slane %v4146, 5
      %v4149 = vor.u32 %v4145, %v4148
      %v4150 = vrot.slane %v4149, 4
      %v4152 = vshll.u32 %v3816, 16
      %v4154 = vrot.slane %v4152, 5
      %v4155 = vsel %vm491, %v4150, %v4154
      %v4156 = vshrl.u32 %v3816, 16
      %v4158 = vrot.slane %v4156, 4
      %v4159 = vor.u32 %v4158, %v4154
      %v4160 = vrot.slane %v4159, 4
      %v4162 = vshll.u32 %v3817, 16
      %v4164 = vrot.slane %v4162, 5
      %v4165 = vsel %vm491, %v4160, %v4164
      %v4167 = vshrl.u32 %v3818, 16
      %v4169 = vrot.slane %v4167, 4
      %v4170 = vshll.u32 %v3818, 16
      %v4172 = vrot.slane %v4170, 5
      %v4173 = vor.u32 %v4169, %v4172
      %v4174 = vrot.slane %v4173, 4
      %v4176 = vshll.u32 %v3819, 16
      %v4178 = vrot.slane %v4176, 5
      %v4179 = vsel %vm491, %v4174, %v4178
      %v4180 = vshrl.u32 %v3819, 16
      %v4182 = vrot.slane %v4180, 4
      %v4183 = vor.u32 %v4182, %v4178
      %v4184 = vrot.slane %v4183, 4
      %v4186 = vshll.u32 %v3820, 16
      %v4188 = vrot.slane %v4186, 5
      %v4189 = vsel %vm491, %v4184, %v4188
      %v4191 = vshrl.u32 %v3821, 16
      %v4193 = vrot.slane %v4191, 4
      %v4194 = vshll.u32 %v3821, 16
      %v4196 = vrot.slane %v4194, 5
      %v4197 = vor.u32 %v4193, %v4196
      %v4198 = vrot.slane %v4197, 4
      %v4200 = vshll.u32 %v3822, 16
      %v4202 = vrot.slane %v4200, 5
      %v4203 = vsel %vm491, %v4198, %v4202
      %v4204 = vshrl.u32 %v3822, 16
      %v4206 = vrot.slane %v4204, 4
      %v4207 = vor.u32 %v4206, %v4202
      %v4208 = vrot.slane %v4207, 4
      %v4210 = vshll.u32 %v3823, 16
      %v4212 = vrot.slane %v4210, 5
      %v4213 = vsel %vm491, %v4208, %v4212
      %v4262 = vrot.slane %v3776, 5
      %v4263 = vrot.slane %v4262, 4
      %v4264 = vrot.slane %v3777, 5
      %v4265 = vsel %vm980, %v4263, %v4264
      %v4266 = vrot.slane %v4264, 4
      %v4267 = vrot.slane %v3778, 5
      %v4268 = vsel %vm980, %v4266, %v4267
      %v4269 = vrot.slane %v3779, 5
      %v4270 = vrot.slane %v4269, 4
      %v4271 = vrot.slane %v3780, 5
      %v4272 = vsel %vm980, %v4270, %v4271
      %v4273 = vrot.slane %v4271, 4
      %v4274 = vrot.slane %v3781, 5
      %v4275 = vsel %vm980, %v4273, %v4274
      %v4276 = vrot.slane %v3782, 5
      %v4277 = vrot.slane %v4276, 4
      %v4278 = vrot.slane %v3783, 5
      %v4279 = vsel %vm980, %v4277, %v4278
      %v4280 = vrot.slane %v4278, 4
      %v4281 = vrot.slane %v3784, 5
      %v4282 = vsel %vm980, %v4280, %v4281
      %v4283 = vrot.slane %v3785, 5
      %v4284 = vrot.slane %v4283, 4
      %v4285 = vrot.slane %v3786, 5
      %v4286 = vsel %vm980, %v4284, %v4285
      %v4287 = vrot.slane %v4285, 4
      %v4288 = vrot.slane %v3787, 5
      %v4289 = vsel %vm980, %v4287, %v4288
      %v4290 = vrot.slane %v3788, 5
      %v4291 = vrot.slane %v4290, 4
      %v4292 = vrot.slane %v3789, 5
      %v4293 = vsel %vm980, %v4291, %v4292
      %v4294 = vrot.slane %v4292, 4
      %v4295 = vrot.slane %v3790, 5
      %v4296 = vsel %vm980, %v4294, %v4295
      %v4297 = vrot.slane %v3791, 5
      %v4298 = vrot.slane %v4297, 4
      %v4299 = vrot.slane %v3792, 5
      %v4300 = vsel %vm980, %v4298, %v4299
      %v4301 = vrot.slane %v4299, 4
      %v4302 = vrot.slane %v3793, 5
      %v4303 = vsel %vm980, %v4301, %v4302
      %v4304 = vrot.slane %v3794, 5
      %v4305 = vrot.slane %v4304, 4
      %v4306 = vrot.slane %v3795, 5
      %v4307 = vsel %vm980, %v4305, %v4306
      %v4308 = vrot.slane %v4306, 4
      %v4309 = vrot.slane %v3796, 5
      %v4310 = vsel %vm980, %v4308, %v4309
      %v4311 = vrot.slane %v3797, 5
      %v4312 = vrot.slane %v4311, 4
      %v4313 = vrot.slane %v3798, 5
      %v4314 = vsel %vm980, %v4312, %v4313
      %v4315 = vrot.slane %v4313, 4
      %v4316 = vrot.slane %v3799, 5
      %v4317 = vsel %vm980, %v4315, %v4316
      %v4318 = vrot.slane %v3800, 5
      %v4319 = vrot.slane %v4318, 4
      %v4320 = vrot.slane %v3801, 5
      %v4321 = vsel %vm980, %v4319, %v4320
      %v4322 = vrot.slane %v4320, 4
      %v4323 = vrot.slane %v3802, 5
      %v4324 = vsel %vm980, %v4322, %v4323
      %v4325 = vrot.slane %v3803, 5
      %v4326 = vrot.slane %v4325, 4
      %v4327 = vrot.slane %v3804, 5
      %v4328 = vsel %vm980, %v4326, %v4327
      %v4329 = vrot.slane %v4327, 4
      %v4330 = vrot.slane %v3805, 5
      %v4331 = vsel %vm980, %v4329, %v4330
      %v4332 = vrot.slane %v3806, 5
      %v4333 = vrot.slane %v4332, 4
      %v4334 = vrot.slane %v3807, 5
      %v4335 = vsel %vm980, %v4333, %v4334
      %v4336 = vrot.slane %v4334, 4
      %v4337 = vrot.slane %v3808, 5
      %v4338 = vsel %vm980, %v4336, %v4337
      %v4339 = vrot.slane %v3809, 5
      %v4340 = vrot.slane %v4339, 4
      %v4341 = vrot.slane %v3810, 5
      %v4342 = vsel %vm980, %v4340, %v4341
      %v4343 = vrot.slane %v4341, 4
      %v4344 = vrot.slane %v3811, 5
      %v4345 = vsel %vm980, %v4343, %v4344
      %v4346 = vrot.slane %v3812, 5
      %v4347 = vrot.slane %v4346, 4
      %v4348 = vrot.slane %v3813, 5
      %v4349 = vsel %vm980, %v4347, %v4348
      %v4350 = vrot.slane %v4348, 4
      %v4351 = vrot.slane %v3814, 5
      %v4352 = vsel %vm980, %v4350, %v4351
      %v4353 = vrot.slane %v3815, 5
      %v4354 = vrot.slane %v4353, 4
      %v4355 = vrot.slane %v3816, 5
      %v4356 = vsel %vm980, %v4354, %v4355
      %v4357 = vrot.slane %v4355, 4
      %v4358 = vrot.slane %v3817, 5
      %v4359 = vsel %vm980, %v4357, %v4358
      %v4360 = vrot.slane %v3818, 5
      %v4361 = vrot.slane %v4360, 4
      %v4362 = vrot.slane %v3819, 5
      %v4363 = vsel %vm980, %v4361, %v4362
      %v4364 = vrot.slane %v4362, 4
      %v4365 = vrot.slane %v3820, 5
      %v4366 = vsel %vm980, %v4364, %v4365
      %v4367 = vrot.slane %v3821, 5
      %v4368 = vrot.slane %v4367, 4
      %v4369 = vrot.slane %v3822, 5
      %v4370 = vsel %vm980, %v4368, %v4369
      %v4371 = vrot.slane %v4369, 4
      %v4372 = vrot.slane %v3823, 5
      %v4373 = vsel %vm980, %v4371, %v4372
      %v4375 = vshrl.u32 %v3824, 16
      %v4377 = vrot.slane %v4375, 4
      %v4378 = vshll.u32 %v3824, 16
      %v4380 = vrot.slane %v4378, 5
      %v4381 = vor.u32 %v4377, %v4380
      %v4382 = vrot.slane %v4381, 4
      %v4384 = vshll.u32 %v3825, 16
      %v4386 = vrot.slane %v4384, 5
      %v4387 = vsel %vm491, %v4382, %v4386
      %v4388 = vshrl.u32 %v3825, 16
      %v4390 = vrot.slane %v4388, 4
      %v4391 = vor.u32 %v4390, %v4386
      %v4392 = vrot.slane %v4391, 4
      %v4394 = vshll.u32 %v3826, 16
      %v4396 = vrot.slane %v4394, 5
      %v4397 = vsel %vm491, %v4392, %v4396
      %v4401 = vrot.slane %v3824, 5
      %v4402 = vrot.slane %v4401, 4
      %v4403 = vrot.slane %v3825, 5
      %v4404 = vsel %vm980, %v4402, %v4403
      %v4405 = vrot.slane %v4403, 4
      %v4406 = vrot.slane %v3826, 5
      %v4407 = vsel %vm980, %v4405, %v4406
      %v4409 = vshrl.u32 %v3827, 16
      %v4411 = vrot.slane %v4409, 4
      %v4412 = vshll.u32 %v3827, 16
      %v4414 = vrot.slane %v4412, 5
      %v4415 = vor.u32 %v4411, %v4414
      %v4416 = vrot.slane %v4415, 4
      %v4418 = vshll.u32 %v3828, 16
      %v4420 = vrot.slane %v4418, 5
      %v4421 = vsel %vm491, %v4416, %v4420
      %v4422 = vshrl.u32 %v3828, 16
      %v4424 = vrot.slane %v4422, 4
      %v4425 = vor.u32 %v4424, %v4420
      %v4426 = vrot.slane %v4425, 4
      %v4428 = vshll.u32 %v3829, 16
      %v4430 = vrot.slane %v4428, 5
      %v4431 = vsel %vm491, %v4426, %v4430
      %v4435 = vrot.slane %v3827, 5
      %v4436 = vrot.slane %v4435, 4
      %v4437 = vrot.slane %v3828, 5
      %v4438 = vsel %vm980, %v4436, %v4437
      %v4439 = vrot.slane %v4437, 4
      %v4440 = vrot.slane %v3829, 5
      %v4441 = vsel %vm980, %v4439, %v4440
      %v4442 = vunpack.c.l.b16 %v3776
      %v4443 = vunpack.c.l.b16 %v3777
      %v4444 = vunpack.c.l.b16 %v3779
      %v4445 = vunpack.c.l.b16 %v3780
      %v4446 = vunpack.c.l.b16 %v3782
      %v4447 = vunpack.c.l.b16 %v3783
      %v4448 = vunpack.c.l.b16 %v3785
      %v4449 = vunpack.c.l.b16 %v3786
      %v4450 = vunpack.c.l.b16 %v3788
      %v4451 = vunpack.c.l.b16 %v3789
      %v4452 = vunpack.c.l.b16 %v3791
      %v4453 = vunpack.c.l.b16 %v3792
      %v4454 = vunpack.c.l.b16 %v3794
      %v4455 = vunpack.c.l.b16 %v3795
      %v4456 = vunpack.c.l.b16 %v3797
      %v4457 = vunpack.c.l.b16 %v3798
      %v4458 = vunpack.c.l.b16 %v3800
      %v4459 = vunpack.c.l.b16 %v3801
      %v4460 = vunpack.c.l.b16 %v3803
      %v4461 = vunpack.c.l.b16 %v3804
      %v4462 = vunpack.c.l.b16 %v3806
      %v4463 = vunpack.c.l.b16 %v3807
      %v4464 = vunpack.c.l.b16 %v3809
      %v4465 = vunpack.c.l.b16 %v3810
      %v4466 = vunpack.c.l.b16 %v3812
      %v4467 = vunpack.c.l.b16 %v3813
      %v4468 = vunpack.c.l.b16 %v3815
      %v4469 = vunpack.c.l.b16 %v3816
      %v4470 = vunpack.c.l.b16 %v3818
      %v4471 = vunpack.c.l.b16 %v3819
      %v4472 = vunpack.c.l.b16 %v3821
      %v4473 = vunpack.c.l.b16 %v3822
      %v4474 = vpack.c.b16 %v4443, %v4442
      %v4475 = vpack.c.b16 %v4445, %v4444
      %v4476 = vpack.c.b16 %v4447, %v4446
      %v4477 = vpack.c.b16 %v4449, %v4448
      %v4478 = vpack.c.b16 %v4451, %v4450
      %v4479 = vpack.c.b16 %v4453, %v4452
      %v4480 = vpack.c.b16 %v4455, %v4454
      %v4481 = vpack.c.b16 %v4457, %v4456
      %v4482 = vpack.c.b16 %v4459, %v4458
      %v4483 = vpack.c.b16 %v4461, %v4460
      %v4484 = vpack.c.b16 %v4463, %v4462
      %v4485 = vpack.c.b16 %v4465, %v4464
      %v4486 = vpack.c.b16 %v4467, %v4466
      %v4487 = vpack.c.b16 %v4469, %v4468
      %v4488 = vpack.c.b16 %v4471, %v4470
      %v4489 = vpack.c.b16 %v4473, %v4472
      %v4506 = vunpack.c.l.b16 %v3843
      %v4507 = vunpack.c.l.b16 %v3853
      %v4508 = vunpack.c.l.b16 %v3867
      %v4509 = vunpack.c.l.b16 %v3877
      %v4510 = vunpack.c.l.b16 %v3891
      %v4511 = vunpack.c.l.b16 %v3901
      %v4512 = vunpack.c.l.b16 %v3915
      %v4513 = vunpack.c.l.b16 %v3925
      %v4514 = vunpack.c.l.b16 %v3939
      %v4515 = vunpack.c.l.b16 %v3949
      %v4516 = vunpack.c.l.b16 %v3963
      %v4517 = vunpack.c.l.b16 %v3973
      %v4518 = vunpack.c.l.b16 %v3987
      %v4519 = vunpack.c.l.b16 %v3997
      %v4520 = vunpack.c.l.b16 %v4011
      %v4521 = vunpack.c.l.b16 %v4021
      %v4522 = vunpack.c.l.b16 %v4035
      %v4523 = vunpack.c.l.b16 %v4045
      %v4524 = vunpack.c.l.b16 %v4059
      %v4525 = vunpack.c.l.b16 %v4069
      %v4526 = vunpack.c.l.b16 %v4083
      %v4527 = vunpack.c.l.b16 %v4093
      %v4528 = vunpack.c.l.b16 %v4107
      %v4529 = vunpack.c.l.b16 %v4117
      %v4530 = vunpack.c.l.b16 %v4131
      %v4531 = vunpack.c.l.b16 %v4141
      %v4532 = vunpack.c.l.b16 %v4155
      %v4533 = vunpack.c.l.b16 %v4165
      %v4534 = vunpack.c.l.b16 %v4179
      %v4535 = vunpack.c.l.b16 %v4189
      %v4536 = vunpack.c.l.b16 %v4203
      %v4537 = vunpack.c.l.b16 %v4213
      %v4538 = vpack.c.b16 %v4507, %v4506
      %v4539 = vpack.c.b16 %v4509, %v4508
      %v4540 = vpack.c.b16 %v4511, %v4510
      %v4541 = vpack.c.b16 %v4513, %v4512
      %v4542 = vpack.c.b16 %v4515, %v4514
      %v4543 = vpack.c.b16 %v4517, %v4516
      %v4544 = vpack.c.b16 %v4519, %v4518
      %v4545 = vpack.c.b16 %v4521, %v4520
      %v4546 = vpack.c.b16 %v4523, %v4522
      %v4547 = vpack.c.b16 %v4525, %v4524
      %v4548 = vpack.c.b16 %v4527, %v4526
      %v4549 = vpack.c.b16 %v4529, %v4528
      %v4550 = vpack.c.b16 %v4531, %v4530
      %v4551 = vpack.c.b16 %v4533, %v4532
      %v4552 = vpack.c.b16 %v4535, %v4534
      %v4553 = vpack.c.b16 %v4537, %v4536
      %v4570 = vunpack.c.l.b16 %v4265
      %v4571 = vunpack.c.l.b16 %v4268
      %v4572 = vunpack.c.l.b16 %v4272
      %v4573 = vunpack.c.l.b16 %v4275
      %v4574 = vunpack.c.l.b16 %v4279
      %v4575 = vunpack.c.l.b16 %v4282
      %v4576 = vunpack.c.l.b16 %v4286
      %v4577 = vunpack.c.l.b16 %v4289
      %v4578 = vunpack.c.l.b16 %v4293
      %v4579 = vunpack.c.l.b16 %v4296
      %v4580 = vunpack.c.l.b16 %v4300
      %v4581 = vunpack.c.l.b16 %v4303
      %v4582 = vunpack.c.l.b16 %v4307
      %v4583 = vunpack.c.l.b16 %v4310
      %v4584 = vunpack.c.l.b16 %v4314
      %v4585 = vunpack.c.l.b16 %v4317
      %v4586 = vunpack.c.l.b16 %v4321
      %v4587 = vunpack.c.l.b16 %v4324
      %v4588 = vunpack.c.l.b16 %v4328
      %v4589 = vunpack.c.l.b16 %v4331
      %v4590 = vunpack.c.l.b16 %v4335
      %v4591 = vunpack.c.l.b16 %v4338
      %v4592 = vunpack.c.l.b16 %v4342
      %v4593 = vunpack.c.l.b16 %v4345
      %v4594 = vunpack.c.l.b16 %v4349
      %v4595 = vunpack.c.l.b16 %v4352
      %v4596 = vunpack.c.l.b16 %v4356
      %v4597 = vunpack.c.l.b16 %v4359
      %v4598 = vunpack.c.l.b16 %v4363
      %v4599 = vunpack.c.l.b16 %v4366
      %v4600 = vunpack.c.l.b16 %v4370
      %v4601 = vunpack.c.l.b16 %v4373
      %v4602 = vpack.c.b16 %v4571, %v4570
      %v4603 = vpack.c.b16 %v4573, %v4572
      %v4604 = vpack.c.b16 %v4575, %v4574
      %v4605 = vpack.c.b16 %v4577, %v4576
      %v4606 = vpack.c.b16 %v4579, %v4578
      %v4607 = vpack.c.b16 %v4581, %v4580
      %v4608 = vpack.c.b16 %v4583, %v4582
      %v4609 = vpack.c.b16 %v4585, %v4584
      %v4610 = vpack.c.b16 %v4587, %v4586
      %v4611 = vpack.c.b16 %v4589, %v4588
      %v4612 = vpack.c.b16 %v4591, %v4590
      %v4613 = vpack.c.b16 %v4593, %v4592
      %v4614 = vpack.c.b16 %v4595, %v4594
      %v4615 = vpack.c.b16 %v4597, %v4596
      %v4616 = vpack.c.b16 %v4599, %v4598
      %v4617 = vpack.c.b16 %v4601, %v4600
      %v4634 = vunpack.c.l.b16 %v3824
      %v4635 = vunpack.c.l.b16 %v3825
      %v4636 = vpack.c.b16 %v4635, %v4634
      %v4638 = vunpack.c.l.b16 %v4387
      %v4639 = vunpack.c.l.b16 %v4397
      %v4640 = vpack.c.b16 %v4639, %v4638
      %v4642 = vunpack.c.l.b16 %v4404
      %v4643 = vunpack.c.l.b16 %v4407
      %v4644 = vpack.c.b16 %v4643, %v4642
      %v4646 = vunpack.c.l.b16 %v3827
      %v4647 = vunpack.c.l.b16 %v3828
      %v4648 = vpack.c.b16 %v4647, %v4646
      %v4650 = vunpack.c.l.b16 %v4421
      %v4651 = vunpack.c.l.b16 %v4431
      %v4652 = vpack.c.b16 %v4651, %v4650
      %v4654 = vunpack.c.l.b16 %v4438
      %v4655 = vunpack.c.l.b16 %v4441
      %v4656 = vpack.c.b16 %v4655, %v4654
      %v4658 = vld [vmem:[%s4] sm:$0xf]
      %v4659 = vld [vmem:[%s4 + $0x4] sm:$0xf]
      %v4660 = vld [vmem:[%s4 + $0x8] sm:$0xf]
      %v4661 = vld [vmem:[%s4 + $0xc] sm:$0xf]
      %v4662 = vld [vmem:[%s4 + $0x10] sm:$0xf]
      %v4663 = vld [vmem:[%s4 + $0x14] sm:$0xf]
      %v4664 = vld [vmem:[%s4 + $0x18] sm:$0xf]
      %v4665 = vld [vmem:[%s4 + $0x1c] sm:$0xf]
      %v4666 = vld [vmem:[%s4 + $0x20] sm:$0xf]
      %v4667 = vld [vmem:[%s4 + $0x24] sm:$0xf]
      %v4668 = vld [vmem:[%s4 + $0x28] sm:$0xf]
      %v4669 = vld [vmem:[%s4 + $0x2c] sm:$0xf]
      %v4670 = vld [vmem:[%s4 + $0x30] sm:$0xf]
      %v4671 = vld [vmem:[%s4 + $0x34] sm:$0xf]
      %v4672 = vld [vmem:[%s4 + $0x38] sm:$0xf]
      %v4673 = vld [vmem:[%s4 + $0x3c] sm:$0xf]
      %v4674 = vld [vmem:[%s4 + $0x40] sm:$0xf]
      %v4675 = vld [vmem:[%s4 + $0x44] sm:$0xf]
      %v4676 = vld [vmem:[%s4 + $0x48] sm:$0xf]
      %v4677 = vld [vmem:[%s4 + $0x4c] sm:$0xf]
      %v4678 = vld [vmem:[%s4 + $0x50] sm:$0xf]
      %v4679 = vld [vmem:[%s4 + $0x54] sm:$0xf]
      %v4680 = vld [vmem:[%s4 + $0x58] sm:$0xf]
      %v4681 = vld [vmem:[%s4 + $0x5c] sm:$0xf]
      %v4682 = vld [vmem:[%s4 + $0x60] sm:$0xf]
      %v4683 = vld [vmem:[%s4 + $0x64] sm:$0xf]
      %v4684 = vld [vmem:[%s4 + $0x68] sm:$0xf]
      %v4685 = vld [vmem:[%s4 + $0x6c] sm:$0xf]
      %v4686 = vld [vmem:[%s4 + $0x70] sm:$0xf]
      %v4687 = vld [vmem:[%s4 + $0x74] sm:$0xf]
      %v4688 = vld [vmem:[%s4 + $0x78] sm:$0xf]
      %v4689 = vld [vmem:[%s4 + $0x7c] sm:$0xf]
      %v4690 = vld [vmem:[%s4 + $0x80] sm:$0xf]
      %v4691 = vld [vmem:[%s4 + $0x84] sm:$0xf]
      %v4692 = vld [vmem:[%s4 + $0x88] sm:$0xf]
      %v4693 = vld [vmem:[%s4 + $0x8c] sm:$0xf]
      %v4694 = vld [vmem:[%s4 + $0x90] sm:$0xf]
      %v4695 = vld [vmem:[%s4 + $0x94] sm:$0xf]
      %v4696 = vld [vmem:[%s4 + $0x98] sm:$0xf]
      %v4697 = vld [vmem:[%s4 + $0x9c] sm:$0xf]
      %v4698 = vld [vmem:[%s4 + $0xa0] sm:$0xf]
      %v4699 = vld [vmem:[%s4 + $0xa4] sm:$0xf]
      %v4700 = vld [vmem:[%s4 + $0xa8] sm:$0xf]
      %v4701 = vld [vmem:[%s4 + $0xac] sm:$0xf]
      %v4702 = vld [vmem:[%s4 + $0xb0] sm:$0xf]
      %v4703 = vld [vmem:[%s4 + $0xb4] sm:$0xf]
      %v4704 = vld [vmem:[%s4 + $0xb8] sm:$0xf]
      %v4705 = vld [vmem:[%s4 + $0xbc] sm:$0xf]
      %v4706 = vld [vmem:[%s4 + $0xc0] sm:$0xf]
      %v4707 = vld [vmem:[%s4 + $0xc4] sm:$0xf]
      %v4708 = vld [vmem:[%s4 + $0xc8] sm:$0xf]
      %v4709 = vld [vmem:[%s4 + $0xcc] sm:$0xf]
      %v4710 = vld [vmem:[%s4 + $0xd0] sm:$0xf]
      %v4711 = vld [vmem:[%s4 + $0xd4] sm:$0xf]
      %v4712 = vld [vmem:[%s4 + $0xd8] sm:$0xf]
      %v4713 = vld [vmem:[%s4 + $0xdc] sm:$0xf]
      %v4714 = vld [vmem:[%s4 + $0xe0] sm:$0xf]
      %v4715 = vld [vmem:[%s4 + $0xe4] sm:$0xf]
      %v4716 = vld [vmem:[%s4 + $0xe8] sm:$0xf]
      %v4717 = vld [vmem:[%s4 + $0xec] sm:$0xf]
      %v4718 = vld [vmem:[%s4 + $0xf0] sm:$0xf]
      %v4719 = vld [vmem:[%s4 + $0xf4] sm:$0xf]
      %v4720 = vld [vmem:[%s4 + $0xf8] sm:$0xf]
      %v4721 = vld [vmem:[%s4 + $0xfc] sm:$0xf]
      %v4722 = vld [vmem:[%s4 + $0x100] sm:$0xf]
      %v4723 = vld [vmem:[%s4 + $0x104] sm:$0xf]
      %v4724 = vld [vmem:[%s4 + $0x108] sm:$0xf]
      %v4725 = vld [vmem:[%s4 + $0x10c] sm:$0xf]
      %v4726 = vld [vmem:[%s4 + $0x110] sm:$0xf]
      %v4727 = vld [vmem:[%s4 + $0x114] sm:$0xf]
      %v4728 = vld [vmem:[%s4 + $0x118] sm:$0xf]
      %v4729 = vld [vmem:[%s4 + $0x11c] sm:$0xf]
      %v4730 = vld [vmem:[%s4 + $0x120] sm:$0xf]
      %v4731 = vld [vmem:[%s4 + $0x124] sm:$0xf]
      %v4732 = vld [vmem:[%s4 + $0x128] sm:$0xf]
      %v4733 = vld [vmem:[%s4 + $0x12c] sm:$0xf]
      %v4734 = vld [vmem:[%s4 + $0x130] sm:$0xf]
      %v4735 = vld [vmem:[%s4 + $0x134] sm:$0xf]
      %v4736 = vld [vmem:[%s4 + $0x138] sm:$0xf]
      %v4737 = vld [vmem:[%s4 + $0x13c] sm:$0xf]
      %v4738 = vld [vmem:[%s4 + $0x140] sm:$0xf]
      %v4739 = vld [vmem:[%s4 + $0x144] sm:$0xf]
      %v4740 = vld [vmem:[%s4 + $0x148] sm:$0xf]
      %v4741 = vld [vmem:[%s4 + $0x14c] sm:$0xf]
      %v4742 = vld [vmem:[%s4 + $0x150] sm:$0xf]
      %v4743 = vld [vmem:[%s4 + $0x154] sm:$0xf]
      %v4744 = vld [vmem:[%s4 + $0x158] sm:$0xf]
      %v4745 = vld [vmem:[%s4 + $0x15c] sm:$0xf]
      %v4746 = vld [vmem:[%s4 + $0x160] sm:$0xf]
      %v4747 = vld [vmem:[%s4 + $0x164] sm:$0xf]
      %v4748 = vld [vmem:[%s4 + $0x168] sm:$0xf]
      %v4749 = vld [vmem:[%s4 + $0x16c] sm:$0xf]
      %v4750 = vld [vmem:[%s4 + $0x170] sm:$0xf]
      %v4751 = vld [vmem:[%s4 + $0x174] sm:$0xf]
      %v4752 = vld [vmem:[%s4 + $0x178] sm:$0xf]
      %v4753 = vld [vmem:[%s4 + $0x17c] sm:$0xf]
      %v4754 = vld [vmem:[%s4 + $0x180] sm:$0xf]
      %v4755 = vld [vmem:[%s4 + $0x184] sm:$0xf]
      %v4756 = vld [vmem:[%s4 + $0x188] sm:$0xf]
      %v4757 = vld [vmem:[%s4 + $0x18c] sm:$0xf]
      %v4758 = vld [vmem:[%s4 + $0x190] sm:$0xf]
      %v4759 = vld [vmem:[%s4 + $0x194] sm:$0xf]
      %v4760 = vld [vmem:[%s4 + $0x198] sm:$0xf]
      %v4761 = vld [vmem:[%s4 + $0x19c] sm:$0xf]
      %v4762 = vld [vmem:[%s4 + $0x1a0] sm:$0xf]
      %v4763 = vld [vmem:[%s4 + $0x1a4] sm:$0xf]
      %v4764 = vld [vmem:[%s4 + $0x1a8] sm:$0xf]
      %v4765 = vld [vmem:[%s4 + $0x1ac] sm:$0xf]
      %v4766 = vld [vmem:[%s4 + $0x1b0] sm:$0xf]
      %v4767 = vld [vmem:[%s4 + $0x1b4] sm:$0xf]
      %v4768 = vld [vmem:[%s4 + $0x1b8] sm:$0xf]
      %v4769 = vld [vmem:[%s4 + $0x1bc] sm:$0xf]
      %v4770 = vld [vmem:[%s4 + $0x1c0] sm:$0xf]
      %v4771 = vld [vmem:[%s4 + $0x1c4] sm:$0xf]
      %v4772 = vld [vmem:[%s4 + $0x1c8] sm:$0xf]
      %v4773 = vld [vmem:[%s4 + $0x1cc] sm:$0xf]
      %v4774 = vld [vmem:[%s4 + $0x1d0] sm:$0xf]
      %v4775 = vld [vmem:[%s4 + $0x1d4] sm:$0xf]
      %v4776 = vld [vmem:[%s4 + $0x1d8] sm:$0xf]
      %v4777 = vld [vmem:[%s4 + $0x1dc] sm:$0xf]
      %v4778 = vld [vmem:[%s4 + $0x1e0] sm:$0xf]
      %v4779 = vld [vmem:[%s4 + $0x1e4] sm:$0xf]
      %v4780 = vld [vmem:[%s4 + $0x1e8] sm:$0xf]
      %v4781 = vld [vmem:[%s4 + $0x1ec] sm:$0xf]
      %v4782 = vld [vmem:[%s4 + $0x1f0] sm:$0xf]
      %v4783 = vld [vmem:[%s4 + $0x1f4] sm:$0xf]
      %v4784 = vld [vmem:[%s4 + $0x1f8] sm:$0xf]
      %v4785 = vld [vmem:[%s4 + $0x1fc] sm:$0xf]
      %v4786 = vld [vmem:[%s4 + $0x200] sm:$0xf]
      %v4787 = vld [vmem:[%s4 + $0x204] sm:$0xf]
      %v4788 = vld [vmem:[%s4 + $0x208] sm:$0xf]
      %v4789 = vld [vmem:[%s4 + $0x20c] sm:$0xf]
      %v4790 = vld [vmem:[%s4 + $0x210] sm:$0xf]
      %v4791 = vld [vmem:[%s4 + $0x214] sm:$0xf]
      %v4792 = vld [vmem:[%s4 + $0x218] sm:$0xf]
      %v4793 = vld [vmem:[%s4 + $0x21c] sm:$0xf]
      %v4794 = vld [vmem:[%s4 + $0x220] sm:$0xf]
      %v4795 = vld [vmem:[%s4 + $0x224] sm:$0xf]
      %v4796 = vld [vmem:[%s4 + $0x228] sm:$0xf]
      %v4797 = vld [vmem:[%s4 + $0x22c] sm:$0xf]
      %v4798 = vld [vmem:[%s4 + $0x230] sm:$0xf]
      %v4799 = vld [vmem:[%s4 + $0x234] sm:$0xf]
      %v4800 = vld [vmem:[%s4 + $0x238] sm:$0xf]
      %v4801 = vld [vmem:[%s4 + $0x23c] sm:$0xf]
      %v4802 = vld [vmem:[%s5] sm:$0x1]
      %v4804 = vlaneseq
      %v4805 = vshrl.u32 %v4804, 7
      %v4806 = vsub.s32 0, %v4805
      %v4807 = vrot.slane %v4802, %v4806
      %v4953 = vunpack.c.l.b16 %v4658
      %v4954 = vunpack.c.l.b16 %v4659
      %v4955 = vunpack.c.l.b16 %v4660
      %v4956 = vunpack.c.l.b16 %v4661
      %v4957 = vunpack.c.l.b16 %v4662
      %v4958 = vunpack.c.l.b16 %v4663
      %v4959 = vunpack.c.l.b16 %v4664
      %v4960 = vunpack.c.l.b16 %v4665
      %v4961 = vunpack.c.l.b16 %v4666
      %v4962 = vunpack.c.l.b16 %v4667
      %v4963 = vunpack.c.l.b16 %v4668
      %v4964 = vunpack.c.l.b16 %v4669
      %v4965 = vunpack.c.l.b16 %v4670
      %v4966 = vunpack.c.l.b16 %v4671
      %v4967 = vunpack.c.l.b16 %v4672
      %v4968 = vunpack.c.l.b16 %v4673
      %v4969 = vunpack.c.l.b16 %v4674
      %v4970 = vunpack.c.l.b16 %v4675
      %v4971 = vunpack.c.l.b16 %v4676
      %v4972 = vunpack.c.l.b16 %v4677
      %v4973 = vunpack.c.l.b16 %v4678
      %v4974 = vunpack.c.l.b16 %v4679
      %v4975 = vunpack.c.l.b16 %v4680
      %v4976 = vunpack.c.l.b16 %v4681
      %v4977 = vunpack.c.l.b16 %v4682
      %v4978 = vunpack.c.l.b16 %v4683
      %v4979 = vunpack.c.l.b16 %v4684
      %v4980 = vunpack.c.l.b16 %v4685
      %v4981 = vunpack.c.l.b16 %v4686
      %v4982 = vunpack.c.l.b16 %v4687
      %v4983 = vunpack.c.l.b16 %v4688
      %v4984 = vunpack.c.l.b16 %v4689
      %v4985 = vunpack.c.l.b16 %v4690
      %v4986 = vunpack.c.l.b16 %v4691
      %v4987 = vunpack.c.l.b16 %v4692
      %v4988 = vunpack.c.l.b16 %v4693
      %v4989 = vunpack.c.l.b16 %v4694
      %v4990 = vunpack.c.l.b16 %v4695
      %v4991 = vunpack.c.l.b16 %v4696
      %v4992 = vunpack.c.l.b16 %v4697
      %v4993 = vunpack.c.l.b16 %v4698
      %v4994 = vunpack.c.l.b16 %v4699
      %v4995 = vunpack.c.l.b16 %v4700
      %v4996 = vunpack.c.l.b16 %v4701
      %v4997 = vunpack.c.l.b16 %v4702
      %v4998 = vunpack.c.l.b16 %v4703
      %v4999 = vunpack.c.l.b16 %v4704
      %v5000 = vunpack.c.l.b16 %v4705
      %v5001 = vunpack.c.l.b16 %v4706
      %v5002 = vunpack.c.l.b16 %v4707
      %v5003 = vunpack.c.l.b16 %v4708
      %v5004 = vunpack.c.l.b16 %v4709
      %v5005 = vunpack.c.l.b16 %v4710
      %v5006 = vunpack.c.l.b16 %v4711
      %v5007 = vunpack.c.l.b16 %v4712
      %v5008 = vunpack.c.l.b16 %v4713
      %v5009 = vunpack.c.l.b16 %v4714
      %v5010 = vunpack.c.l.b16 %v4715
      %v5011 = vunpack.c.l.b16 %v4716
      %v5012 = vunpack.c.l.b16 %v4717
      %v5013 = vunpack.c.l.b16 %v4718
      %v5014 = vunpack.c.l.b16 %v4719
      %v5015 = vunpack.c.l.b16 %v4720
      %v5016 = vunpack.c.l.b16 %v4721
      %v5017 = vunpack.c.l.b16 %v4722
      %v5018 = vunpack.c.l.b16 %v4723
      %v5019 = vunpack.c.l.b16 %v4724
      %v5020 = vunpack.c.l.b16 %v4725
      %v5021 = vunpack.c.l.b16 %v4726
      %v5022 = vunpack.c.l.b16 %v4727
      %v5023 = vunpack.c.l.b16 %v4728
      %v5024 = vunpack.c.l.b16 %v4729
      %v5025 = vunpack.c.l.b16 %v4730
      %v5026 = vunpack.c.l.b16 %v4731
      %v5027 = vunpack.c.l.b16 %v4732
      %v5028 = vunpack.c.l.b16 %v4733
      %v5029 = vunpack.c.l.b16 %v4734
      %v5030 = vunpack.c.l.b16 %v4735
      %v5031 = vunpack.c.l.b16 %v4736
      %v5032 = vunpack.c.l.b16 %v4737
      %v5033 = vunpack.c.l.b16 %v4738
      %v5034 = vunpack.c.l.b16 %v4739
      %v5035 = vunpack.c.l.b16 %v4740
      %v5036 = vunpack.c.l.b16 %v4741
      %v5037 = vunpack.c.l.b16 %v4742
      %v5038 = vunpack.c.l.b16 %v4743
      %v5039 = vunpack.c.l.b16 %v4744
      %v5040 = vunpack.c.l.b16 %v4745
      %v5041 = vunpack.c.l.b16 %v4746
      %v5042 = vunpack.c.l.b16 %v4747
      %v5043 = vunpack.c.l.b16 %v4748
      %v5044 = vunpack.c.l.b16 %v4749
      %v5045 = vunpack.c.l.b16 %v4750
      %v5046 = vunpack.c.l.b16 %v4751
      %v5047 = vunpack.c.l.b16 %v4752
      %v5048 = vunpack.c.l.b16 %v4753
      %v5049 = vunpack.c.l.b16 %v4754
      %v5050 = vunpack.c.l.b16 %v4755
      %v5051 = vunpack.c.l.b16 %v4756
      %v5052 = vunpack.c.l.b16 %v4757
      %v5053 = vunpack.c.l.b16 %v4758
      %v5054 = vunpack.c.l.b16 %v4759
      %v5055 = vunpack.c.l.b16 %v4760
      %v5056 = vunpack.c.l.b16 %v4761
      %v5057 = vunpack.c.l.b16 %v4762
      %v5058 = vunpack.c.l.b16 %v4763
      %v5059 = vunpack.c.l.b16 %v4764
      %v5060 = vunpack.c.l.b16 %v4765
      %v5061 = vunpack.c.l.b16 %v4766
      %v5062 = vunpack.c.l.b16 %v4767
      %v5063 = vunpack.c.l.b16 %v4768
      %v5064 = vunpack.c.l.b16 %v4769
      %v5065 = vunpack.c.l.b16 %v4770
      %v5066 = vunpack.c.l.b16 %v4771
      %v5067 = vunpack.c.l.b16 %v4772
      %v5068 = vunpack.c.l.b16 %v4773
      %v5069 = vunpack.c.l.b16 %v4774
      %v5070 = vunpack.c.l.b16 %v4775
      %v5071 = vunpack.c.l.b16 %v4776
      %v5072 = vunpack.c.l.b16 %v4777
      %v5073 = vunpack.c.l.b16 %v4778
      %v5074 = vunpack.c.l.b16 %v4779
      %v5075 = vunpack.c.l.b16 %v4780
      %v5076 = vunpack.c.l.b16 %v4781
      %v5077 = vunpack.c.l.b16 %v4782
      %v5078 = vunpack.c.l.b16 %v4783
      %v5079 = vunpack.c.l.b16 %v4784
      %v5080 = vunpack.c.l.b16 %v4785
      %v5081 = vunpack.c.l.b16 %v4786
      %v5082 = vunpack.c.l.b16 %v4787
      %v5083 = vunpack.c.l.b16 %v4788
      %v5084 = vunpack.c.l.b16 %v4789
      %v5085 = vunpack.c.l.b16 %v4790
      %v5086 = vunpack.c.l.b16 %v4791
      %v5087 = vunpack.c.l.b16 %v4792
      %v5088 = vunpack.c.l.b16 %v4793
      %v5089 = vunpack.c.l.b16 %v4794
      %v5090 = vunpack.c.l.b16 %v4795
      %v5091 = vunpack.c.l.b16 %v4796
      %v5092 = vunpack.c.l.b16 %v4797
      %v5093 = vunpack.c.l.b16 %v4798
      %v5094 = vunpack.c.l.b16 %v4799
      %v5095 = vunpack.c.l.b16 %v4800
      %v5096 = vunpack.c.l.b16 %v4801
      %v5097 = vpack.c.b16 %v4954, %v4953
      %v5098 = vpack.c.b16 %v4956, %v4955
      %v5099 = vpack.c.b16 %v4958, %v4957
      %v5100 = vpack.c.b16 %v4960, %v4959
      %v5101 = vpack.c.b16 %v4962, %v4961
      %v5102 = vpack.c.b16 %v4964, %v4963
      %v5103 = vpack.c.b16 %v4966, %v4965
      %v5104 = vpack.c.b16 %v4968, %v4967
      %v5105 = vpack.c.b16 %v4970, %v4969
      %v5106 = vpack.c.b16 %v4972, %v4971
      %v5107 = vpack.c.b16 %v4974, %v4973
      %v5108 = vpack.c.b16 %v4976, %v4975
      %v5109 = vpack.c.b16 %v4978, %v4977
      %v5110 = vpack.c.b16 %v4980, %v4979
      %v5111 = vpack.c.b16 %v4982, %v4981
      %v5112 = vpack.c.b16 %v4984, %v4983
      %v5113 = vpack.c.b16 %v4986, %v4985
      %v5114 = vpack.c.b16 %v4988, %v4987
      %v5115 = vpack.c.b16 %v4990, %v4989
      %v5116 = vpack.c.b16 %v4992, %v4991
      %v5117 = vpack.c.b16 %v4994, %v4993
      %v5118 = vpack.c.b16 %v4996, %v4995
      %v5119 = vpack.c.b16 %v4998, %v4997
      %v5120 = vpack.c.b16 %v5000, %v4999
      %v5121 = vpack.c.b16 %v5002, %v5001
      %v5122 = vpack.c.b16 %v5004, %v5003
      %v5123 = vpack.c.b16 %v5006, %v5005
      %v5124 = vpack.c.b16 %v5008, %v5007
      %v5125 = vpack.c.b16 %v5010, %v5009
      %v5126 = vpack.c.b16 %v5012, %v5011
      %v5127 = vpack.c.b16 %v5014, %v5013
      %v5128 = vpack.c.b16 %v5016, %v5015
      %v5129 = vpack.c.b16 %v5018, %v5017
      %v5130 = vpack.c.b16 %v5020, %v5019
      %v5131 = vpack.c.b16 %v5022, %v5021
      %v5132 = vpack.c.b16 %v5024, %v5023
      %v5133 = vpack.c.b16 %v5026, %v5025
      %v5134 = vpack.c.b16 %v5028, %v5027
      %v5135 = vpack.c.b16 %v5030, %v5029
      %v5136 = vpack.c.b16 %v5032, %v5031
      %v5137 = vpack.c.b16 %v5034, %v5033
      %v5138 = vpack.c.b16 %v5036, %v5035
      %v5139 = vpack.c.b16 %v5038, %v5037
      %v5140 = vpack.c.b16 %v5040, %v5039
      %v5141 = vpack.c.b16 %v5042, %v5041
      %v5142 = vpack.c.b16 %v5044, %v5043
      %v5143 = vpack.c.b16 %v5046, %v5045
      %v5144 = vpack.c.b16 %v5048, %v5047
      %v5145 = vpack.c.b16 %v5050, %v5049
      %v5146 = vpack.c.b16 %v5052, %v5051
      %v5147 = vpack.c.b16 %v5054, %v5053
      %v5148 = vpack.c.b16 %v5056, %v5055
      %v5149 = vpack.c.b16 %v5058, %v5057
      %v5150 = vpack.c.b16 %v5060, %v5059
      %v5151 = vpack.c.b16 %v5062, %v5061
      %v5152 = vpack.c.b16 %v5064, %v5063
      %v5153 = vpack.c.b16 %v5066, %v5065
      %v5154 = vpack.c.b16 %v5068, %v5067
      %v5155 = vpack.c.b16 %v5070, %v5069
      %v5156 = vpack.c.b16 %v5072, %v5071
      %v5157 = vpack.c.b16 %v5074, %v5073
      %v5158 = vpack.c.b16 %v5076, %v5075
      %v5159 = vpack.c.b16 %v5078, %v5077
      %v5160 = vpack.c.b16 %v5080, %v5079
      %v5161 = vpack.c.b16 %v5082, %v5081
      %v5162 = vpack.c.b16 %v5084, %v5083
      %v5163 = vpack.c.b16 %v5086, %v5085
      %v5164 = vpack.c.b16 %v5088, %v5087
      %v5165 = vpack.c.b16 %v5090, %v5089
      %v5166 = vpack.c.b16 %v5092, %v5091
      %v5167 = vpack.c.b16 %v5094, %v5093
      %v5168 = vpack.c.b16 %v5096, %v5095
      %5241 = vmatprep.subr.bf16.mxu0 0
      %5242 = vmatpush1.bf16.msra.mxu0 %v5097
      %5243 = vmatprep.subr.bf16.mxu0 0
      %5244 = vmatpush1.bf16.msra.mxu0 %v5098
      %5245 = vmatprep.subr.bf16.mxu0 0
      %5246 = vmatpush1.bf16.msra.mxu0 %v5099
      %5247 = vmatprep.subr.bf16.mxu0 0
      %5248 = vmatpush1.bf16.msra.mxu0 %v5100
      %5249 = vmatprep.subr.bf16.mxu0 0
      %5250 = vmatpush1.bf16.msra.mxu0 %v5101
      %5251 = vmatprep.subr.bf16.mxu0 0
      %5252 = vmatpush1.bf16.msra.mxu0 %v5102
      %5253 = vmatprep.subr.bf16.mxu0 0
      %5254 = vmatpush1.bf16.msra.mxu0 %v5103
      %5255 = vmatprep.subr.bf16.mxu0 0
      %5256 = vmatpush1.bf16.msra.mxu0 %v5104
      %5257 = vmatprep.subr.bf16.mxu0 0
      %5258 = vmatpush1.bf16.msra.mxu0 %v5105
      %5259 = vmatprep.subr.bf16.mxu0 0
      %5260 = vmatpush1.bf16.msra.mxu0 %v5106
      %5261 = vmatprep.subr.bf16.mxu0 0
      %5262 = vmatpush1.bf16.msra.mxu0 %v5107
      %5263 = vmatprep.subr.bf16.mxu0 0
      %5264 = vmatpush1.bf16.msra.mxu0 %v5108
      %5265 = vmatprep.subr.bf16.mxu0 0
      %5266 = vmatpush1.bf16.msra.mxu0 %v5109
      %5267 = vmatprep.subr.bf16.mxu0 0
      %5268 = vmatpush1.bf16.msra.mxu0 %v5110
      %5269 = vmatprep.subr.bf16.mxu0 0
      %5270 = vmatpush1.bf16.msra.mxu0 %v5111
      %5271 = vmatprep.subr.bf16.mxu0 0
      %5272 = vmatpush1.bf16.msra.mxu0 %v5112
      %5273 = vmatprep.mubr.bf16.mxu0 %v4538
      %5274 = vmatmul.mubr.bf16.gmra.mrb[0].mxu0 %v4474
      %v5275 = vpop.f32.mrb[0].mxu0
      %v5276 = vadd.f32 %v4807, %v5275
      %v5277 = vpop.f32.mrb[0].mxu0
      %v5278 = vpop.f32.mrb[0].mxu0
      %v5279 = vadd.f32 %v4807, %v5278
      %v5280 = vpop.f32.mrb[0].mxu0
      %5281 = vmatprep.mubr.bf16.mxu0 %v4539
      %5282 = vmatmul.mubr.bf16.gmra.mrb[0].mxu0 %v4475
      %v5283 = vpop.f32.mrb[0].mxu0
      %v5284 = vadd.f32 %v4807, %v5283
      %v5285 = vpop.f32.mrb[0].mxu0
      %v5286 = vpop.f32.mrb[0].mxu0
      %v5287 = vadd.f32 %v4807, %v5286
      %v5288 = vpop.f32.mrb[0].mxu0
      %5289 = vmatprep.mubr.bf16.mxu0 %v4540
      %5290 = vmatmul.mubr.bf16.gmra.mrb[0].mxu0 %v4476
      %v5291 = vpop.f32.mrb[0].mxu0
      %v5292 = vadd.f32 %v4807, %v5291
      %v5293 = vpop.f32.mrb[0].mxu0
      %v5294 = vpop.f32.mrb[0].mxu0
      %v5295 = vadd.f32 %v4807, %v5294
      %v5296 = vpop.f32.mrb[0].mxu0
      %5297 = vmatprep.mubr.bf16.mxu0 %v4541
      %5298 = vmatmul.mubr.bf16.gmra.mrb[0].mxu0 %v4477
      %v5299 = vpop.f32.mrb[0].mxu0
      %v5300 = vadd.f32 %v4807, %v5299
      %v5301 = vpop.f32.mrb[0].mxu0
      %v5302 = vpop.f32.mrb[0].mxu0
      %v5303 = vadd.f32 %v4807, %v5302
      %v5304 = vpop.f32.mrb[0].mxu0
      %5305 = vmatprep.mubr.bf16.mxu0 %v4542
      %5306 = vmatmul.mubr.bf16.gmra.mrb[0].mxu0 %v4478
      %v5307 = vpop.f32.mrb[0].mxu0
      %v5308 = vadd.f32 %v4807, %v5307
      %v5309 = vpop.f32.mrb[0].mxu0
      %v5310 = vpop.f32.mrb[0].mxu0
      %v5311 = vadd.f32 %v4807, %v5310
      %v5312 = vpop.f32.mrb[0].mxu0
      %5313 = vmatprep.mubr.bf16.mxu0 %v4543
      %5314 = vmatmul.mubr.bf16.gmra.mrb[0].mxu0 %v4479
      %v5315 = vpop.f32.mrb[0].mxu0
      %v5316 = vadd.f32 %v4807, %v5315
      %v5317 = vpop.f32.mrb[0].mxu0
      %v5318 = vpop.f32.mrb[0].mxu0
      %v5319 = vadd.f32 %v4807, %v5318
      %v5320 = vpop.f32.mrb[0].mxu0
      %5321 = vmatprep.mubr.bf16.mxu0 %v4544
      %5322 = vmatmul.mubr.bf16.gmra.mrb[0].mxu0 %v4480
      %v5323 = vpop.f32.mrb[0].mxu0
      %v5324 = vadd.f32 %v4807, %v5323
      %v5325 = vpop.f32.mrb[0].mxu0
      %v5326 = vpop.f32.mrb[0].mxu0
      %v5327 = vadd.f32 %v4807, %v5326
      %v5328 = vpop.f32.mrb[0].mxu0
      %5329 = vmatprep.mubr.bf16.mxu0 %v4545
      %5330 = vmatmul.mubr.bf16.gmra.mrb[0].mxu0 %v4481
      %v5331 = vpop.f32.mrb[0].mxu0
      %v5332 = vadd.f32 %v4807, %v5331
      %v5333 = vpop.f32.mrb[0].mxu0
      %v5334 = vpop.f32.mrb[0].mxu0
      %v5335 = vadd.f32 %v4807, %v5334
      %v5336 = vpop.f32.mrb[0].mxu0
      %5337 = vmatprep.mubr.bf16.mxu0 %v4546
      %5338 = vmatmul.mubr.bf16.gmra.mrb[0].mxu0 %v4482
      %v5339 = vpop.f32.mrb[0].mxu0
      %v5340 = vadd.f32 %v4807, %v5339
      %v5341 = vpop.f32.mrb[0].mxu0
      %v5342 = vpop.f32.mrb[0].mxu0
      %v5343 = vadd.f32 %v4807, %v5342
      %v5344 = vpop.f32.mrb[0].mxu0
      %5345 = vmatprep.mubr.bf16.mxu0 %v4547
      %5346 = vmatmul.mubr.bf16.gmra.mrb[0].mxu0 %v4483
      %v5347 = vpop.f32.mrb[0].mxu0
      %v5348 = vadd.f32 %v4807, %v5347
      %v5349 = vpop.f32.mrb[0].mxu0
      %v5350 = vpop.f32.mrb[0].mxu0
      %v5351 = vadd.f32 %v4807, %v5350
      %v5352 = vpop.f32.mrb[0].mxu0
      %5353 = vmatprep.mubr.bf16.mxu0 %v4548
      %5354 = vmatmul.mubr.bf16.gmra.mrb[0].mxu0 %v4484
      %v5355 = vpop.f32.mrb[0].mxu0
      %v5356 = vadd.f32 %v4807, %v5355
      %v5357 = vpop.f32.mrb[0].mxu0
      %v5358 = vpop.f32.mrb[0].mxu0
      %v5359 = vadd.f32 %v4807, %v5358
      %v5360 = vpop.f32.mrb[0].mxu0
      %5361 = vmatprep.mubr.bf16.mxu0 %v4549
      %5362 = vmatmul.mubr.bf16.gmra.mrb[0].mxu0 %v4485
      %v5363 = vpop.f32.mrb[0].mxu0
      %v5364 = vadd.f32 %v4807, %v5363
      %v5365 = vpop.f32.mrb[0].mxu0
      %v5366 = vpop.f32.mrb[0].mxu0
      %v5367 = vadd.f32 %v4807, %v5366
      %v5368 = vpop.f32.mrb[0].mxu0
      %5369 = vmatprep.mubr.bf16.mxu0 %v4550
      %5370 = vmatmul.mubr.bf16.gmra.mrb[0].mxu0 %v4486
      %v5371 = vpop.f32.mrb[0].mxu0
      %v5372 = vadd.f32 %v4807, %v5371
      %v5373 = vpop.f32.mrb[0].mxu0
      %v5374 = vpop.f32.mrb[0].mxu0
      %v5375 = vadd.f32 %v4807, %v5374
      %v5376 = vpop.f32.mrb[0].mxu0
      %5377 = vmatprep.mubr.bf16.mxu0 %v4551
      %5378 = vmatmul.mubr.bf16.gmra.mrb[0].mxu0 %v4487
      %v5379 = vpop.f32.mrb[0].mxu0
      %v5380 = vadd.f32 %v4807, %v5379
      %v5381 = vpop.f32.mrb[0].mxu0
      %v5382 = vpop.f32.mrb[0].mxu0
      %v5383 = vadd.f32 %v4807, %v5382
      %v5384 = vpop.f32.mrb[0].mxu0
      %5385 = vmatprep.mubr.bf16.mxu0 %v4552
      %5386 = vmatmul.mubr.bf16.gmra.mrb[0].mxu0 %v4488
      %v5387 = vpop.f32.mrb[0].mxu0
      %v5388 = vadd.f32 %v4807, %v5387
      %v5389 = vpop.f32.mrb[0].mxu0
      %v5390 = vpop.f32.mrb[0].mxu0
      %v5391 = vadd.f32 %v4807, %v5390
      %v5392 = vpop.f32.mrb[0].mxu0
      %5393 = vmatprep.mubr.bf16.mxu0 %v4553
      %5394 = vmatmul.mubr.bf16.gmra.mrb[0].mxu0 %v4489
      %v5395 = vpop.f32.mrb[0].mxu0
      %v5396 = vadd.f32 %v4807, %v5395
      %v5397 = vpop.f32.mrb[0].mxu0
      %v5398 = vpop.f32.mrb[0].mxu0
      %v5399 = vadd.f32 %v4807, %v5398
      %v5400 = vpop.f32.mrb[0].mxu0
      %5401 = vdwg.mxu0
      %5402 = vmatprep.subr.bf16.mxu0 0
      %5403 = vmatpush1.bf16.msra.mxu0 %v5113
      %5404 = vmatprep.subr.bf16.mxu0 0
      %5405 = vmatpush1.bf16.msra.mxu0 %v5114
      %5406 = vmatprep.subr.bf16.mxu0 0
      %5407 = vmatpush1.bf16.msra.mxu0 %v5115
      %5408 = vmatprep.subr.bf16.mxu0 0
      %5409 = vmatpush1.bf16.msra.mxu0 %v5116
      %5410 = vmatprep.subr.bf16.mxu0 0
      %5411 = vmatpush1.bf16.msra.mxu0 %v5117
      %5412 = vmatprep.subr.bf16.mxu0 0
      %5413 = vmatpush1.bf16.msra.mxu0 %v5118
      %5414 = vmatprep.subr.bf16.mxu0 0
      %5415 = vmatpush1.bf16.msra.mxu0 %v5119
      %5416 = vmatprep.subr.bf16.mxu0 0
      %5417 = vmatpush1.bf16.msra.mxu0 %v5120
      %5418 = vmatprep.subr.bf16.mxu0 0
      %5419 = vmatpush1.bf16.msra.mxu0 %v5121
      %5420 = vmatprep.subr.bf16.mxu0 0
      %5421 = vmatpush1.bf16.msra.mxu0 %v5122
      %5422 = vmatprep.subr.bf16.mxu0 0
      %5423 = vmatpush1.bf16.msra.mxu0 %v5123
      %5424 = vmatprep.subr.bf16.mxu0 0
      %5425 = vmatpush1.bf16.msra.mxu0 %v5124
      %5426 = vmatprep.subr.bf16.mxu0 0
      %5427 = vmatpush1.bf16.msra.mxu0 %v5125
      %5428 = vmatprep.subr.bf16.mxu0 0
      %5429 = vmatpush1.bf16.msra.mxu0 %v5126
      %5430 = vmatprep.subr.bf16.mxu0 0
      %5431 = vmatpush1.bf16.msra.mxu0 %v5127
      %5432 = vmatprep.subr.bf16.mxu0 0
      %5433 = vmatpush1.bf16.msra.mxu0 %v5128
      %5434 = vmatprep.mubr.bf16.mxu0 %v4475
      %5435 = vmatmul.mubr.bf16.gmra.mrb[0].mxu0 %v4602
      %v5436 = vpop.f32.mrb[0].mxu0
      %v5437 = vadd.f32 %v5276, %v5436
      %v5438 = vpop.f32.mrb[0].mxu0
      %v5439 = vpop.f32.mrb[0].mxu0
      %v5440 = vadd.f32 %v5279, %v5439
      %v5441 = vpop.f32.mrb[0].mxu0
      %5442 = vmatprep.mubr.bf16.mxu0 %v4476
      %5443 = vmatmul.mubr.bf16.gmra.mrb[0].mxu0 %v4603
      %v5444 = vpop.f32.mrb[0].mxu0
      %v5445 = vadd.f32 %v5284, %v5444
      %v5446 = vpop.f32.mrb[0].mxu0
      %v5447 = vpop.f32.mrb[0].mxu0
      %v5448 = vadd.f32 %v5287, %v5447
      %v5449 = vpop.f32.mrb[0].mxu0
      %5450 = vmatprep.mubr.bf16.mxu0 %v4477
      %5451 = vmatmul.mubr.bf16.gmra.mrb[0].mxu0 %v4604
      %v5452 = vpop.f32.mrb[0].mxu0
      %v5453 = vadd.f32 %v5292, %v5452
      %v5454 = vpop.f32.mrb[0].mxu0
      %v5455 = vpop.f32.mrb[0].mxu0
      %v5456 = vadd.f32 %v5295, %v5455
      %v5457 = vpop.f32.mrb[0].mxu0
      %5458 = vmatprep.mubr.bf16.mxu0 %v4478
      %5459 = vmatmul.mubr.bf16.gmra.mrb[0].mxu0 %v4605
      %v5460 = vpop.f32.mrb[0].mxu0
      %v5461 = vadd.f32 %v5300, %v5460
      %v5462 = vpop.f32.mrb[0].mxu0
      %v5463 = vpop.f32.mrb[0].mxu0
      %v5464 = vadd.f32 %v5303, %v5463
      %v5465 = vpop.f32.mrb[0].mxu0
      %5466 = vmatprep.mubr.bf16.mxu0 %v4479
      %5467 = vmatmul.mubr.bf16.gmra.mrb[0].mxu0 %v4606
      %v5468 = vpop.f32.mrb[0].mxu0
      %v5469 = vadd.f32 %v5308, %v5468
      %v5470 = vpop.f32.mrb[0].mxu0
      %v5471 = vpop.f32.mrb[0].mxu0
      %v5472 = vadd.f32 %v5311, %v5471
      %v5473 = vpop.f32.mrb[0].mxu0
      %5474 = vmatprep.mubr.bf16.mxu0 %v4480
      %5475 = vmatmul.mubr.bf16.gmra.mrb[0].mxu0 %v4607
      %v5476 = vpop.f32.mrb[0].mxu0
      %v5477 = vadd.f32 %v5316, %v5476
      %v5478 = vpop.f32.mrb[0].mxu0
      %v5479 = vpop.f32.mrb[0].mxu0
      %v5480 = vadd.f32 %v5319, %v5479
      %v5481 = vpop.f32.mrb[0].mxu0
      %5482 = vmatprep.mubr.bf16.mxu0 %v4481
      %5483 = vmatmul.mubr.bf16.gmra.mrb[0].mxu0 %v4608
      %v5484 = vpop.f32.mrb[0].mxu0
      %v5485 = vadd.f32 %v5324, %v5484
      %v5486 = vpop.f32.mrb[0].mxu0
      %v5487 = vpop.f32.mrb[0].mxu0
      %v5488 = vadd.f32 %v5327, %v5487
      %v5489 = vpop.f32.mrb[0].mxu0
      %5490 = vmatprep.mubr.bf16.mxu0 %v4482
      %5491 = vmatmul.mubr.bf16.gmra.mrb[0].mxu0 %v4609
      %v5492 = vpop.f32.mrb[0].mxu0
      %v5493 = vadd.f32 %v5332, %v5492
      %v5494 = vpop.f32.mrb[0].mxu0
      %v5495 = vpop.f32.mrb[0].mxu0
      %v5496 = vadd.f32 %v5335, %v5495
      %v5497 = vpop.f32.mrb[0].mxu0
      %5498 = vmatprep.mubr.bf16.mxu0 %v4483
      %5499 = vmatmul.mubr.bf16.gmra.mrb[0].mxu0 %v4610
      %v5500 = vpop.f32.mrb[0].mxu0
      %v5501 = vadd.f32 %v5340, %v5500
      %v5502 = vpop.f32.mrb[0].mxu0
      %v5503 = vpop.f32.mrb[0].mxu0
      %v5504 = vadd.f32 %v5343, %v5503
      %v5505 = vpop.f32.mrb[0].mxu0
      %5506 = vmatprep.mubr.bf16.mxu0 %v4484
      %5507 = vmatmul.mubr.bf16.gmra.mrb[0].mxu0 %v4611
      %v5508 = vpop.f32.mrb[0].mxu0
      %v5509 = vadd.f32 %v5348, %v5508
      %v5510 = vpop.f32.mrb[0].mxu0
      %v5511 = vpop.f32.mrb[0].mxu0
      %v5512 = vadd.f32 %v5351, %v5511
      %v5513 = vpop.f32.mrb[0].mxu0
      %5514 = vmatprep.mubr.bf16.mxu0 %v4485
      %5515 = vmatmul.mubr.bf16.gmra.mrb[0].mxu0 %v4612
      %v5516 = vpop.f32.mrb[0].mxu0
      %v5517 = vadd.f32 %v5356, %v5516
      %v5518 = vpop.f32.mrb[0].mxu0
      %v5519 = vpop.f32.mrb[0].mxu0
      %v5520 = vadd.f32 %v5359, %v5519
      %v5521 = vpop.f32.mrb[0].mxu0
      %5522 = vmatprep.mubr.bf16.mxu0 %v4486
      %5523 = vmatmul.mubr.bf16.gmra.mrb[0].mxu0 %v4613
      %v5524 = vpop.f32.mrb[0].mxu0
      %v5525 = vadd.f32 %v5364, %v5524
      %v5526 = vpop.f32.mrb[0].mxu0
      %v5527 = vpop.f32.mrb[0].mxu0
      %v5528 = vadd.f32 %v5367, %v5527
      %v5529 = vpop.f32.mrb[0].mxu0
      %5530 = vmatprep.mubr.bf16.mxu0 %v4487
      %5531 = vmatmul.mubr.bf16.gmra.mrb[0].mxu0 %v4614
      %v5532 = vpop.f32.mrb[0].mxu0
      %v5533 = vadd.f32 %v5372, %v5532
      %v5534 = vpop.f32.mrb[0].mxu0
      %v5535 = vpop.f32.mrb[0].mxu0
      %v5536 = vadd.f32 %v5375, %v5535
      %v5537 = vpop.f32.mrb[0].mxu0
      %5538 = vmatprep.mubr.bf16.mxu0 %v4488
      %5539 = vmatmul.mubr.bf16.gmra.mrb[0].mxu0 %v4615
      %v5540 = vpop.f32.mrb[0].mxu0
      %v5541 = vadd.f32 %v5380, %v5540
      %v5542 = vpop.f32.mrb[0].mxu0
      %v5543 = vpop.f32.mrb[0].mxu0
      %v5544 = vadd.f32 %v5383, %v5543
      %v5545 = vpop.f32.mrb[0].mxu0
      %5546 = vmatprep.mubr.bf16.mxu0 %v4489
      %5547 = vmatmul.mubr.bf16.gmra.mrb[0].mxu0 %v4616
      %v5548 = vpop.f32.mrb[0].mxu0
      %v5549 = vadd.f32 %v5388, %v5548
      %v5550 = vpop.f32.mrb[0].mxu0
      %v5551 = vpop.f32.mrb[0].mxu0
      %v5552 = vadd.f32 %v5391, %v5551
      %v5553 = vpop.f32.mrb[0].mxu0
      %5554 = vmatprep.mubr.bf16.mxu0 %v4636
      %5555 = vmatmul.mubr.bf16.gmra.mrb[0].mxu0 %v4617
      %v5556 = vpop.f32.mrb[0].mxu0
      %v5557 = vadd.f32 %v5396, %v5556
      %v5558 = vpop.f32.mrb[0].mxu0
      %v5559 = vpop.f32.mrb[0].mxu0
      %v5560 = vadd.f32 %v5399, %v5559
      %v5561 = vpop.f32.mrb[0].mxu0
      %5562 = vdwg.mxu0
      %5563 = vmatprep.subr.bf16.mxu0 0
      %5564 = vmatpush1.bf16.msra.mxu0 %v5129
      %5565 = vmatprep.subr.bf16.mxu0 0
      %5566 = vmatpush1.bf16.msra.mxu0 %v5130
      %5567 = vmatprep.subr.bf16.mxu0 0
      %5568 = vmatpush1.bf16.msra.mxu0 %v5131
      %5569 = vmatprep.subr.bf16.mxu0 0
      %5570 = vmatpush1.bf16.msra.mxu0 %v5132
      %5571 = vmatprep.subr.bf16.mxu0 0
      %5572 = vmatpush1.bf16.msra.mxu0 %v5133
      %5573 = vmatprep.subr.bf16.mxu0 0
      %5574 = vmatpush1.bf16.msra.mxu0 %v5134
      %5575 = vmatprep.subr.bf16.mxu0 0
      %5576 = vmatpush1.bf16.msra.mxu0 %v5135
      %5577 = vmatprep.subr.bf16.mxu0 0
      %5578 = vmatpush1.bf16.msra.mxu0 %v5136
      %5579 = vmatprep.subr.bf16.mxu0 0
      %5580 = vmatpush1.bf16.msra.mxu0 %v5137
      %5581 = vmatprep.subr.bf16.mxu0 0
      %5582 = vmatpush1.bf16.msra.mxu0 %v5138
      %5583 = vmatprep.subr.bf16.mxu0 0
      %5584 = vmatpush1.bf16.msra.mxu0 %v5139
      %5585 = vmatprep.subr.bf16.mxu0 0
      %5586 = vmatpush1.bf16.msra.mxu0 %v5140
      %5587 = vmatprep.subr.bf16.mxu0 0
      %5588 = vmatpush1.bf16.msra.mxu0 %v5141
      %5589 = vmatprep.subr.bf16.mxu0 0
      %5590 = vmatpush1.bf16.msra.mxu0 %v5142
      %5591 = vmatprep.subr.bf16.mxu0 0
      %5592 = vmatpush1.bf16.msra.mxu0 %v5143
      %5593 = vmatprep.subr.bf16.mxu0 0
      %5594 = vmatpush1.bf16.msra.mxu0 %v5144
      %5595 = vmatprep.mubr.bf16.mxu0 %v4603
      %5596 = vmatmul.mubr.bf16.gmra.mrb[0].mxu0 %v4539
      %v5597 = vpop.f32.mrb[0].mxu0
      %v5598 = vadd.f32 %v5437, %v5597
      %v5599 = vpop.f32.mrb[0].mxu0
      %v5600 = vpop.f32.mrb[0].mxu0
      %v5601 = vadd.f32 %v5440, %v5600
      %v5602 = vpop.f32.mrb[0].mxu0
      %5603 = vmatprep.mubr.bf16.mxu0 %v4604
      %5604 = vmatmul.mubr.bf16.gmra.mrb[0].mxu0 %v4540
      %v5605 = vpop.f32.mrb[0].mxu0
      %v5606 = vadd.f32 %v5445, %v5605
      %v5607 = vpop.f32.mrb[0].mxu0
      %v5608 = vpop.f32.mrb[0].mxu0
      %v5609 = vadd.f32 %v5448, %v5608
      %v5610 = vpop.f32.mrb[0].mxu0
      %5611 = vmatprep.mubr.bf16.mxu0 %v4605
      %5612 = vmatmul.mubr.bf16.gmra.mrb[0].mxu0 %v4541
      %v5613 = vpop.f32.mrb[0].mxu0
      %v5614 = vadd.f32 %v5453, %v5613
      %v5615 = vpop.f32.mrb[0].mxu0
      %v5616 = vpop.f32.mrb[0].mxu0
      %v5617 = vadd.f32 %v5456, %v5616
      %v5618 = vpop.f32.mrb[0].mxu0
      %5619 = vmatprep.mubr.bf16.mxu0 %v4606
      %5620 = vmatmul.mubr.bf16.gmra.mrb[0].mxu0 %v4542
      %v5621 = vpop.f32.mrb[0].mxu0
      %v5622 = vadd.f32 %v5461, %v5621
      %v5623 = vpop.f32.mrb[0].mxu0
      %v5624 = vpop.f32.mrb[0].mxu0
      %v5625 = vadd.f32 %v5464, %v5624
      %v5626 = vpop.f32.mrb[0].mxu0
      %5627 = vmatprep.mubr.bf16.mxu0 %v4607
      %5628 = vmatmul.mubr.bf16.gmra.mrb[0].mxu0 %v4543
      %v5629 = vpop.f32.mrb[0].mxu0
      %v5630 = vadd.f32 %v5469, %v5629
      %v5631 = vpop.f32.mrb[0].mxu0
      %v5632 = vpop.f32.mrb[0].mxu0
      %v5633 = vadd.f32 %v5472, %v5632
      %v5634 = vpop.f32.mrb[0].mxu0
      %5635 = vmatprep.mubr.bf16.mxu0 %v4608
      %5636 = vmatmul.mubr.bf16.gmra.mrb[0].mxu0 %v4544
      %v5637 = vpop.f32.mrb[0].mxu0
      %v5638 = vadd.f32 %v5477, %v5637
      %v5639 = vpop.f32.mrb[0].mxu0
      %v5640 = vpop.f32.mrb[0].mxu0
      %v5641 = vadd.f32 %v5480, %v5640
      %v5642 = vpop.f32.mrb[0].mxu0
      %5643 = vmatprep.mubr.bf16.mxu0 %v4609
      %5644 = vmatmul.mubr.bf16.gmra.mrb[0].mxu0 %v4545
      %v5645 = vpop.f32.mrb[0].mxu0
      %v5646 = vadd.f32 %v5485, %v5645
      %v5647 = vpop.f32.mrb[0].mxu0
      %v5648 = vpop.f32.mrb[0].mxu0
      %v5649 = vadd.f32 %v5488, %v5648
      %v5650 = vpop.f32.mrb[0].mxu0
      %5651 = vmatprep.mubr.bf16.mxu0 %v4610
      %5652 = vmatmul.mubr.bf16.gmra.mrb[0].mxu0 %v4546
      %v5653 = vpop.f32.mrb[0].mxu0
      %v5654 = vadd.f32 %v5493, %v5653
      %v5655 = vpop.f32.mrb[0].mxu0
      %v5656 = vpop.f32.mrb[0].mxu0
      %v5657 = vadd.f32 %v5496, %v5656
      %v5658 = vpop.f32.mrb[0].mxu0
      %5659 = vmatprep.mubr.bf16.mxu0 %v4611
      %5660 = vmatmul.mubr.bf16.gmra.mrb[0].mxu0 %v4547
      %v5661 = vpop.f32.mrb[0].mxu0
      %v5662 = vadd.f32 %v5501, %v5661
      %v5663 = vpop.f32.mrb[0].mxu0
      %v5664 = vpop.f32.mrb[0].mxu0
      %v5665 = vadd.f32 %v5504, %v5664
      %v5666 = vpop.f32.mrb[0].mxu0
      %5667 = vmatprep.mubr.bf16.mxu0 %v4612
      %5668 = vmatmul.mubr.bf16.gmra.mrb[0].mxu0 %v4548
      %v5669 = vpop.f32.mrb[0].mxu0
      %v5670 = vadd.f32 %v5509, %v5669
      %v5671 = vpop.f32.mrb[0].mxu0
      %v5672 = vpop.f32.mrb[0].mxu0
      %v5673 = vadd.f32 %v5512, %v5672
      %v5674 = vpop.f32.mrb[0].mxu0
      %5675 = vmatprep.mubr.bf16.mxu0 %v4613
      %5676 = vmatmul.mubr.bf16.gmra.mrb[0].mxu0 %v4549
      %v5677 = vpop.f32.mrb[0].mxu0
      %v5678 = vadd.f32 %v5517, %v5677
      %v5679 = vpop.f32.mrb[0].mxu0
      %v5680 = vpop.f32.mrb[0].mxu0
      %v5681 = vadd.f32 %v5520, %v5680
      %v5682 = vpop.f32.mrb[0].mxu0
      %5683 = vmatprep.mubr.bf16.mxu0 %v4614
      %5684 = vmatmul.mubr.bf16.gmra.mrb[0].mxu0 %v4550
      %v5685 = vpop.f32.mrb[0].mxu0
      %v5686 = vadd.f32 %v5525, %v5685
      %v5687 = vpop.f32.mrb[0].mxu0
      %v5688 = vpop.f32.mrb[0].mxu0
      %v5689 = vadd.f32 %v5528, %v5688
      %v5690 = vpop.f32.mrb[0].mxu0
      %5691 = vmatprep.mubr.bf16.mxu0 %v4615
      %5692 = vmatmul.mubr.bf16.gmra.mrb[0].mxu0 %v4551
      %v5693 = vpop.f32.mrb[0].mxu0
      %v5694 = vadd.f32 %v5533, %v5693
      %v5695 = vpop.f32.mrb[0].mxu0
      %v5696 = vpop.f32.mrb[0].mxu0
      %v5697 = vadd.f32 %v5536, %v5696
      %v5698 = vpop.f32.mrb[0].mxu0
      %5699 = vmatprep.mubr.bf16.mxu0 %v4616
      %5700 = vmatmul.mubr.bf16.gmra.mrb[0].mxu0 %v4552
      %v5701 = vpop.f32.mrb[0].mxu0
      %v5702 = vadd.f32 %v5541, %v5701
      %v5703 = vpop.f32.mrb[0].mxu0
      %v5704 = vpop.f32.mrb[0].mxu0
      %v5705 = vadd.f32 %v5544, %v5704
      %v5706 = vpop.f32.mrb[0].mxu0
      %5707 = vmatprep.mubr.bf16.mxu0 %v4617
      %5708 = vmatmul.mubr.bf16.gmra.mrb[0].mxu0 %v4553
      %v5709 = vpop.f32.mrb[0].mxu0
      %v5710 = vadd.f32 %v5549, %v5709
      %v5711 = vpop.f32.mrb[0].mxu0
      %v5712 = vpop.f32.mrb[0].mxu0
      %v5713 = vadd.f32 %v5552, %v5712
      %v5714 = vpop.f32.mrb[0].mxu0
      %5715 = vmatprep.mubr.bf16.mxu0 %v4644
      %5716 = vmatmul.mubr.bf16.gmra.mrb[0].mxu0 %v4640
      %v5717 = vpop.f32.mrb[0].mxu0
      %v5718 = vadd.f32 %v5557, %v5717
      %v5719 = vpop.f32.mrb[0].mxu0
      %v5720 = vpop.f32.mrb[0].mxu0
      %v5721 = vadd.f32 %v5560, %v5720
      %v5722 = vpop.f32.mrb[0].mxu0
      %5723 = vdwg.mxu0
      %5724 = vmatprep.subr.bf16.mxu0 0
      %5725 = vmatpush1.bf16.msra.mxu0 %v5145
      %5726 = vmatprep.subr.bf16.mxu0 0
      %5727 = vmatpush1.bf16.msra.mxu0 %v5146
      %5728 = vmatprep.subr.bf16.mxu0 0
      %5729 = vmatpush1.bf16.msra.mxu0 %v5147
      %5730 = vmatprep.subr.bf16.mxu0 0
      %5731 = vmatpush1.bf16.msra.mxu0 %v5148
      %5732 = vmatprep.subr.bf16.mxu0 0
      %5733 = vmatpush1.bf16.msra.mxu0 %v5149
      %5734 = vmatprep.subr.bf16.mxu0 0
      %5735 = vmatpush1.bf16.msra.mxu0 %v5150
      %5736 = vmatprep.subr.bf16.mxu0 0
      %5737 = vmatpush1.bf16.msra.mxu0 %v5151
      %5738 = vmatprep.subr.bf16.mxu0 0
      %5739 = vmatpush1.bf16.msra.mxu0 %v5152
      %5740 = vmatprep.subr.bf16.mxu0 0
      %5741 = vmatpush1.bf16.msra.mxu0 %v5153
      %5742 = vmatprep.subr.bf16.mxu0 0
      %5743 = vmatpush1.bf16.msra.mxu0 %v5154
      %5744 = vmatprep.subr.bf16.mxu0 0
      %5745 = vmatpush1.bf16.msra.mxu0 %v5155
      %5746 = vmatprep.subr.bf16.mxu0 0
      %5747 = vmatpush1.bf16.msra.mxu0 %v5156
      %5748 = vmatprep.subr.bf16.mxu0 0
      %5749 = vmatpush1.bf16.msra.mxu0 %v5157
      %5750 = vmatprep.subr.bf16.mxu0 0
      %5751 = vmatpush1.bf16.msra.mxu0 %v5158
      %5752 = vmatprep.subr.bf16.mxu0 0
      %5753 = vmatpush1.bf16.msra.mxu0 %v5159
      %5754 = vmatprep.subr.bf16.mxu0 0
      %5755 = vmatpush1.bf16.msra.mxu0 %v5160
      %5756 = vmatprep.mubr.bf16.mxu0 %v4540
      %5757 = vmatmul.mubr.bf16.gmra.mrb[0].mxu0 %v4476
      %v5758 = vpop.f32.mrb[0].mxu0
      %v5759 = vadd.f32 %v5598, %v5758
      %v5760 = vpop.f32.mrb[0].mxu0
      %v5761 = vpop.f32.mrb[0].mxu0
      %v5762 = vadd.f32 %v5601, %v5761
      %v5763 = vpop.f32.mrb[0].mxu0
      %5764 = vmatprep.mubr.bf16.mxu0 %v4541
      %5765 = vmatmul.mubr.bf16.gmra.mrb[0].mxu0 %v4477
      %v5766 = vpop.f32.mrb[0].mxu0
      %v5767 = vadd.f32 %v5606, %v5766
      %v5768 = vpop.f32.mrb[0].mxu0
      %v5769 = vpop.f32.mrb[0].mxu0
      %v5770 = vadd.f32 %v5609, %v5769
      %v5771 = vpop.f32.mrb[0].mxu0
      %5772 = vmatprep.mubr.bf16.mxu0 %v4542
      %5773 = vmatmul.mubr.bf16.gmra.mrb[0].mxu0 %v4478
      %v5774 = vpop.f32.mrb[0].mxu0
      %v5775 = vadd.f32 %v5614, %v5774
      %v5776 = vpop.f32.mrb[0].mxu0
      %v5777 = vpop.f32.mrb[0].mxu0
      %v5778 = vadd.f32 %v5617, %v5777
      %v5779 = vpop.f32.mrb[0].mxu0
      %5780 = vmatprep.mubr.bf16.mxu0 %v4543
      %5781 = vmatmul.mubr.bf16.gmra.mrb[0].mxu0 %v4479
      %v5782 = vpop.f32.mrb[0].mxu0
      %v5783 = vadd.f32 %v5622, %v5782
      %v5784 = vpop.f32.mrb[0].mxu0
      %v5785 = vpop.f32.mrb[0].mxu0
      %v5786 = vadd.f32 %v5625, %v5785
      %v5787 = vpop.f32.mrb[0].mxu0
      %5788 = vmatprep.mubr.bf16.mxu0 %v4544
      %5789 = vmatmul.mubr.bf16.gmra.mrb[0].mxu0 %v4480
      %v5790 = vpop.f32.mrb[0].mxu0
      %v5791 = vadd.f32 %v5630, %v5790
      %v5792 = vpop.f32.mrb[0].mxu0
      %v5793 = vpop.f32.mrb[0].mxu0
      %v5794 = vadd.f32 %v5633, %v5793
      %v5795 = vpop.f32.mrb[0].mxu0
      %5796 = vmatprep.mubr.bf16.mxu0 %v4545
      %5797 = vmatmul.mubr.bf16.gmra.mrb[0].mxu0 %v4481
      %v5798 = vpop.f32.mrb[0].mxu0
      %v5799 = vadd.f32 %v5638, %v5798
      %v5800 = vpop.f32.mrb[0].mxu0
      %v5801 = vpop.f32.mrb[0].mxu0
      %v5802 = vadd.f32 %v5641, %v5801
      %v5803 = vpop.f32.mrb[0].mxu0
      %5804 = vmatprep.mubr.bf16.mxu0 %v4546
      %5805 = vmatmul.mubr.bf16.gmra.mrb[0].mxu0 %v4482
      %v5806 = vpop.f32.mrb[0].mxu0
      %v5807 = vadd.f32 %v5646, %v5806
      %v5808 = vpop.f32.mrb[0].mxu0
      %v5809 = vpop.f32.mrb[0].mxu0
      %v5810 = vadd.f32 %v5649, %v5809
      %v5811 = vpop.f32.mrb[0].mxu0
      %5812 = vmatprep.mubr.bf16.mxu0 %v4547
      %5813 = vmatmul.mubr.bf16.gmra.mrb[0].mxu0 %v4483
      %v5814 = vpop.f32.mrb[0].mxu0
      %v5815 = vadd.f32 %v5654, %v5814
      %v5816 = vpop.f32.mrb[0].mxu0
      %v5817 = vpop.f32.mrb[0].mxu0
      %v5818 = vadd.f32 %v5657, %v5817
      %v5819 = vpop.f32.mrb[0].mxu0
      %5820 = vmatprep.mubr.bf16.mxu0 %v4548
      %5821 = vmatmul.mubr.bf16.gmra.mrb[0].mxu0 %v4484
      %v5822 = vpop.f32.mrb[0].mxu0
      %v5823 = vadd.f32 %v5662, %v5822
      %v5824 = vpop.f32.mrb[0].mxu0
      %v5825 = vpop.f32.mrb[0].mxu0
      %v5826 = vadd.f32 %v5665, %v5825
      %v5827 = vpop.f32.mrb[0].mxu0
      %5828 = vmatprep.mubr.bf16.mxu0 %v4549
      %5829 = vmatmul.mubr.bf16.gmra.mrb[0].mxu0 %v4485
      %v5830 = vpop.f32.mrb[0].mxu0
      %v5831 = vadd.f32 %v5670, %v5830
      %v5832 = vpop.f32.mrb[0].mxu0
      %v5833 = vpop.f32.mrb[0].mxu0
      %v5834 = vadd.f32 %v5673, %v5833
      %v5835 = vpop.f32.mrb[0].mxu0
      %5836 = vmatprep.mubr.bf16.mxu0 %v4550
      %5837 = vmatmul.mubr.bf16.gmra.mrb[0].mxu0 %v4486
      %v5838 = vpop.f32.mrb[0].mxu0
      %v5839 = vadd.f32 %v5678, %v5838
      %v5840 = vpop.f32.mrb[0].mxu0
      %v5841 = vpop.f32.mrb[0].mxu0
      %v5842 = vadd.f32 %v5681, %v5841
      %v5843 = vpop.f32.mrb[0].mxu0
      %5844 = vmatprep.mubr.bf16.mxu0 %v4551
      %5845 = vmatmul.mubr.bf16.gmra.mrb[0].mxu0 %v4487
      %v5846 = vpop.f32.mrb[0].mxu0
      %v5847 = vadd.f32 %v5686, %v5846
      %v5848 = vpop.f32.mrb[0].mxu0
      %v5849 = vpop.f32.mrb[0].mxu0
      %v5850 = vadd.f32 %v5689, %v5849
      %v5851 = vpop.f32.mrb[0].mxu0
      %5852 = vmatprep.mubr.bf16.mxu0 %v4552
      %5853 = vmatmul.mubr.bf16.gmra.mrb[0].mxu0 %v4488
      %v5854 = vpop.f32.mrb[0].mxu0
      %v5855 = vadd.f32 %v5694, %v5854
      %v5856 = vpop.f32.mrb[0].mxu0
      %v5857 = vpop.f32.mrb[0].mxu0
      %v5858 = vadd.f32 %v5697, %v5857
      %v5859 = vpop.f32.mrb[0].mxu0
      %5860 = vmatprep.mubr.bf16.mxu0 %v4553
      %5861 = vmatmul.mubr.bf16.gmra.mrb[0].mxu0 %v4489
      %v5862 = vpop.f32.mrb[0].mxu0
      %v5863 = vadd.f32 %v5702, %v5862
      %v5864 = vpop.f32.mrb[0].mxu0
      %v5865 = vpop.f32.mrb[0].mxu0
      %v5866 = vadd.f32 %v5705, %v5865
      %v5867 = vpop.f32.mrb[0].mxu0
      %5868 = vmatprep.mubr.bf16.mxu0 %v4640
      %5869 = vmatmul.mubr.bf16.gmra.mrb[0].mxu0 %v4636
      %v5870 = vpop.f32.mrb[0].mxu0
      %v5871 = vadd.f32 %v5710, %v5870
      %v5872 = vpop.f32.mrb[0].mxu0
      %v5873 = vpop.f32.mrb[0].mxu0
      %v5874 = vadd.f32 %v5713, %v5873
      %v5875 = vpop.f32.mrb[0].mxu0
      %5876 = vmatprep.mubr.bf16.mxu0 %v4652
      %5877 = vmatmul.mubr.bf16.gmra.mrb[0].mxu0 %v4648
      %v5878 = vpop.f32.mrb[0].mxu0
      %v5879 = vadd.f32 %v5718, %v5878
      %v5880 = vpop.f32.mrb[0].mxu0
      %v5881 = vpop.f32.mrb[0].mxu0
      %v5882 = vadd.f32 %v5721, %v5881
      %v5883 = vpop.f32.mrb[0].mxu0
      %5884 = vdwg.mxu0
      %5885 = vmatprep.subr.bf16.mxu0 0
      %5886 = vmatpush1.bf16.msra.mxu0 %v5161
      %5887 = vmatprep.subr.bf16.mxu0 0
      %5888 = vmatpush1.bf16.msra.mxu0 %v5162
      %5889 = vmatprep.subr.bf16.mxu0 0
      %5890 = vmatpush1.bf16.msra.mxu0 %v5163
      %5891 = vmatprep.subr.bf16.mxu0 0
      %5892 = vmatpush1.bf16.msra.mxu0 %v5164
      %5893 = vmatprep.subr.bf16.mxu0 0
      %5894 = vmatpush1.bf16.msra.mxu0 %v5165
      %5895 = vmatprep.subr.bf16.mxu0 0
      %5896 = vmatpush1.bf16.msra.mxu0 %v5166
      %5897 = vmatprep.subr.bf16.mxu0 0
      %5898 = vmatpush1.bf16.msra.mxu0 %v5167
      %5899 = vmatprep.subr.bf16.mxu0 0
      %5900 = vmatpush1.bf16.msra.mxu0 %v5168
      %5901 = vmatprep.subr.bf16.mxu0 0
      %5902 = vmatpush1.bf16.msra.mxu0 0
      %5903 = vmatprep.subr.bf16.mxu0 0
      %5904 = vmatpush1.bf16.msra.mxu0 0
      %5905 = vmatprep.subr.bf16.mxu0 0
      %5906 = vmatpush1.bf16.msra.mxu0 0
      %5907 = vmatprep.subr.bf16.mxu0 0
      %5908 = vmatpush1.bf16.msra.mxu0 0
      %5909 = vmatprep.subr.bf16.mxu0 0
      %5910 = vmatpush1.bf16.msra.mxu0 0
      %5911 = vmatprep.subr.bf16.mxu0 0
      %5912 = vmatpush1.bf16.msra.mxu0 0
      %5913 = vmatprep.subr.bf16.mxu0 0
      %5914 = vmatpush1.bf16.msra.mxu0 0
      %5915 = vmatprep.subr.bf16.mxu0 0
      %5916 = vmatpush1.bf16.msra.mxu0 0
      %5917 = vmatprep.mubr.bf16.mxu0 0
      %5918 = vmatmul.mubr.bf16.gmra.mrb[0].mxu0 %v4604
      %v5919 = vpop.f32.mrb[0].mxu0
      %v5920 = vadd.f32 %v5759, %v5919
      %v5921 = vpop.f32.mrb[0].mxu0
      %v5922 = vpop.f32.mrb[0].mxu0
      %v5923 = vadd.f32 %v5762, %v5922
      %v5924 = vpop.f32.mrb[0].mxu0
      %5925 = vmatprep.mubr.bf16.mxu0 0
      %5926 = vmatmul.mubr.bf16.gmra.mrb[0].mxu0 %v4605
      %v5927 = vpop.f32.mrb[0].mxu0
      %v5928 = vadd.f32 %v5767, %v5927
      %v5929 = vpop.f32.mrb[0].mxu0
      %v5930 = vpop.f32.mrb[0].mxu0
      %v5931 = vadd.f32 %v5770, %v5930
      %v5932 = vpop.f32.mrb[0].mxu0
      %5933 = vmatprep.mubr.bf16.mxu0 0
      %5934 = vmatmul.mubr.bf16.gmra.mrb[0].mxu0 %v4606
      %v5935 = vpop.f32.mrb[0].mxu0
      %v5936 = vadd.f32 %v5775, %v5935
      %v5937 = vpop.f32.mrb[0].mxu0
      %v5938 = vpop.f32.mrb[0].mxu0
      %v5939 = vadd.f32 %v5778, %v5938
      %v5940 = vpop.f32.mrb[0].mxu0
      %5941 = vmatprep.mubr.bf16.mxu0 0
      %5942 = vmatmul.mubr.bf16.gmra.mrb[0].mxu0 %v4607
      %v5943 = vpop.f32.mrb[0].mxu0
      %v5944 = vadd.f32 %v5783, %v5943
      %v5945 = vpop.f32.mrb[0].mxu0
      %v5946 = vpop.f32.mrb[0].mxu0
      %v5947 = vadd.f32 %v5786, %v5946
      %v5948 = vpop.f32.mrb[0].mxu0
      %5949 = vmatprep.mubr.bf16.mxu0 0
      %5950 = vmatmul.mubr.bf16.gmra.mrb[0].mxu0 %v4608
      %v5951 = vpop.f32.mrb[0].mxu0
      %v5952 = vadd.f32 %v5791, %v5951
      %v5953 = vpop.f32.mrb[0].mxu0
      %v5954 = vpop.f32.mrb[0].mxu0
      %v5955 = vadd.f32 %v5794, %v5954
      %v5956 = vpop.f32.mrb[0].mxu0
      %5957 = vmatprep.mubr.bf16.mxu0 0
      %5958 = vmatmul.mubr.bf16.gmra.mrb[0].mxu0 %v4609
      %v5959 = vpop.f32.mrb[0].mxu0
      %v5960 = vadd.f32 %v5799, %v5959
      %v5961 = vpop.f32.mrb[0].mxu0
      %v5962 = vpop.f32.mrb[0].mxu0
      %v5963 = vadd.f32 %v5802, %v5962
      %v5964 = vpop.f32.mrb[0].mxu0
      %5965 = vmatprep.mubr.bf16.mxu0 0
      %5966 = vmatmul.mubr.bf16.gmra.mrb[0].mxu0 %v4610
      %v5967 = vpop.f32.mrb[0].mxu0
      %v5968 = vadd.f32 %v5807, %v5967
      %v5969 = vpop.f32.mrb[0].mxu0
      %v5970 = vpop.f32.mrb[0].mxu0
      %v5971 = vadd.f32 %v5810, %v5970
      %v5972 = vpop.f32.mrb[0].mxu0
      %5973 = vmatprep.mubr.bf16.mxu0 0
      %5974 = vmatmul.mubr.bf16.gmra.mrb[0].mxu0 %v4611
      %v5975 = vpop.f32.mrb[0].mxu0
      %v5976 = vadd.f32 %v5815, %v5975
      %v5977 = vpop.f32.mrb[0].mxu0
      %v5978 = vpop.f32.mrb[0].mxu0
      %v5979 = vadd.f32 %v5818, %v5978
      %v5980 = vpop.f32.mrb[0].mxu0
      %5981 = vmatprep.mubr.bf16.mxu0 0
      %5982 = vmatmul.mubr.bf16.gmra.mrb[0].mxu0 %v4612
      %v5983 = vpop.f32.mrb[0].mxu0
      %v5984 = vadd.f32 %v5823, %v5983
      %v5985 = vpop.f32.mrb[0].mxu0
      %v5986 = vpop.f32.mrb[0].mxu0
      %v5987 = vadd.f32 %v5826, %v5986
      %v5988 = vpop.f32.mrb[0].mxu0
      %5989 = vmatprep.mubr.bf16.mxu0 0
      %5990 = vmatmul.mubr.bf16.gmra.mrb[0].mxu0 %v4613
      %v5991 = vpop.f32.mrb[0].mxu0
      %v5992 = vadd.f32 %v5831, %v5991
      %v5993 = vpop.f32.mrb[0].mxu0
      %v5994 = vpop.f32.mrb[0].mxu0
      %v5995 = vadd.f32 %v5834, %v5994
      %v5996 = vpop.f32.mrb[0].mxu0
      %5997 = vmatprep.mubr.bf16.mxu0 0
      %5998 = vmatmul.mubr.bf16.gmra.mrb[0].mxu0 %v4614
      %v5999 = vpop.f32.mrb[0].mxu0
      %v6000 = vadd.f32 %v5839, %v5999
      %v6001 = vpop.f32.mrb[0].mxu0
      %v6002 = vpop.f32.mrb[0].mxu0
      %v6003 = vadd.f32 %v5842, %v6002
      %v6004 = vpop.f32.mrb[0].mxu0
      %6005 = vmatprep.mubr.bf16.mxu0 0
      %6006 = vmatmul.mubr.bf16.gmra.mrb[0].mxu0 %v4615
      %v6007 = vpop.f32.mrb[0].mxu0
      %v6008 = vadd.f32 %v5847, %v6007
      %v6009 = vpop.f32.mrb[0].mxu0
      %v6010 = vpop.f32.mrb[0].mxu0
      %v6011 = vadd.f32 %v5850, %v6010
      %v6012 = vpop.f32.mrb[0].mxu0
      %6013 = vmatprep.mubr.bf16.mxu0 0
      %6014 = vmatmul.mubr.bf16.gmra.mrb[0].mxu0 %v4616
      %v6015 = vpop.f32.mrb[0].mxu0
      %v6016 = vadd.f32 %v5855, %v6015
      %v6017 = vpop.f32.mrb[0].mxu0
      %v6018 = vpop.f32.mrb[0].mxu0
      %v6019 = vadd.f32 %v5858, %v6018
      %v6020 = vpop.f32.mrb[0].mxu0
      %6021 = vmatprep.mubr.bf16.mxu0 0
      %6022 = vmatmul.mubr.bf16.gmra.mrb[0].mxu0 %v4617
      %v6023 = vpop.f32.mrb[0].mxu0
      %v6024 = vadd.f32 %v5863, %v6023
      %v6025 = vpop.f32.mrb[0].mxu0
      %v6026 = vpop.f32.mrb[0].mxu0
      %v6027 = vadd.f32 %v5866, %v6026
      %v6028 = vpop.f32.mrb[0].mxu0
      %6029 = vmatprep.mubr.bf16.mxu0 0
      %6030 = vmatmul.mubr.bf16.gmra.mrb[0].mxu0 %v4644
      %v6031 = vpop.f32.mrb[0].mxu0
      %v6032 = vadd.f32 %v5871, %v6031
      %v6033 = vpop.f32.mrb[0].mxu0
      %v6034 = vpop.f32.mrb[0].mxu0
      %v6035 = vadd.f32 %v5874, %v6034
      %v6036 = vpop.f32.mrb[0].mxu0
      %6037 = vmatprep.mubr.bf16.mxu0 0
      %6038 = vmatmul.mubr.bf16.gmra.mrb[0].mxu0 %v4656
      %v6039 = vpop.f32.mrb[0].mxu0
      %v6040 = vadd.f32 %v5879, %v6039
      %v6041 = vpop.f32.mrb[0].mxu0
      %v6042 = vpop.f32.mrb[0].mxu0
      %v6043 = vadd.f32 %v5882, %v6042
      %v6044 = vpop.f32.mrb[0].mxu0
      %6045 = vdwg.mxu0
      %v6046 = vld [vmem:[%s6] sm:$0xf]
      %v6047 = vld [vmem:[%s6 + $0x4] sm:$0xf]
      %v6048 = vld [vmem:[%s6 + $0x8] sm:$0xf]
      %v6049 = vld [vmem:[%s6 + $0xc] sm:$0xf]
      %v6050 = vld [vmem:[%s6 + $0x10] sm:$0xf]
      %v6051 = vld [vmem:[%s6 + $0x14] sm:$0xf]
      %v6052 = vld [vmem:[%s6 + $0x18] sm:$0xf]
      %v6053 = vld [vmem:[%s6 + $0x1c] sm:$0xf]
      %v6054 = vld [vmem:[%s6 + $0x20] sm:$0xf]
      %v6055 = vld [vmem:[%s6 + $0x24] sm:$0xf]
      %v6056 = vld [vmem:[%s6 + $0x28] sm:$0xf]
      %v6057 = vld [vmem:[%s6 + $0x2c] sm:$0xf]
      %v6058 = vld [vmem:[%s6 + $0x30] sm:$0xf]
      %v6059 = vld [vmem:[%s6 + $0x34] sm:$0xf]
      %v6060 = vld [vmem:[%s6 + $0x38] sm:$0xf]
      %v6061 = vld [vmem:[%s6 + $0x3c] sm:$0xf]
      %v6062 = vld [vmem:[%s7] sm:$0x1]
      %v6064 = vlaneseq
      %v6065 = vshrl.u32 %v6064, 7
      %v6066 = vsub.s32 0, %v6065
      %v6067 = vrot.slane %v6062, %v6066
      %v6085 = vunpack.c.l.b16 %v6046
      %v6086 = vunpack.c.l.b16 %v6047
      %v6087 = vunpack.c.l.b16 %v6048
      %v6088 = vunpack.c.l.b16 %v6049
      %v6089 = vunpack.c.l.b16 %v6050
      %v6090 = vunpack.c.l.b16 %v6051
      %v6091 = vunpack.c.l.b16 %v6052
      %v6092 = vunpack.c.l.b16 %v6053
      %v6093 = vunpack.c.l.b16 %v6054
      %v6094 = vunpack.c.l.b16 %v6055
      %v6095 = vunpack.c.l.b16 %v6056
      %v6096 = vunpack.c.l.b16 %v6057
      %v6097 = vunpack.c.l.b16 %v6058
      %v6098 = vunpack.c.l.b16 %v6059
      %v6099 = vunpack.c.l.b16 %v6060
      %v6100 = vunpack.c.l.b16 %v6061
      %v6101 = vpack.c.b16 %v6086, %v6085
      %v6102 = vpack.c.b16 %v6088, %v6087
      %v6103 = vpack.c.b16 %v6090, %v6089
      %v6104 = vpack.c.b16 %v6092, %v6091
      %v6105 = vpack.c.b16 %v6094, %v6093
      %v6106 = vpack.c.b16 %v6096, %v6095
      %v6107 = vpack.c.b16 %v6098, %v6097
      %v6108 = vpack.c.b16 %v6100, %v6099
      %6117 = vmatprep.subr.bf16.mxu0 0
      %6118 = vmatpush1.bf16.msra.mxu0 %v6101
      %6119 = vmatprep.subr.bf16.mxu0 0
      %6120 = vmatpush1.bf16.msra.mxu0 %v6102
      %6121 = vmatprep.subr.bf16.mxu0 0
      %6122 = vmatpush1.bf16.msra.mxu0 %v6103
      %6123 = vmatprep.subr.bf16.mxu0 0
      %6124 = vmatpush1.bf16.msra.mxu0 %v6104
      %6125 = vmatprep.subr.bf16.mxu0 0
      %6126 = vmatpush1.bf16.msra.mxu0 %v6105
      %6127 = vmatprep.subr.bf16.mxu0 0
      %6128 = vmatpush1.bf16.msra.mxu0 %v6106
      %6129 = vmatprep.subr.bf16.mxu0 0
      %6130 = vmatpush1.bf16.msra.mxu0 %v6107
      %6131 = vmatprep.subr.bf16.mxu0 0
      %6132 = vmatpush1.bf16.msra.mxu0 %v6108
      %6133 = vmatprep.subr.bf16.mxu0 0
      %6134 = vmatpush1.bf16.msra.mxu0 0
      %6135 = vmatprep.subr.bf16.mxu0 0
      %6136 = vmatpush1.bf16.msra.mxu0 0
      %6137 = vmatprep.subr.bf16.mxu0 0
      %6138 = vmatpush1.bf16.msra.mxu0 0
      %6139 = vmatprep.subr.bf16.mxu0 0
      %6140 = vmatpush1.bf16.msra.mxu0 0
      %6141 = vmatprep.subr.bf16.mxu0 0
      %6142 = vmatpush1.bf16.msra.mxu0 0
      %6143 = vmatprep.subr.bf16.mxu0 0
      %6144 = vmatpush1.bf16.msra.mxu0 0
      %6145 = vmatprep.subr.bf16.mxu0 0
      %6146 = vmatpush1.bf16.msra.mxu0 0
      %6147 = vmatprep.subr.bf16.mxu0 0
      %6148 = vmatpush1.bf16.msra.mxu0 0
      %6149 = vmatprep.mubr.bf16.mxu0 0
      %6150 = vmatmul.mubr.bf16.gmra.mrb[0].mxu0 %v1285
      %v6151 = vpop.f32.mrb[0].mxu0
      %v6152 = vadd.f32 %v6067, %v6151
      %v6153 = vpop.f32.mrb[0].mxu0
      %v6154 = vpop.f32.mrb[0].mxu0
      %v6155 = vadd.f32 %v6067, %v6154
      %v6156 = vpop.f32.mrb[0].mxu0
      %6157 = vmatprep.mubr.bf16.mxu0 0
      %6158 = vmatmul.mubr.bf16.gmra.mrb[0].mxu0 %v1286
      %v6159 = vpop.f32.mrb[0].mxu0
      %v6160 = vadd.f32 %v6067, %v6159
      %v6161 = vpop.f32.mrb[0].mxu0
      %v6162 = vpop.f32.mrb[0].mxu0
      %v6163 = vadd.f32 %v6067, %v6162
      %v6164 = vpop.f32.mrb[0].mxu0
      %6165 = vmatprep.mubr.bf16.mxu0 0
      %6166 = vmatmul.mubr.bf16.gmra.mrb[0].mxu0 %v1287
      %v6167 = vpop.f32.mrb[0].mxu0
      %v6168 = vadd.f32 %v6067, %v6167
      %v6169 = vpop.f32.mrb[0].mxu0
      %v6170 = vpop.f32.mrb[0].mxu0
      %v6171 = vadd.f32 %v6067, %v6170
      %v6172 = vpop.f32.mrb[0].mxu0
      %6173 = vmatprep.mubr.bf16.mxu0 0
      %6174 = vmatmul.mubr.bf16.gmra.mrb[0].mxu0 %v1288
      %v6175 = vpop.f32.mrb[0].mxu0
      %v6176 = vadd.f32 %v6067, %v6175
      %v6177 = vpop.f32.mrb[0].mxu0
      %v6178 = vpop.f32.mrb[0].mxu0
      %v6179 = vadd.f32 %v6067, %v6178
      %v6180 = vpop.f32.mrb[0].mxu0
      %6181 = vmatprep.mubr.bf16.mxu0 0
      %6182 = vmatmul.mubr.bf16.gmra.mrb[0].mxu0 %v1289
      %v6183 = vpop.f32.mrb[0].mxu0
      %v6184 = vadd.f32 %v6067, %v6183
      %v6185 = vpop.f32.mrb[0].mxu0
      %v6186 = vpop.f32.mrb[0].mxu0
      %v6187 = vadd.f32 %v6067, %v6186
      %v6188 = vpop.f32.mrb[0].mxu0
      %6189 = vmatprep.mubr.bf16.mxu0 0
      %6190 = vmatmul.mubr.bf16.gmra.mrb[0].mxu0 %v1290
      %v6191 = vpop.f32.mrb[0].mxu0
      %v6192 = vadd.f32 %v6067, %v6191
      %v6193 = vpop.f32.mrb[0].mxu0
      %v6194 = vpop.f32.mrb[0].mxu0
      %v6195 = vadd.f32 %v6067, %v6194
      %v6196 = vpop.f32.mrb[0].mxu0
      %6197 = vmatprep.mubr.bf16.mxu0 0
      %6198 = vmatmul.mubr.bf16.gmra.mrb[0].mxu0 %v1291
      %v6199 = vpop.f32.mrb[0].mxu0
      %v6200 = vadd.f32 %v6067, %v6199
      %v6201 = vpop.f32.mrb[0].mxu0
      %v6202 = vpop.f32.mrb[0].mxu0
      %v6203 = vadd.f32 %v6067, %v6202
      %v6204 = vpop.f32.mrb[0].mxu0
      %6205 = vmatprep.mubr.bf16.mxu0 0
      %6206 = vmatmul.mubr.bf16.gmra.mrb[0].mxu0 %v1292
      %v6207 = vpop.f32.mrb[0].mxu0
      %v6208 = vadd.f32 %v6067, %v6207
      %v6209 = vpop.f32.mrb[0].mxu0
      %v6210 = vpop.f32.mrb[0].mxu0
      %v6211 = vadd.f32 %v6067, %v6210
      %v6212 = vpop.f32.mrb[0].mxu0
      %6213 = vmatprep.mubr.bf16.mxu0 0
      %6214 = vmatmul.mubr.bf16.gmra.mrb[0].mxu0 %v1293
      %v6215 = vpop.f32.mrb[0].mxu0
      %v6216 = vadd.f32 %v6067, %v6215
      %v6217 = vpop.f32.mrb[0].mxu0
      %v6218 = vpop.f32.mrb[0].mxu0
      %v6219 = vadd.f32 %v6067, %v6218
      %v6220 = vpop.f32.mrb[0].mxu0
      %6221 = vmatprep.mubr.bf16.mxu0 0
      %6222 = vmatmul.mubr.bf16.gmra.mrb[0].mxu0 %v1294
      %v6223 = vpop.f32.mrb[0].mxu0
      %v6224 = vadd.f32 %v6067, %v6223
      %v6225 = vpop.f32.mrb[0].mxu0
      %v6226 = vpop.f32.mrb[0].mxu0
      %v6227 = vadd.f32 %v6067, %v6226
      %v6228 = vpop.f32.mrb[0].mxu0
      %6229 = vmatprep.mubr.bf16.mxu0 0
      %6230 = vmatmul.mubr.bf16.gmra.mrb[0].mxu0 %v1295
      %v6231 = vpop.f32.mrb[0].mxu0
      %v6232 = vadd.f32 %v6067, %v6231
      %v6233 = vpop.f32.mrb[0].mxu0
      %v6234 = vpop.f32.mrb[0].mxu0
      %v6235 = vadd.f32 %v6067, %v6234
      %v6236 = vpop.f32.mrb[0].mxu0
      %6237 = vmatprep.mubr.bf16.mxu0 0
      %6238 = vmatmul.mubr.bf16.gmra.mrb[0].mxu0 %v1296
      %v6239 = vpop.f32.mrb[0].mxu0
      %v6240 = vadd.f32 %v6067, %v6239
      %v6241 = vpop.f32.mrb[0].mxu0
      %v6242 = vpop.f32.mrb[0].mxu0
      %v6243 = vadd.f32 %v6067, %v6242
      %v6244 = vpop.f32.mrb[0].mxu0
      %6245 = vmatprep.mubr.bf16.mxu0 0
      %6246 = vmatmul.mubr.bf16.gmra.mrb[0].mxu0 %v1297
      %v6247 = vpop.f32.mrb[0].mxu0
      %v6248 = vadd.f32 %v6067, %v6247
      %v6249 = vpop.f32.mrb[0].mxu0
      %v6250 = vpop.f32.mrb[0].mxu0
      %v6251 = vadd.f32 %v6067, %v6250
      %v6252 = vpop.f32.mrb[0].mxu0
      %6253 = vmatprep.mubr.bf16.mxu0 0
      %6254 = vmatmul.mubr.bf16.gmra.mrb[0].mxu0 %v1298
      %v6255 = vpop.f32.mrb[0].mxu0
      %v6256 = vadd.f32 %v6067, %v6255
      %v6257 = vpop.f32.mrb[0].mxu0
      %v6258 = vpop.f32.mrb[0].mxu0
      %v6259 = vadd.f32 %v6067, %v6258
      %v6260 = vpop.f32.mrb[0].mxu0
      %6261 = vmatprep.mubr.bf16.mxu0 0
      %6262 = vmatmul.mubr.bf16.gmra.mrb[0].mxu0 %v1299
      %v6263 = vpop.f32.mrb[0].mxu0
      %v6264 = vadd.f32 %v6067, %v6263
      %v6265 = vpop.f32.mrb[0].mxu0
      %v6266 = vpop.f32.mrb[0].mxu0
      %v6267 = vadd.f32 %v6067, %v6266
      %v6268 = vpop.f32.mrb[0].mxu0
      %6269 = vmatprep.mubr.bf16.mxu0 0
      %6270 = vmatmul.mubr.bf16.gmra.mrb[0].mxu0 %v1300
      %v6271 = vpop.f32.mrb[0].mxu0
      %v6272 = vadd.f32 %v6067, %v6271
      %v6273 = vpop.f32.mrb[0].mxu0
      %v6274 = vpop.f32.mrb[0].mxu0
      %v6275 = vadd.f32 %v6067, %v6274
      %v6276 = vpop.f32.mrb[0].mxu0
      %6277 = vdwg.mxu0
      %v6278 = vadd.f32 %v5920, %v6152
      %v6279 = vadd.f32 %v5923, %v6155
      %v6280 = vadd.f32 %v5928, %v6160
      %v6281 = vadd.f32 %v5931, %v6163
      %v6282 = vadd.f32 %v5936, %v6168
      %v6283 = vadd.f32 %v5939, %v6171
      %v6284 = vadd.f32 %v5944, %v6176
      %v6285 = vadd.f32 %v5947, %v6179
      %v6286 = vadd.f32 %v5952, %v6184
      %v6287 = vadd.f32 %v5955, %v6187
      %v6288 = vadd.f32 %v5960, %v6192
      %v6289 = vadd.f32 %v5963, %v6195
      %v6290 = vadd.f32 %v5968, %v6200
      %v6291 = vadd.f32 %v5971, %v6203
      %v6292 = vadd.f32 %v5976, %v6208
      %v6293 = vadd.f32 %v5979, %v6211
      %v6294 = vadd.f32 %v5984, %v6216
      %v6295 = vadd.f32 %v5987, %v6219
      %v6296 = vadd.f32 %v5992, %v6224
      %v6297 = vadd.f32 %v5995, %v6227
      %v6298 = vadd.f32 %v6000, %v6232
      %v6299 = vadd.f32 %v6003, %v6235
      %v6300 = vadd.f32 %v6008, %v6240
      %v6301 = vadd.f32 %v6011, %v6243
      %v6302 = vadd.f32 %v6016, %v6248
      %v6303 = vadd.f32 %v6019, %v6251
      %v6304 = vadd.f32 %v6024, %v6256
      %v6305 = vadd.f32 %v6027, %v6259
      %v6306 = vadd.f32 %v6032, %v6264
      %v6307 = vadd.f32 %v6035, %v6267
      %v6308 = vadd.f32 %v6040, %v6272
      %v6309 = vadd.f32 %v6043, %v6275
      %v6310 = vmax.f32 %v6278, 0.0
      %v6311 = vmax.f32 %v6279, 0.0
      %v6312 = vmax.f32 %v6280, 0.0
      %v6313 = vmax.f32 %v6281, 0.0
      %v6314 = vmax.f32 %v6282, 0.0
      %v6315 = vmax.f32 %v6283, 0.0
      %v6316 = vmax.f32 %v6284, 0.0
      %v6317 = vmax.f32 %v6285, 0.0
      %v6318 = vmax.f32 %v6286, 0.0
      %v6319 = vmax.f32 %v6287, 0.0
      %v6320 = vmax.f32 %v6288, 0.0
      %v6321 = vmax.f32 %v6289, 0.0
      %v6322 = vmax.f32 %v6290, 0.0
      %v6323 = vmax.f32 %v6291, 0.0
      %v6324 = vmax.f32 %v6292, 0.0
      %v6325 = vmax.f32 %v6293, 0.0
      %v6326 = vmax.f32 %v6294, 0.0
      %v6327 = vmax.f32 %v6295, 0.0
      %v6328 = vmax.f32 %v6296, 0.0
      %v6329 = vmax.f32 %v6297, 0.0
      %v6330 = vmax.f32 %v6298, 0.0
      %v6331 = vmax.f32 %v6299, 0.0
      %v6332 = vmax.f32 %v6300, 0.0
      %v6333 = vmax.f32 %v6301, 0.0
      %v6334 = vmax.f32 %v6302, 0.0
      %v6335 = vmax.f32 %v6303, 0.0
      %v6336 = vmax.f32 %v6304, 0.0
      %v6337 = vmax.f32 %v6305, 0.0
      %v6338 = vmax.f32 %v6306, 0.0
      %v6339 = vmax.f32 %v6307, 0.0
      %v6340 = vmax.f32 %v6308, 0.0
      %v6341 = vmax.f32 %v6309, 0.0
      %v6342 = vpack.c.bf16 %v6311, %v6310
      %v6343 = vpack.c.bf16 %v6313, %v6312
      %v6344 = vpack.c.bf16 %v6315, %v6314
      %v6345 = vpack.c.bf16 %v6317, %v6316
      %v6346 = vpack.c.bf16 %v6319, %v6318
      %v6347 = vpack.c.bf16 %v6321, %v6320
      %v6348 = vpack.c.bf16 %v6323, %v6322
      %v6349 = vpack.c.bf16 %v6325, %v6324
      %v6350 = vpack.c.bf16 %v6327, %v6326
      %v6351 = vpack.c.bf16 %v6329, %v6328
      %v6352 = vpack.c.bf16 %v6331, %v6330
      %v6353 = vpack.c.bf16 %v6333, %v6332
      %v6354 = vpack.c.bf16 %v6335, %v6334
      %v6355 = vpack.c.bf16 %v6337, %v6336
      %v6356 = vpack.c.bf16 %v6339, %v6338
      %v6357 = vpack.c.bf16 %v6341, %v6340
      %v6374 = vunpack.c.l.b16 %v6342
      %v6375 = vunpack.c.h.b16 %v6342
      %v6376 = vunpack.c.l.b16 %v6343
      %v6377 = vunpack.c.h.b16 %v6343
      %v6378 = vunpack.c.l.b16 %v6344
      %v6379 = vunpack.c.h.b16 %v6344
      %v6380 = vunpack.c.l.b16 %v6345
      %v6381 = vunpack.c.h.b16 %v6345
      %v6382 = vunpack.c.l.b16 %v6346
      %v6383 = vunpack.c.h.b16 %v6346
      %v6384 = vunpack.c.l.b16 %v6347
      %v6385 = vunpack.c.h.b16 %v6347
      %v6386 = vunpack.c.l.b16 %v6348
      %v6387 = vunpack.c.h.b16 %v6348
      %v6388 = vunpack.c.l.b16 %v6349
      %v6389 = vunpack.c.h.b16 %v6349
      %v6390 = vunpack.c.l.b16 %v6350
      %v6391 = vunpack.c.h.b16 %v6350
      %v6392 = vunpack.c.l.b16 %v6351
      %v6393 = vunpack.c.h.b16 %v6351
      %v6394 = vunpack.c.l.b16 %v6352
      %v6395 = vunpack.c.h.b16 %v6352
      %v6396 = vunpack.c.l.b16 %v6353
      %v6397 = vunpack.c.h.b16 %v6353
      %v6398 = vunpack.c.l.b16 %v6354
      %v6399 = vunpack.c.h.b16 %v6354
      %v6400 = vunpack.c.l.b16 %v6355
      %v6401 = vunpack.c.h.b16 %v6355
      %v6402 = vunpack.c.l.b16 %v6356
      %v6403 = vunpack.c.h.b16 %v6356
      %v6404 = vunpack.c.l.b16 %v6357
      %v6405 = vunpack.c.h.b16 %v6357
      %v6406 = vpack.c.b16 %v6374, %v6374
      %v6407 = vpack.c.b16 %v6375, %v6375
      %v6408 = vpack.c.b16 %v6376, %v6376
      %v6409 = vpack.c.b16 %v6377, %v6377
      %v6410 = vpack.c.b16 %v6378, %v6378
      %v6411 = vpack.c.b16 %v6379, %v6379
      %v6412 = vpack.c.b16 %v6380, %v6380
      %v6413 = vpack.c.b16 %v6381, %v6381
      %v6414 = vpack.c.b16 %v6382, %v6382
      %v6415 = vpack.c.b16 %v6383, %v6383
      %v6416 = vpack.c.b16 %v6384, %v6384
      %v6417 = vpack.c.b16 %v6385, %v6385
      %v6418 = vpack.c.b16 %v6386, %v6386
      %v6419 = vpack.c.b16 %v6387, %v6387
      %v6420 = vpack.c.b16 %v6388, %v6388
      %v6421 = vpack.c.b16 %v6389, %v6389
      %v6422 = vpack.c.b16 %v6390, %v6390
      %v6423 = vpack.c.b16 %v6391, %v6391
      %v6424 = vpack.c.b16 %v6392, %v6392
      %v6425 = vpack.c.b16 %v6393, %v6393
      %v6426 = vpack.c.b16 %v6394, %v6394
      %v6427 = vpack.c.b16 %v6395, %v6395
      %v6428 = vpack.c.b16 %v6396, %v6396
      %v6429 = vpack.c.b16 %v6397, %v6397
      %v6430 = vpack.c.b16 %v6398, %v6398
      %v6431 = vpack.c.b16 %v6399, %v6399
      %v6432 = vpack.c.b16 %v6400, %v6400
      %v6433 = vpack.c.b16 %v6401, %v6401
      %v6434 = vpack.c.b16 %v6402, %v6402
      %v6435 = vpack.c.b16 %v6403, %v6403
      %v6436 = vpack.c.b16 %v6404, %v6404
      %v6437 = vpack.c.b16 %v6405, %v6405
      %6470 = vst [vmem:[%s426] sm:$0xf] %v6406
      %6471 = vst [vmem:[%s426 + $0x4] sm:$0xf] %v6407
      %6472 = vst [vmem:[%s426 + $0x8] sm:$0xf] %v6408
      %6473 = vst [vmem:[%s426 + $0xc] sm:$0xf] %v6409
      %6474 = vst [vmem:[%s426 + $0x10] sm:$0xf] %v6410
      %6475 = vst [vmem:[%s426 + $0x14] sm:$0xf] %v6411
      %6476 = vst [vmem:[%s426 + $0x18] sm:$0xf] %v6412
      %6477 = vst [vmem:[%s426 + $0x1c] sm:$0xf] %v6413
      %6478 = vst [vmem:[%s426 + $0x20] sm:$0xf] %v6414
      %6479 = vst [vmem:[%s426 + $0x24] sm:$0xf] %v6415
      %6480 = vst [vmem:[%s426 + $0x28] sm:$0xf] %v6416
      %6481 = vst [vmem:[%s426 + $0x2c] sm:$0xf] %v6417
      %6482 = vst [vmem:[%s426 + $0x30] sm:$0xf] %v6418
      %6483 = vst [vmem:[%s426 + $0x34] sm:$0xf] %v6419
      %6484 = vst [vmem:[%s426 + $0x38] sm:$0xf] %v6420
      %6485 = vst [vmem:[%s426 + $0x3c] sm:$0xf] %v6421
      %6486 = vst [vmem:[%s426 + $0x40] sm:$0xf] %v6422
      %6487 = vst [vmem:[%s426 + $0x44] sm:$0xf] %v6423
      %6488 = vst [vmem:[%s426 + $0x48] sm:$0xf] %v6424
      %6489 = vst [vmem:[%s426 + $0x4c] sm:$0xf] %v6425
      %6490 = vst [vmem:[%s426 + $0x50] sm:$0xf] %v6426
      %6491 = vst [vmem:[%s426 + $0x54] sm:$0xf] %v6427
      %6492 = vst [vmem:[%s426 + $0x58] sm:$0xf] %v6428
      %6493 = vst [vmem:[%s426 + $0x5c] sm:$0xf] %v6429
      %6494 = vst [vmem:[%s426 + $0x60] sm:$0xf] %v6430
      %6495 = vst [vmem:[%s426 + $0x64] sm:$0xf] %v6431
      %6496 = vst [vmem:[%s426 + $0x68] sm:$0xf] %v6432
      %6497 = vst [vmem:[%s426 + $0x6c] sm:$0xf] %v6433
      %6498 = vst [vmem:[%s426 + $0x70] sm:$0xf] %v6434
      %6499 = vst [vmem:[%s426 + $0x74] sm:$0xf] %v6435
      %6500 = vst [vmem:[%s426 + $0x78] sm:$0xf] %v6436
      %6501 = vst [vmem:[%s426 + $0x7c] sm:$0xf] %v6437
      %s6502 = smul.u32 16, %s24
      %p6503 = scmp.lt.s32.totalorder %s23, 1
      %s6504 = scalar_select %p6503, %s23, 1
      %p6505 = scmp.lt.s32.totalorder %s6502, 15
      %s6506 = scalar_select %p6505, %s6502, 15
      %s6507 = smul.addr %s6506, 2
      %s6508 = smul.addr %s6504, 32
      %s6509 = sadd.s32 %s6507, %s6508
      %s6510 = smul.addr %s6509, 4
      %s6511 = scalar_lea.vmem %s8, %s6510
      // Predicated region
      $region53: #{basic_block_forward.1} parent=51 // pred_check
        %p6512 = pneg %p237
      $region54: #{basic_block_forward.1} parent=51 // pred_check_branch
        %6514 = sbr.rel (%p6512) target = $region56
      $region55: #{basic_block_forward.1} parent=51 // pred_region
        %s6515 = smul.u32 16, %s24
      $region56: #{basic_block_forward.1} parent=51 // pred_fallthru
        _
    $region52: #{basic_block_forward.1} parent=5 // pred_fallthru
      _
    %p6516 = scmp.le.s32.totalorder 2, %s14
    // Predicated region
    $region57: #{basic_block_forward.1} parent=5 // pred_check
      %p6517 = pneg %p6516
    $region58: #{basic_block_forward.1} parent=5 // pred_check_branch
      %6519 = sbr.rel (%p6517) target = $region60
    $region59: #{basic_block_forward.1} parent=5 // pred_region
      %s6520 = ssub.s32 %s14, 2
      // Predicated region
      $region61: #{basic_block_forward.1} parent=59 // pred_check
        %p6521 = pneg %p243
      $region62: #{basic_block_forward.1} parent=59 // pred_check_branch
        %6523 = sbr.rel (%p6521) target = $region64
      $region63: #{basic_block_forward.1} parent=59 // pred_region
        %s6524 = smul.u32 16, %s26
        %p6525 = scmp.lt.s32.totalorder %s25, 1
        %s6526 = scalar_select %p6525, %s25, 1
        %p6527 = scmp.lt.s32.totalorder %s6524, 15
        %s6528 = scalar_select %p6527, %s6524, 15
        %s6529 = smul.addr %s6528, 2
        %s6530 = smul.addr %s6526, 32
        %s6531 = sadd.s32 %s6529, %s6530
        %s6532 = smul.addr %s6531, 4
        %s6533 = scalar_lea.vmem %s8, %s6532
      $region64: #{basic_block_forward.1} parent=59 // pred_fallthru
        _
    $region60: #{basic_block_forward.1} parent=5 // pred_fallthru
      _
  $region6: #{basic_block_forward.1} parent=0 // loop_footer
    %s18 = sadd.s32 1, %s14
  $region7: #{basic_block_forward.1} parent=0 // loop_footer_branch
    %13 = sbr.rel target = $region3
  $region8: #{basic_block_forward.1} parent=0 // loop_exit
    _

</llo_original>
